<compile_context>
chip_gen: v7x
topology: tpu7x:2x2x1
jax: 0.10.0
libtpu: 0.0.40
codegen_flags: <defaults>
</compile_context>

<pallas_src>
import math

import jax
import jax.numpy as jnp
from jax import lax
from jax.experimental import pallas as pl
from jax.experimental.pallas import tpu as pltpu

# ----------------------------------------------------------------------------
# Scaled-down BERT config (bert-base-uncased architecture, synthetic weights).
# ----------------------------------------------------------------------------
VOCAB_SIZE = 1000
MAX_POS = 64
TYPE_VOCAB = 2
HIDDEN = 128
NUM_HEADS = 2
HEAD_DIM = HIDDEN // NUM_HEADS
INTERMEDIATE = 512
NUM_LAYERS = 2
NUM_LABELS = 2
LN_EPS = 1e-12
LANE = 128                       # lane width; also per-head padded width
QKV_PAD = 3 * NUM_HEADS * LANE   # fused QKV output lanes (head-padded)
CTX_PAD = NUM_HEADS * LANE       # attention context lanes (head-padded)

BATCH = 2
SEQ = 8
SCALE = 1.0 / math.sqrt(HEAD_DIM)

_VMEM = pl.BlockSpec(memory_space=pltpu.MemorySpace.VMEM)


# ----------------------------------------------------------------------------
# In-kernel helpers (traced inside the single fused kernel)
# ----------------------------------------------------------------------------
def _mm(x_f32, w_bf16):
    """MXU matmul: bf16 operands, f32 accumulation."""
    return jnp.dot(x_f32.astype(jnp.bfloat16), w_bf16,
                   preferred_element_type=jnp.float32)


def _mm_nt(a, b):
    """a @ b.T with bf16 operands, f32 accumulation (for Q K^T)."""
    return lax.dot_general(a.astype(jnp.bfloat16), b.astype(jnp.bfloat16),
                           (((1,), (1,)), ((), ())),
                           preferred_element_type=jnp.float32)


def _layernorm(x, g, b):
    """LayerNorm over the last (lane) axis; f32 statistics."""
    mu = jnp.mean(x, axis=-1, keepdims=True)
    xc = x - mu
    var = jnp.mean(xc * xc, axis=-1, keepdims=True)
    return xc * lax.rsqrt(var + LN_EPS) * g + b


def _attention(qkv):
    """Softmax self-attention for all (batch, head) pairs, statically unrolled.

    qkv: (B*S, QKV_PAD) f32.  Lane layout: [Q_h0 | Q_h1 | K_h0 | K_h1 | V_h0 | V_h1],
    each head block 128 lanes wide with lanes HEAD_DIM..127 zero, so every slice
    below is 128-lane aligned (no masked lane selects).
    Returns the context in the head-padded (B*S, CTX_PAD) layout.
    The default attention_mask of BertForSequenceClassification is all-ones,
    so no masking term is needed.
    """
    batch_ctx = []
    for b in range(BATCH):
        rows = slice(b * SEQ, (b + 1) * SEQ)            # sublane-aligned (SEQ == 8)
        head_ctx = []
        for hd in range(NUM_HEADS):
            q_off = (0 * NUM_HEADS + hd) * LANE
            k_off = (1 * NUM_HEADS + hd) * LANE
            v_off = (2 * NUM_HEADS + hd) * LANE
            qh = qkv[rows, q_off:q_off + LANE]          # (S, 128), tail lanes zero
            kh = qkv[rows, k_off:k_off + LANE]
            vh = qkv[rows, v_off:v_off + LANE]
            s = _mm_nt(qh, kh) * SCALE                  # (S, S); zero pad lanes add 0
            s = s - jnp.max(s, axis=-1, keepdims=True)
            p = jnp.exp(s)
            p = p * pl.reciprocal(jnp.sum(p, axis=-1, keepdims=True), approx=True)
            head_ctx.append(jnp.dot(p.astype(jnp.bfloat16), vh.astype(jnp.bfloat16),
                                    preferred_element_type=jnp.float32))  # (S, 128)
        batch_ctx.append(jnp.concatenate(head_ctx, axis=1))   # (S, CTX_PAD)
    return jnp.concatenate(batch_ctx, axis=0)                 # (B*S, CTX_PAD)


# ----------------------------------------------------------------------------
# The single fused kernel: embedding-LN -> NUM_LAYERS encoder layers ->
# pooler -> classifier (padded to 128 output lanes).
# ----------------------------------------------------------------------------
def _fused_bert_kernel(emb_ref, emb_ln_g_ref, emb_ln_b_ref,
                       qkv_w_ref, qkv_b_ref, ao_w_ref, ao_b_ref,
                       ln1_g_ref, ln1_b_ref, i_w_ref, i_b_ref,
                       o_w_ref, o_b_ref, ln2_g_ref, ln2_b_ref,
                       pool_w_ref, pool_b_ref, cls_w_ref, cls_b_ref,
                       out_ref):
    # Embedding LayerNorm (dropout is an eval-mode no-op).
    h = _layernorm(emb_ref[...], emb_ln_g_ref[...], emb_ln_b_ref[...])

    for l in range(NUM_LAYERS):                      # static unroll, weights in VMEM
        # --- self-attention block (fused, head-padded QKV matmul) ---
        qkv = _mm(h, qkv_w_ref[l]) + qkv_b_ref[l]    # (B*S, QKV_PAD)
        ctx = _attention(qkv)                        # (B*S, CTX_PAD)
        attn_out = _mm(ctx, ao_w_ref[l]) + ao_b_ref[l]         # (B*S, HIDDEN)
        h = _layernorm(attn_out + h, ln1_g_ref[l], ln1_b_ref[l])   # fused residual
        # --- feed-forward block ---
        # TODO(synk): HF bert-base default hidden_act is exact-erf GELU; the
        # tanh approximation used here is numerically close but not identical.
        inter = jax.nn.gelu(_mm(h, i_w_ref[l]) + i_b_ref[l], approximate=True)
        ffn_out = _mm(inter, o_w_ref[l]) + o_b_ref[l]
        h = _layernorm(ffn_out + h, ln2_g_ref[l], ln2_b_ref[l])    # fused residual

    # Pooler + classifier are row-wise; run them on all B*S rows (negligible
    # extra compute, keeps the tile 8x128-dense with unmasked stores) and pick
    # the [CLS] rows and first NUM_LABELS lanes outside the kernel.
    pooled = jnp.tanh(_mm(h, pool_w_ref[...]) + pool_b_ref[...])
    logits = _mm(pooled, cls_w_ref[...]) + cls_b_ref[...]          # (B*S, 128)
    out_ref[...] = logits.astype(out_ref.dtype)


# ----------------------------------------------------------------------------
# Forward: equivalent of NNtest.forward -> classification logits [B, NUM_LABELS]
# ----------------------------------------------------------------------------
def nntest_forward(params, observations):
    b, s = observations.shape
    # Embedding gathers (word + position + token_type(=0)) stay in plain JAX.
    emb = (jnp.take(params["word_emb"], observations, axis=0)
           + params["pos_emb"][:s][None, :, :]
           + params["type_emb"][0][None, None, :])
    emb = emb.reshape(b * s, HIDDEN).astype(jnp.float32)

    out = pl.pallas_call(
        _fused_bert_kernel,
        out_shape=jax.ShapeDtypeStruct((b * s, LANE), jnp.float32),
        in_specs=[_VMEM] * 19,
        out_specs=_VMEM,
        compiler_params=pltpu.CompilerParams(vmem_limit_bytes=32 * 1024 * 1024),
    )(emb,
      params["emb_ln_g"], params["emb_ln_b"],
      params["qkv_w"], params["qkv_b"],
      params["ao_w"], params["ao_b"],
      params["ln1_g"], params["ln1_b"],
      params["i_w"], params["i_b"],
      params["o_w"], params["o_b"],
      params["ln2_g"], params["ln2_b"],
      params["pool_w"], params["pool_b"],
      params["cls_w"], params["cls_b"])

    # [CLS] row of every sequence, first NUM_LABELS lanes.
    return out.reshape(b, s, LANE)[:, 0, :NUM_LABELS]


# ----------------------------------------------------------------------------
# Deterministic synthetic parameter init (BERT-style: normal(0, 0.02)).
# Matmul weights stored bf16 (MXU operands); biases / LN params / embeddings f32.
# Attention heads are padded from HEAD_DIM=64 to 128 lanes (zero pad) so that
# every lane slice inside the kernel is 128-aligned.
# ----------------------------------------------------------------------------
def init_params(key):
    keys = iter(jax.random.split(key, 64))

    def wf32(shape):
        return 0.02 * jax.random.normal(next(keys), shape, jnp.float32)

    def w(shape, dtype=jnp.bfloat16):
        return wf32(shape).astype(dtype)

    def zeros(shape):
        return jnp.zeros(shape, jnp.float32)

    def ones(shape):
        return jnp.ones(shape, jnp.float32)

    def pad_head_cols(wm):
        """(HIDDEN, HIDDEN) -> (HIDDEN, NUM_HEADS*LANE): per-head 64-col block
        goes to its own 128-lane block, extra lanes zero."""
        out = jnp.zeros((HIDDEN, NUM_HEADS * LANE), jnp.float32)
        for hd in range(NUM_HEADS):
            out = out.at[:, hd * LANE:hd * LANE + HEAD_DIM].set(
                wm[:, hd * HEAD_DIM:(hd + 1) * HEAD_DIM])
        return out

    def pad_head_rows(wm):
        """(HIDDEN, HIDDEN) -> (NUM_HEADS*LANE, HIDDEN): per-head 64-row block
        goes to its own 128-row block, extra rows zero (so padded context lanes
        contribute nothing)."""
        out = jnp.zeros((NUM_HEADS * LANE, HIDDEN), jnp.float32)
        for hd in range(NUM_HEADS):
            out = out.at[hd * LANE:hd * LANE + HEAD_DIM, :].set(
                wm[hd * HEAD_DIM:(hd + 1) * HEAD_DIM, :])
        return out

    qkv_w, ao_w, i_w, o_w = [], [], [], []
    for _ in range(NUM_LAYERS):
        qw, kw, vw = wf32((HIDDEN, HIDDEN)), wf32((HIDDEN, HIDDEN)), wf32((HIDDEN, HIDDEN))
        qkv_w.append(jnp.concatenate(
            [pad_head_cols(qw), pad_head_cols(kw), pad_head_cols(vw)],
            axis=1).astype(jnp.bfloat16))                      # (128, QKV_PAD)
        ao_w.append(pad_head_rows(wf32((HIDDEN, HIDDEN))).astype(jnp.bfloat16))  # (CTX_PAD, 128)
        i_w.append(w((HIDDEN, INTERMEDIATE)))
        o_w.append(w((INTERMEDIATE, HIDDEN)))

    cls_w_raw = wf32((HIDDEN, NUM_LABELS))
    cls_w = (jnp.zeros((HIDDEN, LANE), jnp.float32)
             .at[:, :NUM_LABELS].set(cls_w_raw)).astype(jnp.bfloat16)

    params = {
        "word_emb": wf32((VOCAB_SIZE, HIDDEN)),
        "pos_emb": wf32((MAX_POS, HIDDEN)),
        "type_emb": wf32((TYPE_VOCAB, HIDDEN)),
        "emb_ln_g": ones((1, HIDDEN)), "emb_ln_b": zeros((1, HIDDEN)),
        # per-layer weights stacked along a leading layer axis
        "qkv_w": jnp.stack(qkv_w),                             # (L, 128, 768) bf16
        "qkv_b": zeros((NUM_LAYERS, 1, QKV_PAD)),
        "ao_w": jnp.stack(ao_w),                               # (L, 256, 128) bf16
        "ao_b": zeros((NUM_LAYERS, 1, HIDDEN)),
        "ln1_g": ones((NUM_LAYERS, 1, HIDDEN)),
        "ln1_b": zeros((NUM_LAYERS, 1, HIDDEN)),
        "i_w": jnp.stack(i_w),                                 # (L, 128, 512) bf16
        "i_b": zeros((NUM_LAYERS, 1, INTERMEDIATE)),
        "o_w": jnp.stack(o_w),                                 # (L, 512, 128) bf16
        "o_b": zeros((NUM_LAYERS, 1, HIDDEN)),
        "ln2_g": ones((NUM_LAYERS, 1, HIDDEN)),
        "ln2_b": zeros((NUM_LAYERS, 1, HIDDEN)),
        "pool_w": w((HIDDEN, HIDDEN)),                         # (128, 128) bf16
        "pool_b": zeros((1, HIDDEN)),
        "cls_w": cls_w,                                        # (128, 128) bf16, padded
        "cls_b": zeros((1, LANE)),
    }
    return params


if __name__ == "__main__":
    key = jax.random.PRNGKey(0)
    pkey, okey = jax.random.split(key)
    params = init_params(pkey)

    # observations = token ids, as expected by BertForSequenceClassification
    observations = jax.random.randint(okey, (BATCH, SEQ), 0, VOCAB_SIZE,
                                      dtype=jnp.int32)

    logits = jax.jit(nntest_forward)(params, observations)
    logits = jax.block_until_ready(logits)

    assert logits.shape == (BATCH, NUM_LABELS)
    assert bool(jnp.all(jnp.isfinite(logits)))
    print("KERNEL_OK")
</pallas_src>

<mosaic_0001>
module attributes {stable_mosaic.version = 11 : i64} {
  func.func @_fused_bert_kernel(%arg0: memref<16x128xf32, #tpu.memory_space<vmem>>, %arg1: memref<1x128xf32, #tpu.memory_space<vmem>>, %arg2: memref<1x128xf32, #tpu.memory_space<vmem>>, %arg3: memref<2x128x768xbf16, #tpu.memory_space<vmem>>, %arg4: memref<2x1x768xf32, #tpu.memory_space<vmem>>, %arg5: memref<2x256x128xbf16, #tpu.memory_space<vmem>>, %arg6: memref<2x1x128xf32, #tpu.memory_space<vmem>>, %arg7: memref<2x1x128xf32, #tpu.memory_space<vmem>>, %arg8: memref<2x1x128xf32, #tpu.memory_space<vmem>>, %arg9: memref<2x128x512xbf16, #tpu.memory_space<vmem>>, %arg10: memref<2x1x512xf32, #tpu.memory_space<vmem>>, %arg11: memref<2x512x128xbf16, #tpu.memory_space<vmem>>, %arg12: memref<2x1x128xf32, #tpu.memory_space<vmem>>, %arg13: memref<2x1x128xf32, #tpu.memory_space<vmem>>, %arg14: memref<2x1x128xf32, #tpu.memory_space<vmem>>, %arg15: memref<128x128xbf16, #tpu.memory_space<vmem>>, %arg16: memref<1x128xf32, #tpu.memory_space<vmem>>, %arg17: memref<128x128xbf16, #tpu.memory_space<vmem>>, %arg18: memref<1x128xf32, #tpu.memory_space<vmem>>, %arg19: memref<16x128xf32, #tpu.memory_space<vmem>>) attributes {dimension_semantics = [], scalar_prefetch = 0 : i64, scratch_operands = 0 : i64, tpu.core_type = #tpu.core_type<tc>} {
    %c0 = arith.constant 0 : index
    %c0_0 = arith.constant 0 : index
    %0 = vector.load %arg0[%c0, %c0_0] : memref<16x128xf32, #tpu.memory_space<vmem>>, vector<16x128xf32>
    %c0_1 = arith.constant 0 : index
    %c0_2 = arith.constant 0 : index
    %1 = vector.load %arg1[%c0_1, %c0_2] : memref<1x128xf32, #tpu.memory_space<vmem>>, vector<1x128xf32>
    %c0_3 = arith.constant 0 : index
    %c0_4 = arith.constant 0 : index
    %2 = vector.load %arg2[%c0_3, %c0_4] : memref<1x128xf32, #tpu.memory_space<vmem>>, vector<1x128xf32>
    %cst = arith.constant dense<0.000000e+00> : vector<16xf32>
    %3 = vector.multi_reduction <add>, %0, %cst [1] : vector<16x128xf32> to vector<16xf32>
    %4 = vector.shape_cast %3 : vector<16xf32> to vector<16x1xf32>
    %cst_5 = arith.constant 1.280000e+02 : f32
    %5 = vector.broadcast %cst_5 : f32 to vector<16x1xf32>
    %6 = arith.divf %4, %5 : vector<16x1xf32>
    %7 = vector.broadcast %6 : vector<16x1xf32> to vector<16x128xf32>
    %8 = arith.subf %0, %7 : vector<16x128xf32>
    %9 = arith.mulf %8, %8 : vector<16x128xf32>
    %cst_6 = arith.constant dense<0.000000e+00> : vector<16xf32>
    %10 = vector.multi_reduction <add>, %9, %cst_6 [1] : vector<16x128xf32> to vector<16xf32>
    %11 = vector.shape_cast %10 : vector<16xf32> to vector<16x1xf32>
    %cst_7 = arith.constant 1.280000e+02 : f32
    %12 = vector.broadcast %cst_7 : f32 to vector<16x1xf32>
    %13 = arith.divf %11, %12 : vector<16x1xf32>
    %cst_8 = arith.constant 9.99999996E-13 : f32
    %14 = vector.broadcast %cst_8 : f32 to vector<16x1xf32>
    %15 = arith.addf %13, %14 : vector<16x1xf32>
    %16 = math.rsqrt %15 : vector<16x1xf32>
    %17 = vector.broadcast %16 : vector<16x1xf32> to vector<16x128xf32>
    %18 = arith.mulf %8, %17 : vector<16x128xf32>
    %19 = vector.broadcast %1 : vector<1x128xf32> to vector<16x128xf32>
    %20 = arith.mulf %18, %19 : vector<16x128xf32>
    %21 = vector.broadcast %2 : vector<1x128xf32> to vector<16x128xf32>
    %22 = arith.addf %20, %21 : vector<16x128xf32>
    %c0_9 = arith.constant 0 : index
    %c0_10 = arith.constant 0 : index
    %c0_11 = arith.constant 0 : index
    %23 = vector.load %arg3[%c0_9, %c0_10, %c0_11] : memref<2x128x768xbf16, #tpu.memory_space<vmem>>, vector<1x128x768xbf16>
    %24 = vector.shape_cast %23 : vector<1x128x768xbf16> to vector<128x768xbf16>
    %25 = arith.truncf %22 : vector<16x128xf32> to vector<16x128xbf16>
    %cst_12 = arith.constant dense<0.000000e+00> : vector<16x768xf32>
    %26 = tpu.matmul %25, %24, %cst_12 {dimension_numbers = #tpu.dot_dimension_numbers<[1], [0], [0], [1], [0, 0, 1, 1], [], []>} : vector<16x128xbf16>, vector<128x768xbf16>, vector<16x768xf32> -> vector<16x768xf32>
    %c0_13 = arith.constant 0 : index
    %c0_14 = arith.constant 0 : index
    %c0_15 = arith.constant 0 : index
    %27 = vector.load %arg4[%c0_13, %c0_14, %c0_15] : memref<2x1x768xf32, #tpu.memory_space<vmem>>, vector<1x1x768xf32>
    %28 = vector.shape_cast %27 : vector<1x1x768xf32> to vector<1x768xf32>
    %29 = vector.broadcast %28 : vector<1x768xf32> to vector<16x768xf32>
    %30 = arith.addf %26, %29 : vector<16x768xf32>
    %31 = vector.extract_strided_slice %30 {offsets = [0, 0], sizes = [8, 128], strides = [1, 1]} : vector<16x768xf32> to vector<8x128xf32>
    %32 = vector.extract_strided_slice %30 {offsets = [0, 256], sizes = [8, 128], strides = [1, 1]} : vector<16x768xf32> to vector<8x128xf32>
    %33 = vector.extract_strided_slice %30 {offsets = [0, 512], sizes = [8, 128], strides = [1, 1]} : vector<16x768xf32> to vector<8x128xf32>
    %34 = arith.truncf %31 : vector<8x128xf32> to vector<8x128xbf16>
    %35 = arith.truncf %32 : vector<8x128xf32> to vector<8x128xbf16>
    %cst_16 = arith.constant dense<0.000000e+00> : vector<8x8xf32>
    %36 = tpu.matmul %34, %35, %cst_16 {dimension_numbers = #tpu.dot_dimension_numbers<[1], [1], [0], [0], [0, 0, 1, 0], [], []>} : vector<8x128xbf16>, vector<8x128xbf16>, vector<8x8xf32> -> vector<8x8xf32>
    %cst_17 = arith.constant 1.250000e-01 : f32
    %37 = vector.broadcast %cst_17 : f32 to vector<8x8xf32>
    %38 = arith.mulf %36, %37 : vector<8x8xf32>
    %cst_18 = arith.constant dense<0xFF800000> : vector<8xf32>
    %39 = vector.multi_reduction <maximumf>, %38, %cst_18 [1] : vector<8x8xf32> to vector<8xf32>
    %40 = vector.shape_cast %39 : vector<8xf32> to vector<8x1xf32>
    %41 = vector.broadcast %40 : vector<8x1xf32> to vector<8x8xf32>
    %42 = arith.subf %38, %41 : vector<8x8xf32>
    %43 = math.exp %42 : vector<8x8xf32>
    %cst_19 = arith.constant dense<0.000000e+00> : vector<8xf32>
    %44 = vector.multi_reduction <add>, %43, %cst_19 [1] : vector<8x8xf32> to vector<8xf32>
    %45 = vector.shape_cast %44 : vector<8xf32> to vector<8x1xf32>
    %46 = tpu.reciprocal %45 {approx = true} : vector<8x1xf32> -> vector<8x1xf32>
    %47 = vector.broadcast %46 : vector<8x1xf32> to vector<8x8xf32>
    %48 = arith.mulf %43, %47 : vector<8x8xf32>
    %49 = arith.truncf %48 : vector<8x8xf32> to vector<8x8xbf16>
    %50 = arith.truncf %33 : vector<8x128xf32> to vector<8x128xbf16>
    %cst_20 = arith.constant dense<0.000000e+00> : vector<8x128xf32>
    %51 = tpu.matmul %49, %50, %cst_20 {dimension_numbers = #tpu.dot_dimension_numbers<[1], [0], [0], [1], [0, 0, 1, 1], [], []>} : vector<8x8xbf16>, vector<8x128xbf16>, vector<8x128xf32> -> vector<8x128xf32>
    %52 = vector.extract_strided_slice %30 {offsets = [0, 128], sizes = [8, 128], strides = [1, 1]} : vector<16x768xf32> to vector<8x128xf32>
    %53 = vector.extract_strided_slice %30 {offsets = [0, 384], sizes = [8, 128], strides = [1, 1]} : vector<16x768xf32> to vector<8x128xf32>
    %54 = vector.extract_strided_slice %30 {offsets = [0, 640], sizes = [8, 128], strides = [1, 1]} : vector<16x768xf32> to vector<8x128xf32>
    %55 = arith.truncf %52 : vector<8x128xf32> to vector<8x128xbf16>
    %56 = arith.truncf %53 : vector<8x128xf32> to vector<8x128xbf16>
    %cst_21 = arith.constant dense<0.000000e+00> : vector<8x8xf32>
    %57 = tpu.matmul %55, %56, %cst_21 {dimension_numbers = #tpu.dot_dimension_numbers<[1], [1], [0], [0], [0, 0, 1, 0], [], []>} : vector<8x128xbf16>, vector<8x128xbf16>, vector<8x8xf32> -> vector<8x8xf32>
    %cst_22 = arith.constant 1.250000e-01 : f32
    %58 = vector.broadcast %cst_22 : f32 to vector<8x8xf32>
    %59 = arith.mulf %57, %58 : vector<8x8xf32>
    %cst_23 = arith.constant dense<0xFF800000> : vector<8xf32>
    %60 = vector.multi_reduction <maximumf>, %59, %cst_23 [1] : vector<8x8xf32> to vector<8xf32>
    %61 = vector.shape_cast %60 : vector<8xf32> to vector<8x1xf32>
    %62 = vector.broadcast %61 : vector<8x1xf32> to vector<8x8xf32>
    %63 = arith.subf %59, %62 : vector<8x8xf32>
    %64 = math.exp %63 : vector<8x8xf32>
    %cst_24 = arith.constant dense<0.000000e+00> : vector<8xf32>
    %65 = vector.multi_reduction <add>, %64, %cst_24 [1] : vector<8x8xf32> to vector<8xf32>
    %66 = vector.shape_cast %65 : vector<8xf32> to vector<8x1xf32>
    %67 = tpu.reciprocal %66 {approx = true} : vector<8x1xf32> -> vector<8x1xf32>
    %68 = vector.broadcast %67 : vector<8x1xf32> to vector<8x8xf32>
    %69 = arith.mulf %64, %68 : vector<8x8xf32>
    %70 = arith.truncf %69 : vector<8x8xf32> to vector<8x8xbf16>
    %71 = arith.truncf %54 : vector<8x128xf32> to vector<8x128xbf16>
    %cst_25 = arith.constant dense<0.000000e+00> : vector<8x128xf32>
    %72 = tpu.matmul %70, %71, %cst_25 {dimension_numbers = #tpu.dot_dimension_numbers<[1], [0], [0], [1], [0, 0, 1, 1], [], []>} : vector<8x8xbf16>, vector<8x128xbf16>, vector<8x128xf32> -> vector<8x128xf32>
    %73 = tpu.concatenate %51, %72 in 1 : vector<8x128xf32>, vector<8x128xf32> -> vector<8x256xf32>
    %74 = vector.extract_strided_slice %30 {offsets = [8, 0], sizes = [8, 128], strides = [1, 1]} : vector<16x768xf32> to vector<8x128xf32>
    %75 = vector.extract_strided_slice %30 {offsets = [8, 256], sizes = [8, 128], strides = [1, 1]} : vector<16x768xf32> to vector<8x128xf32>
    %76 = vector.extract_strided_slice %30 {offsets = [8, 512], sizes = [8, 128], strides = [1, 1]} : vector<16x768xf32> to vector<8x128xf32>
    %77 = arith.truncf %74 : vector<8x128xf32> to vector<8x128xbf16>
    %78 = arith.truncf %75 : vector<8x128xf32> to vector<8x128xbf16>
    %cst_26 = arith.constant dense<0.000000e+00> : vector<8x8xf32>
    %79 = tpu.matmul %77, %78, %cst_26 {dimension_numbers = #tpu.dot_dimension_numbers<[1], [1], [0], [0], [0, 0, 1, 0], [], []>} : vector<8x128xbf16>, vector<8x128xbf16>, vector<8x8xf32> -> vector<8x8xf32>
    %cst_27 = arith.constant 1.250000e-01 : f32
    %80 = vector.broadcast %cst_27 : f32 to vector<8x8xf32>
    %81 = arith.mulf %79, %80 : vector<8x8xf32>
    %cst_28 = arith.constant dense<0xFF800000> : vector<8xf32>
    %82 = vector.multi_reduction <maximumf>, %81, %cst_28 [1] : vector<8x8xf32> to vector<8xf32>
    %83 = vector.shape_cast %82 : vector<8xf32> to vector<8x1xf32>
    %84 = vector.broadcast %83 : vector<8x1xf32> to vector<8x8xf32>
    %85 = arith.subf %81, %84 : vector<8x8xf32>
    %86 = math.exp %85 : vector<8x8xf32>
    %cst_29 = arith.constant dense<0.000000e+00> : vector<8xf32>
    %87 = vector.multi_reduction <add>, %86, %cst_29 [1] : vector<8x8xf32> to vector<8xf32>
    %88 = vector.shape_cast %87 : vector<8xf32> to vector<8x1xf32>
    %89 = tpu.reciprocal %88 {approx = true} : vector<8x1xf32> -> vector<8x1xf32>
    %90 = vector.broadcast %89 : vector<8x1xf32> to vector<8x8xf32>
    %91 = arith.mulf %86, %90 : vector<8x8xf32>
    %92 = arith.truncf %91 : vector<8x8xf32> to vector<8x8xbf16>
    %93 = arith.truncf %76 : vector<8x128xf32> to vector<8x128xbf16>
    %cst_30 = arith.constant dense<0.000000e+00> : vector<8x128xf32>
    %94 = tpu.matmul %92, %93, %cst_30 {dimension_numbers = #tpu.dot_dimension_numbers<[1], [0], [0], [1], [0, 0, 1, 1], [], []>} : vector<8x8xbf16>, vector<8x128xbf16>, vector<8x128xf32> -> vector<8x128xf32>
    %95 = vector.extract_strided_slice %30 {offsets = [8, 128], sizes = [8, 128], strides = [1, 1]} : vector<16x768xf32> to vector<8x128xf32>
    %96 = vector.extract_strided_slice %30 {offsets = [8, 384], sizes = [8, 128], strides = [1, 1]} : vector<16x768xf32> to vector<8x128xf32>
    %97 = vector.extract_strided_slice %30 {offsets = [8, 640], sizes = [8, 128], strides = [1, 1]} : vector<16x768xf32> to vector<8x128xf32>
    %98 = arith.truncf %95 : vector<8x128xf32> to vector<8x128xbf16>
    %99 = arith.truncf %96 : vector<8x128xf32> to vector<8x128xbf16>
    %cst_31 = arith.constant dense<0.000000e+00> : vector<8x8xf32>
    %100 = tpu.matmul %98, %99, %cst_31 {dimension_numbers = #tpu.dot_dimension_numbers<[1], [1], [0], [0], [0, 0, 1, 0], [], []>} : vector<8x128xbf16>, vector<8x128xbf16>, vector<8x8xf32> -> vector<8x8xf32>
    %cst_32 = arith.constant 1.250000e-01 : f32
    %101 = vector.broadcast %cst_32 : f32 to vector<8x8xf32>
    %102 = arith.mulf %100, %101 : vector<8x8xf32>
    %cst_33 = arith.constant dense<0xFF800000> : vector<8xf32>
    %103 = vector.multi_reduction <maximumf>, %102, %cst_33 [1] : vector<8x8xf32> to vector<8xf32>
    %104 = vector.shape_cast %103 : vector<8xf32> to vector<8x1xf32>
    %105 = vector.broadcast %104 : vector<8x1xf32> to vector<8x8xf32>
    %106 = arith.subf %102, %105 : vector<8x8xf32>
    %107 = math.exp %106 : vector<8x8xf32>
    %cst_34 = arith.constant dense<0.000000e+00> : vector<8xf32>
    %108 = vector.multi_reduction <add>, %107, %cst_34 [1] : vector<8x8xf32> to vector<8xf32>
    %109 = vector.shape_cast %108 : vector<8xf32> to vector<8x1xf32>
    %110 = tpu.reciprocal %109 {approx = true} : vector<8x1xf32> -> vector<8x1xf32>
    %111 = vector.broadcast %110 : vector<8x1xf32> to vector<8x8xf32>
    %112 = arith.mulf %107, %111 : vector<8x8xf32>
    %113 = arith.truncf %112 : vector<8x8xf32> to vector<8x8xbf16>
    %114 = arith.truncf %97 : vector<8x128xf32> to vector<8x128xbf16>
    %cst_35 = arith.constant dense<0.000000e+00> : vector<8x128xf32>
    %115 = tpu.matmul %113, %114, %cst_35 {dimension_numbers = #tpu.dot_dimension_numbers<[1], [0], [0], [1], [0, 0, 1, 1], [], []>} : vector<8x8xbf16>, vector<8x128xbf16>, vector<8x128xf32> -> vector<8x128xf32>
    %116 = tpu.concatenate %94, %115 in 1 : vector<8x128xf32>, vector<8x128xf32> -> vector<8x256xf32>
    %117 = tpu.concatenate %73, %116 in 0 : vector<8x256xf32>, vector<8x256xf32> -> vector<16x256xf32>
    %c0_36 = arith.constant 0 : index
    %c0_37 = arith.constant 0 : index
    %c0_38 = arith.constant 0 : index
    %118 = vector.load %arg5[%c0_36, %c0_37, %c0_38] : memref<2x256x128xbf16, #tpu.memory_space<vmem>>, vector<1x256x128xbf16>
    %119 = vector.shape_cast %118 : vector<1x256x128xbf16> to vector<256x128xbf16>
    %120 = arith.truncf %117 : vector<16x256xf32> to vector<16x256xbf16>
    %cst_39 = arith.constant dense<0.000000e+00> : vector<16x128xf32>
    %121 = tpu.matmul %120, %119, %cst_39 {dimension_numbers = #tpu.dot_dimension_numbers<[1], [0], [0], [1], [0, 0, 1, 1], [], []>} : vector<16x256xbf16>, vector<256x128xbf16>, vector<16x128xf32> -> vector<16x128xf32>
    %c0_40 = arith.constant 0 : index
    %c0_41 = arith.constant 0 : index
    %c0_42 = arith.constant 0 : index
    %122 = vector.load %arg6[%c0_40, %c0_41, %c0_42] : memref<2x1x128xf32, #tpu.memory_space<vmem>>, vector<1x1x128xf32>
    %123 = vector.shape_cast %122 : vector<1x1x128xf32> to vector<1x128xf32>
    %124 = vector.broadcast %123 : vector<1x128xf32> to vector<16x128xf32>
    %125 = arith.addf %121, %124 : vector<16x128xf32>
    %126 = arith.addf %125, %22 : vector<16x128xf32>
    %c0_43 = arith.constant 0 : index
    %c0_44 = arith.constant 0 : index
    %c0_45 = arith.constant 0 : index
    %127 = vector.load %arg7[%c0_43, %c0_44, %c0_45] : memref<2x1x128xf32, #tpu.memory_space<vmem>>, vector<1x1x128xf32>
    %128 = vector.shape_cast %127 : vector<1x1x128xf32> to vector<1x128xf32>
    %c0_46 = arith.constant 0 : index
    %c0_47 = arith.constant 0 : index
    %c0_48 = arith.constant 0 : index
    %129 = vector.load %arg8[%c0_46, %c0_47, %c0_48] : memref<2x1x128xf32, #tpu.memory_space<vmem>>, vector<1x1x128xf32>
    %130 = vector.shape_cast %129 : vector<1x1x128xf32> to vector<1x128xf32>
    %cst_49 = arith.constant dense<0.000000e+00> : vector<16xf32>
    %131 = vector.multi_reduction <add>, %126, %cst_49 [1] : vector<16x128xf32> to vector<16xf32>
    %132 = vector.shape_cast %131 : vector<16xf32> to vector<16x1xf32>
    %cst_50 = arith.constant 1.280000e+02 : f32
    %133 = vector.broadcast %cst_50 : f32 to vector<16x1xf32>
    %134 = arith.divf %132, %133 : vector<16x1xf32>
    %135 = vector.broadcast %134 : vector<16x1xf32> to vector<16x128xf32>
    %136 = arith.subf %126, %135 : vector<16x128xf32>
    %137 = arith.mulf %136, %136 : vector<16x128xf32>
    %cst_51 = arith.constant dense<0.000000e+00> : vector<16xf32>
    %138 = vector.multi_reduction <add>, %137, %cst_51 [1] : vector<16x128xf32> to vector<16xf32>
    %139 = vector.shape_cast %138 : vector<16xf32> to vector<16x1xf32>
    %cst_52 = arith.constant 1.280000e+02 : f32
    %140 = vector.broadcast %cst_52 : f32 to vector<16x1xf32>
    %141 = arith.divf %139, %140 : vector<16x1xf32>
    %cst_53 = arith.constant 9.99999996E-13 : f32
    %142 = vector.broadcast %cst_53 : f32 to vector<16x1xf32>
    %143 = arith.addf %141, %142 : vector<16x1xf32>
    %144 = math.rsqrt %143 : vector<16x1xf32>
    %145 = vector.broadcast %144 : vector<16x1xf32> to vector<16x128xf32>
    %146 = arith.mulf %136, %145 : vector<16x128xf32>
    %147 = vector.broadcast %128 : vector<1x128xf32> to vector<16x128xf32>
    %148 = arith.mulf %146, %147 : vector<16x128xf32>
    %149 = vector.broadcast %130 : vector<1x128xf32> to vector<16x128xf32>
    %150 = arith.addf %148, %149 : vector<16x128xf32>
    %c0_54 = arith.constant 0 : index
    %c0_55 = arith.constant 0 : index
    %c0_56 = arith.constant 0 : index
    %151 = vector.load %arg9[%c0_54, %c0_55, %c0_56] : memref<2x128x512xbf16, #tpu.memory_space<vmem>>, vector<1x128x512xbf16>
    %152 = vector.shape_cast %151 : vector<1x128x512xbf16> to vector<128x512xbf16>
    %153 = arith.truncf %150 : vector<16x128xf32> to vector<16x128xbf16>
    %cst_57 = arith.constant dense<0.000000e+00> : vector<16x512xf32>
    %154 = tpu.matmul %153, %152, %cst_57 {dimension_numbers = #tpu.dot_dimension_numbers<[1], [0], [0], [1], [0, 0, 1, 1], [], []>} : vector<16x128xbf16>, vector<128x512xbf16>, vector<16x512xf32> -> vector<16x512xf32>
    %c0_58 = arith.constant 0 : index
    %c0_59 = arith.constant 0 : index
    %c0_60 = arith.constant 0 : index
    %155 = vector.load %arg10[%c0_58, %c0_59, %c0_60] : memref<2x1x512xf32, #tpu.memory_space<vmem>>, vector<1x1x512xf32>
    %156 = vector.shape_cast %155 : vector<1x1x512xf32> to vector<1x512xf32>
    %157 = vector.broadcast %156 : vector<1x512xf32> to vector<16x512xf32>
    %158 = arith.addf %154, %157 : vector<16x512xf32>
    %159 = arith.mulf %158, %158 : vector<16x512xf32>
    %160 = arith.mulf %158, %159 : vector<16x512xf32>
    %cst_61 = arith.constant 4.471500e-02 : f32
    %161 = vector.broadcast %cst_61 : f32 to vector<16x512xf32>
    %162 = arith.mulf %161, %160 : vector<16x512xf32>
    %163 = arith.addf %158, %162 : vector<16x512xf32>
    %cst_62 = arith.constant 0.797884583 : f32
    %164 = vector.broadcast %cst_62 : f32 to vector<16x512xf32>
    %165 = arith.mulf %164, %163 : vector<16x512xf32>
    %166 = math.tanh %165 : vector<16x512xf32>
    %cst_63 = arith.constant 1.000000e+00 : f32
    %167 = vector.broadcast %cst_63 : f32 to vector<16x512xf32>
    %168 = arith.addf %167, %166 : vector<16x512xf32>
    %cst_64 = arith.constant 5.000000e-01 : f32
    %169 = vector.broadcast %cst_64 : f32 to vector<16x512xf32>
    %170 = arith.mulf %169, %168 : vector<16x512xf32>
    %171 = arith.mulf %158, %170 : vector<16x512xf32>
    %c0_65 = arith.constant 0 : index
    %c0_66 = arith.constant 0 : index
    %c0_67 = arith.constant 0 : index
    %172 = vector.load %arg11[%c0_65, %c0_66, %c0_67] : memref<2x512x128xbf16, #tpu.memory_space<vmem>>, vector<1x512x128xbf16>
    %173 = vector.shape_cast %172 : vector<1x512x128xbf16> to vector<512x128xbf16>
    %174 = arith.truncf %171 : vector<16x512xf32> to vector<16x512xbf16>
    %cst_68 = arith.constant dense<0.000000e+00> : vector<16x128xf32>
    %175 = tpu.matmul %174, %173, %cst_68 {dimension_numbers = #tpu.dot_dimension_numbers<[1], [0], [0], [1], [0, 0, 1, 1], [], []>} : vector<16x512xbf16>, vector<512x128xbf16>, vector<16x128xf32> -> vector<16x128xf32>
    %c0_69 = arith.constant 0 : index
    %c0_70 = arith.constant 0 : index
    %c0_71 = arith.constant 0 : index
    %176 = vector.load %arg12[%c0_69, %c0_70, %c0_71] : memref<2x1x128xf32, #tpu.memory_space<vmem>>, vector<1x1x128xf32>
    %177 = vector.shape_cast %176 : vector<1x1x128xf32> to vector<1x128xf32>
    %178 = vector.broadcast %177 : vector<1x128xf32> to vector<16x128xf32>
    %179 = arith.addf %175, %178 : vector<16x128xf32>
    %180 = arith.addf %179, %150 : vector<16x128xf32>
    %c0_72 = arith.constant 0 : index
    %c0_73 = arith.constant 0 : index
    %c0_74 = arith.constant 0 : index
    %181 = vector.load %arg13[%c0_72, %c0_73, %c0_74] : memref<2x1x128xf32, #tpu.memory_space<vmem>>, vector<1x1x128xf32>
    %182 = vector.shape_cast %181 : vector<1x1x128xf32> to vector<1x128xf32>
    %c0_75 = arith.constant 0 : index
    %c0_76 = arith.constant 0 : index
    %c0_77 = arith.constant 0 : index
    %183 = vector.load %arg14[%c0_75, %c0_76, %c0_77] : memref<2x1x128xf32, #tpu.memory_space<vmem>>, vector<1x1x128xf32>
    %184 = vector.shape_cast %183 : vector<1x1x128xf32> to vector<1x128xf32>
    %cst_78 = arith.constant dense<0.000000e+00> : vector<16xf32>
    %185 = vector.multi_reduction <add>, %180, %cst_78 [1] : vector<16x128xf32> to vector<16xf32>
    %186 = vector.shape_cast %185 : vector<16xf32> to vector<16x1xf32>
    %cst_79 = arith.constant 1.280000e+02 : f32
    %187 = vector.broadcast %cst_79 : f32 to vector<16x1xf32>
    %188 = arith.divf %186, %187 : vector<16x1xf32>
    %189 = vector.broadcast %188 : vector<16x1xf32> to vector<16x128xf32>
    %190 = arith.subf %180, %189 : vector<16x128xf32>
    %191 = arith.mulf %190, %190 : vector<16x128xf32>
    %cst_80 = arith.constant dense<0.000000e+00> : vector<16xf32>
    %192 = vector.multi_reduction <add>, %191, %cst_80 [1] : vector<16x128xf32> to vector<16xf32>
    %193 = vector.shape_cast %192 : vector<16xf32> to vector<16x1xf32>
    %cst_81 = arith.constant 1.280000e+02 : f32
    %194 = vector.broadcast %cst_81 : f32 to vector<16x1xf32>
    %195 = arith.divf %193, %194 : vector<16x1xf32>
    %cst_82 = arith.constant 9.99999996E-13 : f32
    %196 = vector.broadcast %cst_82 : f32 to vector<16x1xf32>
    %197 = arith.addf %195, %196 : vector<16x1xf32>
    %198 = math.rsqrt %197 : vector<16x1xf32>
    %199 = vector.broadcast %198 : vector<16x1xf32> to vector<16x128xf32>
    %200 = arith.mulf %190, %199 : vector<16x128xf32>
    %201 = vector.broadcast %182 : vector<1x128xf32> to vector<16x128xf32>
    %202 = arith.mulf %200, %201 : vector<16x128xf32>
    %203 = vector.broadcast %184 : vector<1x128xf32> to vector<16x128xf32>
    %204 = arith.addf %202, %203 : vector<16x128xf32>
    %c1 = arith.constant 1 : index
    %c0_83 = arith.constant 0 : index
    %c0_84 = arith.constant 0 : index
    %205 = vector.load %arg3[%c1, %c0_83, %c0_84] : memref<2x128x768xbf16, #tpu.memory_space<vmem>>, vector<1x128x768xbf16>
    %206 = vector.shape_cast %205 : vector<1x128x768xbf16> to vector<128x768xbf16>
    %207 = arith.truncf %204 : vector<16x128xf32> to vector<16x128xbf16>
    %cst_85 = arith.constant dense<0.000000e+00> : vector<16x768xf32>
    %208 = tpu.matmul %207, %206, %cst_85 {dimension_numbers = #tpu.dot_dimension_numbers<[1], [0], [0], [1], [0, 0, 1, 1], [], []>} : vector<16x128xbf16>, vector<128x768xbf16>, vector<16x768xf32> -> vector<16x768xf32>
    %c1_86 = arith.constant 1 : index
    %c0_87 = arith.constant 0 : index
    %c0_88 = arith.constant 0 : index
    %209 = vector.load %arg4[%c1_86, %c0_87, %c0_88] : memref<2x1x768xf32, #tpu.memory_space<vmem>>, vector<1x1x768xf32>
    %210 = vector.shape_cast %209 : vector<1x1x768xf32> to vector<1x768xf32>
    %211 = vector.broadcast %210 : vector<1x768xf32> to vector<16x768xf32>
    %212 = arith.addf %208, %211 : vector<16x768xf32>
    %213 = vector.extract_strided_slice %212 {offsets = [0, 0], sizes = [8, 128], strides = [1, 1]} : vector<16x768xf32> to vector<8x128xf32>
    %214 = vector.extract_strided_slice %212 {offsets = [0, 256], sizes = [8, 128], strides = [1, 1]} : vector<16x768xf32> to vector<8x128xf32>
    %215 = vector.extract_strided_slice %212 {offsets = [0, 512], sizes = [8, 128], strides = [1, 1]} : vector<16x768xf32> to vector<8x128xf32>
    %216 = arith.truncf %213 : vector<8x128xf32> to vector<8x128xbf16>
    %217 = arith.truncf %214 : vector<8x128xf32> to vector<8x128xbf16>
    %cst_89 = arith.constant dense<0.000000e+00> : vector<8x8xf32>
    %218 = tpu.matmul %216, %217, %cst_89 {dimension_numbers = #tpu.dot_dimension_numbers<[1], [1], [0], [0], [0, 0, 1, 0], [], []>} : vector<8x128xbf16>, vector<8x128xbf16>, vector<8x8xf32> -> vector<8x8xf32>
    %cst_90 = arith.constant 1.250000e-01 : f32
    %219 = vector.broadcast %cst_90 : f32 to vector<8x8xf32>
    %220 = arith.mulf %218, %219 : vector<8x8xf32>
    %cst_91 = arith.constant dense<0xFF800000> : vector<8xf32>
    %221 = vector.multi_reduction <maximumf>, %220, %cst_91 [1] : vector<8x8xf32> to vector<8xf32>
    %222 = vector.shape_cast %221 : vector<8xf32> to vector<8x1xf32>
    %223 = vector.broadcast %222 : vector<8x1xf32> to vector<8x8xf32>
    %224 = arith.subf %220, %223 : vector<8x8xf32>
    %225 = math.exp %224 : vector<8x8xf32>
    %cst_92 = arith.constant dense<0.000000e+00> : vector<8xf32>
    %226 = vector.multi_reduction <add>, %225, %cst_92 [1] : vector<8x8xf32> to vector<8xf32>
    %227 = vector.shape_cast %226 : vector<8xf32> to vector<8x1xf32>
    %228 = tpu.reciprocal %227 {approx = true} : vector<8x1xf32> -> vector<8x1xf32>
    %229 = vector.broadcast %228 : vector<8x1xf32> to vector<8x8xf32>
    %230 = arith.mulf %225, %229 : vector<8x8xf32>
    %231 = arith.truncf %230 : vector<8x8xf32> to vector<8x8xbf16>
    %232 = arith.truncf %215 : vector<8x128xf32> to vector<8x128xbf16>
    %cst_93 = arith.constant dense<0.000000e+00> : vector<8x128xf32>
    %233 = tpu.matmul %231, %232, %cst_93 {dimension_numbers = #tpu.dot_dimension_numbers<[1], [0], [0], [1], [0, 0, 1, 1], [], []>} : vector<8x8xbf16>, vector<8x128xbf16>, vector<8x128xf32> -> vector<8x128xf32>
    %234 = vector.extract_strided_slice %212 {offsets = [0, 128], sizes = [8, 128], strides = [1, 1]} : vector<16x768xf32> to vector<8x128xf32>
    %235 = vector.extract_strided_slice %212 {offsets = [0, 384], sizes = [8, 128], strides = [1, 1]} : vector<16x768xf32> to vector<8x128xf32>
    %236 = vector.extract_strided_slice %212 {offsets = [0, 640], sizes = [8, 128], strides = [1, 1]} : vector<16x768xf32> to vector<8x128xf32>
    %237 = arith.truncf %234 : vector<8x128xf32> to vector<8x128xbf16>
    %238 = arith.truncf %235 : vector<8x128xf32> to vector<8x128xbf16>
    %cst_94 = arith.constant dense<0.000000e+00> : vector<8x8xf32>
    %239 = tpu.matmul %237, %238, %cst_94 {dimension_numbers = #tpu.dot_dimension_numbers<[1], [1], [0], [0], [0, 0, 1, 0], [], []>} : vector<8x128xbf16>, vector<8x128xbf16>, vector<8x8xf32> -> vector<8x8xf32>
    %cst_95 = arith.constant 1.250000e-01 : f32
    %240 = vector.broadcast %cst_95 : f32 to vector<8x8xf32>
    %241 = arith.mulf %239, %240 : vector<8x8xf32>
    %cst_96 = arith.constant dense<0xFF800000> : vector<8xf32>
    %242 = vector.multi_reduction <maximumf>, %241, %cst_96 [1] : vector<8x8xf32> to vector<8xf32>
    %243 = vector.shape_cast %242 : vector<8xf32> to vector<8x1xf32>
    %244 = vector.broadcast %243 : vector<8x1xf32> to vector<8x8xf32>
    %245 = arith.subf %241, %244 : vector<8x8xf32>
    %246 = math.exp %245 : vector<8x8xf32>
    %cst_97 = arith.constant dense<0.000000e+00> : vector<8xf32>
    %247 = vector.multi_reduction <add>, %246, %cst_97 [1] : vector<8x8xf32> to vector<8xf32>
    %248 = vector.shape_cast %247 : vector<8xf32> to vector<8x1xf32>
    %249 = tpu.reciprocal %248 {approx = true} : vector<8x1xf32> -> vector<8x1xf32>
    %250 = vector.broadcast %249 : vector<8x1xf32> to vector<8x8xf32>
    %251 = arith.mulf %246, %250 : vector<8x8xf32>
    %252 = arith.truncf %251 : vector<8x8xf32> to vector<8x8xbf16>
    %253 = arith.truncf %236 : vector<8x128xf32> to vector<8x128xbf16>
    %cst_98 = arith.constant dense<0.000000e+00> : vector<8x128xf32>
    %254 = tpu.matmul %252, %253, %cst_98 {dimension_numbers = #tpu.dot_dimension_numbers<[1], [0], [0], [1], [0, 0, 1, 1], [], []>} : vector<8x8xbf16>, vector<8x128xbf16>, vector<8x128xf32> -> vector<8x128xf32>
    %255 = tpu.concatenate %233, %254 in 1 : vector<8x128xf32>, vector<8x128xf32> -> vector<8x256xf32>
    %256 = vector.extract_strided_slice %212 {offsets = [8, 0], sizes = [8, 128], strides = [1, 1]} : vector<16x768xf32> to vector<8x128xf32>
    %257 = vector.extract_strided_slice %212 {offsets = [8, 256], sizes = [8, 128], strides = [1, 1]} : vector<16x768xf32> to vector<8x128xf32>
    %258 = vector.extract_strided_slice %212 {offsets = [8, 512], sizes = [8, 128], strides = [1, 1]} : vector<16x768xf32> to vector<8x128xf32>
    %259 = arith.truncf %256 : vector<8x128xf32> to vector<8x128xbf16>
    %260 = arith.truncf %257 : vector<8x128xf32> to vector<8x128xbf16>
    %cst_99 = arith.constant dense<0.000000e+00> : vector<8x8xf32>
    %261 = tpu.matmul %259, %260, %cst_99 {dimension_numbers = #tpu.dot_dimension_numbers<[1], [1], [0], [0], [0, 0, 1, 0], [], []>} : vector<8x128xbf16>, vector<8x128xbf16>, vector<8x8xf32> -> vector<8x8xf32>
    %cst_100 = arith.constant 1.250000e-01 : f32
    %262 = vector.broadcast %cst_100 : f32 to vector<8x8xf32>
    %263 = arith.mulf %261, %262 : vector<8x8xf32>
    %cst_101 = arith.constant dense<0xFF800000> : vector<8xf32>
    %264 = vector.multi_reduction <maximumf>, %263, %cst_101 [1] : vector<8x8xf32> to vector<8xf32>
    %265 = vector.shape_cast %264 : vector<8xf32> to vector<8x1xf32>
    %266 = vector.broadcast %265 : vector<8x1xf32> to vector<8x8xf32>
    %267 = arith.subf %263, %266 : vector<8x8xf32>
    %268 = math.exp %267 : vector<8x8xf32>
    %cst_102 = arith.constant dense<0.000000e+00> : vector<8xf32>
    %269 = vector.multi_reduction <add>, %268, %cst_102 [1] : vector<8x8xf32> to vector<8xf32>
    %270 = vector.shape_cast %269 : vector<8xf32> to vector<8x1xf32>
    %271 = tpu.reciprocal %270 {approx = true} : vector<8x1xf32> -> vector<8x1xf32>
    %272 = vector.broadcast %271 : vector<8x1xf32> to vector<8x8xf32>
    %273 = arith.mulf %268, %272 : vector<8x8xf32>
    %274 = arith.truncf %273 : vector<8x8xf32> to vector<8x8xbf16>
    %275 = arith.truncf %258 : vector<8x128xf32> to vector<8x128xbf16>
    %cst_103 = arith.constant dense<0.000000e+00> : vector<8x128xf32>
    %276 = tpu.matmul %274, %275, %cst_103 {dimension_numbers = #tpu.dot_dimension_numbers<[1], [0], [0], [1], [0, 0, 1, 1], [], []>} : vector<8x8xbf16>, vector<8x128xbf16>, vector<8x128xf32> -> vector<8x128xf32>
    %277 = vector.extract_strided_slice %212 {offsets = [8, 128], sizes = [8, 128], strides = [1, 1]} : vector<16x768xf32> to vector<8x128xf32>
    %278 = vector.extract_strided_slice %212 {offsets = [8, 384], sizes = [8, 128], strides = [1, 1]} : vector<16x768xf32> to vector<8x128xf32>
    %279 = vector.extract_strided_slice %212 {offsets = [8, 640], sizes = [8, 128], strides = [1, 1]} : vector<16x768xf32> to vector<8x128xf32>
    %280 = arith.truncf %277 : vector<8x128xf32> to vector<8x128xbf16>
    %281 = arith.truncf %278 : vector<8x128xf32> to vector<8x128xbf16>
    %cst_104 = arith.constant dense<0.000000e+00> : vector<8x8xf32>
    %282 = tpu.matmul %280, %281, %cst_104 {dimension_numbers = #tpu.dot_dimension_numbers<[1], [1], [0], [0], [0, 0, 1, 0], [], []>} : vector<8x128xbf16>, vector<8x128xbf16>, vector<8x8xf32> -> vector<8x8xf32>
    %cst_105 = arith.constant 1.250000e-01 : f32
    %283 = vector.broadcast %cst_105 : f32 to vector<8x8xf32>
    %284 = arith.mulf %282, %283 : vector<8x8xf32>
    %cst_106 = arith.constant dense<0xFF800000> : vector<8xf32>
    %285 = vector.multi_reduction <maximumf>, %284, %cst_106 [1] : vector<8x8xf32> to vector<8xf32>
    %286 = vector.shape_cast %285 : vector<8xf32> to vector<8x1xf32>
    %287 = vector.broadcast %286 : vector<8x1xf32> to vector<8x8xf32>
    %288 = arith.subf %284, %287 : vector<8x8xf32>
    %289 = math.exp %288 : vector<8x8xf32>
    %cst_107 = arith.constant dense<0.000000e+00> : vector<8xf32>
    %290 = vector.multi_reduction <add>, %289, %cst_107 [1] : vector<8x8xf32> to vector<8xf32>
    %291 = vector.shape_cast %290 : vector<8xf32> to vector<8x1xf32>
    %292 = tpu.reciprocal %291 {approx = true} : vector<8x1xf32> -> vector<8x1xf32>
    %293 = vector.broadcast %292 : vector<8x1xf32> to vector<8x8xf32>
    %294 = arith.mulf %289, %293 : vector<8x8xf32>
    %295 = arith.truncf %294 : vector<8x8xf32> to vector<8x8xbf16>
    %296 = arith.truncf %279 : vector<8x128xf32> to vector<8x128xbf16>
    %cst_108 = arith.constant dense<0.000000e+00> : vector<8x128xf32>
    %297 = tpu.matmul %295, %296, %cst_108 {dimension_numbers = #tpu.dot_dimension_numbers<[1], [0], [0], [1], [0, 0, 1, 1], [], []>} : vector<8x8xbf16>, vector<8x128xbf16>, vector<8x128xf32> -> vector<8x128xf32>
    %298 = tpu.concatenate %276, %297 in 1 : vector<8x128xf32>, vector<8x128xf32> -> vector<8x256xf32>
    %299 = tpu.concatenate %255, %298 in 0 : vector<8x256xf32>, vector<8x256xf32> -> vector<16x256xf32>
    %c1_109 = arith.constant 1 : index
    %c0_110 = arith.constant 0 : index
    %c0_111 = arith.constant 0 : index
    %300 = vector.load %arg5[%c1_109, %c0_110, %c0_111] : memref<2x256x128xbf16, #tpu.memory_space<vmem>>, vector<1x256x128xbf16>
    %301 = vector.shape_cast %300 : vector<1x256x128xbf16> to vector<256x128xbf16>
    %302 = arith.truncf %299 : vector<16x256xf32> to vector<16x256xbf16>
    %cst_112 = arith.constant dense<0.000000e+00> : vector<16x128xf32>
    %303 = tpu.matmul %302, %301, %cst_112 {dimension_numbers = #tpu.dot_dimension_numbers<[1], [0], [0], [1], [0, 0, 1, 1], [], []>} : vector<16x256xbf16>, vector<256x128xbf16>, vector<16x128xf32> -> vector<16x128xf32>
    %c1_113 = arith.constant 1 : index
    %c0_114 = arith.constant 0 : index
    %c0_115 = arith.constant 0 : index
    %304 = vector.load %arg6[%c1_113, %c0_114, %c0_115] : memref<2x1x128xf32, #tpu.memory_space<vmem>>, vector<1x1x128xf32>
    %305 = vector.shape_cast %304 : vector<1x1x128xf32> to vector<1x128xf32>
    %306 = vector.broadcast %305 : vector<1x128xf32> to vector<16x128xf32>
    %307 = arith.addf %303, %306 : vector<16x128xf32>
    %308 = arith.addf %307, %204 : vector<16x128xf32>
    %c1_116 = arith.constant 1 : index
    %c0_117 = arith.constant 0 : index
    %c0_118 = arith.constant 0 : index
    %309 = vector.load %arg7[%c1_116, %c0_117, %c0_118] : memref<2x1x128xf32, #tpu.memory_space<vmem>>, vector<1x1x128xf32>
    %310 = vector.shape_cast %309 : vector<1x1x128xf32> to vector<1x128xf32>
    %c1_119 = arith.constant 1 : index
    %c0_120 = arith.constant 0 : index
    %c0_121 = arith.constant 0 : index
    %311 = vector.load %arg8[%c1_119, %c0_120, %c0_121] : memref<2x1x128xf32, #tpu.memory_space<vmem>>, vector<1x1x128xf32>
    %312 = vector.shape_cast %311 : vector<1x1x128xf32> to vector<1x128xf32>
    %cst_122 = arith.constant dense<0.000000e+00> : vector<16xf32>
    %313 = vector.multi_reduction <add>, %308, %cst_122 [1] : vector<16x128xf32> to vector<16xf32>
    %314 = vector.shape_cast %313 : vector<16xf32> to vector<16x1xf32>
    %cst_123 = arith.constant 1.280000e+02 : f32
    %315 = vector.broadcast %cst_123 : f32 to vector<16x1xf32>
    %316 = arith.divf %314, %315 : vector<16x1xf32>
    %317 = vector.broadcast %316 : vector<16x1xf32> to vector<16x128xf32>
    %318 = arith.subf %308, %317 : vector<16x128xf32>
    %319 = arith.mulf %318, %318 : vector<16x128xf32>
    %cst_124 = arith.constant dense<0.000000e+00> : vector<16xf32>
    %320 = vector.multi_reduction <add>, %319, %cst_124 [1] : vector<16x128xf32> to vector<16xf32>
    %321 = vector.shape_cast %320 : vector<16xf32> to vector<16x1xf32>
    %cst_125 = arith.constant 1.280000e+02 : f32
    %322 = vector.broadcast %cst_125 : f32 to vector<16x1xf32>
    %323 = arith.divf %321, %322 : vector<16x1xf32>
    %cst_126 = arith.constant 9.99999996E-13 : f32
    %324 = vector.broadcast %cst_126 : f32 to vector<16x1xf32>
    %325 = arith.addf %323, %324 : vector<16x1xf32>
    %326 = math.rsqrt %325 : vector<16x1xf32>
    %327 = vector.broadcast %326 : vector<16x1xf32> to vector<16x128xf32>
    %328 = arith.mulf %318, %327 : vector<16x128xf32>
    %329 = vector.broadcast %310 : vector<1x128xf32> to vector<16x128xf32>
    %330 = arith.mulf %328, %329 : vector<16x128xf32>
    %331 = vector.broadcast %312 : vector<1x128xf32> to vector<16x128xf32>
    %332 = arith.addf %330, %331 : vector<16x128xf32>
    %c1_127 = arith.constant 1 : index
    %c0_128 = arith.constant 0 : index
    %c0_129 = arith.constant 0 : index
    %333 = vector.load %arg9[%c1_127, %c0_128, %c0_129] : memref<2x128x512xbf16, #tpu.memory_space<vmem>>, vector<1x128x512xbf16>
    %334 = vector.shape_cast %333 : vector<1x128x512xbf16> to vector<128x512xbf16>
    %335 = arith.truncf %332 : vector<16x128xf32> to vector<16x128xbf16>
    %cst_130 = arith.constant dense<0.000000e+00> : vector<16x512xf32>
    %336 = tpu.matmul %335, %334, %cst_130 {dimension_numbers = #tpu.dot_dimension_numbers<[1], [0], [0], [1], [0, 0, 1, 1], [], []>} : vector<16x128xbf16>, vector<128x512xbf16>, vector<16x512xf32> -> vector<16x512xf32>
    %c1_131 = arith.constant 1 : index
    %c0_132 = arith.constant 0 : index
    %c0_133 = arith.constant 0 : index
    %337 = vector.load %arg10[%c1_131, %c0_132, %c0_133] : memref<2x1x512xf32, #tpu.memory_space<vmem>>, vector<1x1x512xf32>
    %338 = vector.shape_cast %337 : vector<1x1x512xf32> to vector<1x512xf32>
    %339 = vector.broadcast %338 : vector<1x512xf32> to vector<16x512xf32>
    %340 = arith.addf %336, %339 : vector<16x512xf32>
    %341 = arith.mulf %340, %340 : vector<16x512xf32>
    %342 = arith.mulf %340, %341 : vector<16x512xf32>
    %cst_134 = arith.constant 4.471500e-02 : f32
    %343 = vector.broadcast %cst_134 : f32 to vector<16x512xf32>
    %344 = arith.mulf %343, %342 : vector<16x512xf32>
    %345 = arith.addf %340, %344 : vector<16x512xf32>
    %cst_135 = arith.constant 0.797884583 : f32
    %346 = vector.broadcast %cst_135 : f32 to vector<16x512xf32>
    %347 = arith.mulf %346, %345 : vector<16x512xf32>
    %348 = math.tanh %347 : vector<16x512xf32>
    %cst_136 = arith.constant 1.000000e+00 : f32
    %349 = vector.broadcast %cst_136 : f32 to vector<16x512xf32>
    %350 = arith.addf %349, %348 : vector<16x512xf32>
    %cst_137 = arith.constant 5.000000e-01 : f32
    %351 = vector.broadcast %cst_137 : f32 to vector<16x512xf32>
    %352 = arith.mulf %351, %350 : vector<16x512xf32>
    %353 = arith.mulf %340, %352 : vector<16x512xf32>
    %c1_138 = arith.constant 1 : index
    %c0_139 = arith.constant 0 : index
    %c0_140 = arith.constant 0 : index
    %354 = vector.load %arg11[%c1_138, %c0_139, %c0_140] : memref<2x512x128xbf16, #tpu.memory_space<vmem>>, vector<1x512x128xbf16>
    %355 = vector.shape_cast %354 : vector<1x512x128xbf16> to vector<512x128xbf16>
    %356 = arith.truncf %353 : vector<16x512xf32> to vector<16x512xbf16>
    %cst_141 = arith.constant dense<0.000000e+00> : vector<16x128xf32>
    %357 = tpu.matmul %356, %355, %cst_141 {dimension_numbers = #tpu.dot_dimension_numbers<[1], [0], [0], [1], [0, 0, 1, 1], [], []>} : vector<16x512xbf16>, vector<512x128xbf16>, vector<16x128xf32> -> vector<16x128xf32>
    %c1_142 = arith.constant 1 : index
    %c0_143 = arith.constant 0 : index
    %c0_144 = arith.constant 0 : index
    %358 = vector.load %arg12[%c1_142, %c0_143, %c0_144] : memref<2x1x128xf32, #tpu.memory_space<vmem>>, vector<1x1x128xf32>
    %359 = vector.shape_cast %358 : vector<1x1x128xf32> to vector<1x128xf32>
    %360 = vector.broadcast %359 : vector<1x128xf32> to vector<16x128xf32>
    %361 = arith.addf %357, %360 : vector<16x128xf32>
    %362 = arith.addf %361, %332 : vector<16x128xf32>
    %c1_145 = arith.constant 1 : index
    %c0_146 = arith.constant 0 : index
    %c0_147 = arith.constant 0 : index
    %363 = vector.load %arg13[%c1_145, %c0_146, %c0_147] : memref<2x1x128xf32, #tpu.memory_space<vmem>>, vector<1x1x128xf32>
    %364 = vector.shape_cast %363 : vector<1x1x128xf32> to vector<1x128xf32>
    %c1_148 = arith.constant 1 : index
    %c0_149 = arith.constant 0 : index
    %c0_150 = arith.constant 0 : index
    %365 = vector.load %arg14[%c1_148, %c0_149, %c0_150] : memref<2x1x128xf32, #tpu.memory_space<vmem>>, vector<1x1x128xf32>
    %366 = vector.shape_cast %365 : vector<1x1x128xf32> to vector<1x128xf32>
    %cst_151 = arith.constant dense<0.000000e+00> : vector<16xf32>
    %367 = vector.multi_reduction <add>, %362, %cst_151 [1] : vector<16x128xf32> to vector<16xf32>
    %368 = vector.shape_cast %367 : vector<16xf32> to vector<16x1xf32>
    %cst_152 = arith.constant 1.280000e+02 : f32
    %369 = vector.broadcast %cst_152 : f32 to vector<16x1xf32>
    %370 = arith.divf %368, %369 : vector<16x1xf32>
    %371 = vector.broadcast %370 : vector<16x1xf32> to vector<16x128xf32>
    %372 = arith.subf %362, %371 : vector<16x128xf32>
    %373 = arith.mulf %372, %372 : vector<16x128xf32>
    %cst_153 = arith.constant dense<0.000000e+00> : vector<16xf32>
    %374 = vector.multi_reduction <add>, %373, %cst_153 [1] : vector<16x128xf32> to vector<16xf32>
    %375 = vector.shape_cast %374 : vector<16xf32> to vector<16x1xf32>
    %cst_154 = arith.constant 1.280000e+02 : f32
    %376 = vector.broadcast %cst_154 : f32 to vector<16x1xf32>
    %377 = arith.divf %375, %376 : vector<16x1xf32>
    %cst_155 = arith.constant 9.99999996E-13 : f32
    %378 = vector.broadcast %cst_155 : f32 to vector<16x1xf32>
    %379 = arith.addf %377, %378 : vector<16x1xf32>
    %380 = math.rsqrt %379 : vector<16x1xf32>
    %381 = vector.broadcast %380 : vector<16x1xf32> to vector<16x128xf32>
    %382 = arith.mulf %372, %381 : vector<16x128xf32>
    %383 = vector.broadcast %364 : vector<1x128xf32> to vector<16x128xf32>
    %384 = arith.mulf %382, %383 : vector<16x128xf32>
    %385 = vector.broadcast %366 : vector<1x128xf32> to vector<16x128xf32>
    %386 = arith.addf %384, %385 : vector<16x128xf32>
    %c0_156 = arith.constant 0 : index
    %c0_157 = arith.constant 0 : index
    %387 = vector.load %arg15[%c0_156, %c0_157] : memref<128x128xbf16, #tpu.memory_space<vmem>>, vector<128x128xbf16>
    %388 = arith.truncf %386 : vector<16x128xf32> to vector<16x128xbf16>
    %cst_158 = arith.constant dense<0.000000e+00> : vector<16x128xf32>
    %389 = tpu.matmul %388, %387, %cst_158 {dimension_numbers = #tpu.dot_dimension_numbers<[1], [0], [0], [1], [0, 0, 1, 1], [], []>} : vector<16x128xbf16>, vector<128x128xbf16>, vector<16x128xf32> -> vector<16x128xf32>
    %c0_159 = arith.constant 0 : index
    %c0_160 = arith.constant 0 : index
    %390 = vector.load %arg16[%c0_159, %c0_160] : memref<1x128xf32, #tpu.memory_space<vmem>>, vector<1x128xf32>
    %391 = vector.broadcast %390 : vector<1x128xf32> to vector<16x128xf32>
    %392 = arith.addf %389, %391 : vector<16x128xf32>
    %393 = math.tanh %392 : vector<16x128xf32>
    %c0_161 = arith.constant 0 : index
    %c0_162 = arith.constant 0 : index
    %394 = vector.load %arg17[%c0_161, %c0_162] : memref<128x128xbf16, #tpu.memory_space<vmem>>, vector<128x128xbf16>
    %395 = arith.truncf %393 : vector<16x128xf32> to vector<16x128xbf16>
    %cst_163 = arith.constant dense<0.000000e+00> : vector<16x128xf32>
    %396 = tpu.matmul %395, %394, %cst_163 {dimension_numbers = #tpu.dot_dimension_numbers<[1], [0], [0], [1], [0, 0, 1, 1], [], []>} : vector<16x128xbf16>, vector<128x128xbf16>, vector<16x128xf32> -> vector<16x128xf32>
    %c0_164 = arith.constant 0 : index
    %c0_165 = arith.constant 0 : index
    %397 = vector.load %arg18[%c0_164, %c0_165] : memref<1x128xf32, #tpu.memory_space<vmem>>, vector<1x128xf32>
    %398 = vector.broadcast %397 : vector<1x128xf32> to vector<16x128xf32>
    %399 = arith.addf %396, %398 : vector<16x128xf32>
    %c0_166 = arith.constant 0 : index
    %c0_167 = arith.constant 0 : index
    %400 = vector.load %arg19[%c0_166, %c0_167] : memref<16x128xf32, #tpu.memory_space<vmem>>, vector<16x128xf32>
    tpu.vector_store %arg19[%c0_166, %c0_167], %399 {strides = array<i32>} : memref<16x128xf32, #tpu.memory_space<vmem>>, vector<16x128xf32>,
    return
  }
}

</mosaic_0001>

<llo_original>
// kernel: nntest_forward.1
$region0: #{nntest_forward.1}
  #allocation0 [shape = 'u32[]', space=smem, size = 0x4, offset = 0x4, fixed_abs, tag = 'smem constant byte address 0x4 - core index']
  #allocation1 [shape = 'u32[144,128]{1,0:T(1,128)}', space=vmem, size = 0x12000, scoped, tag = 'internal scratch']
  %s0 = inlined_call_operand.vmem [shape: f32[16,128], index: 0, kind: input, shape index: {}]
  %s1 = inlined_call_operand.vmem [shape: f32[1,128], index: 1, kind: input, shape index: {}]
  %s2 = inlined_call_operand.vmem [shape: f32[1,128], index: 2, kind: input, shape index: {}]
  %s3 = inlined_call_operand.hbm [shape: bf16[2,128,768], index: 3, kind: input, shape index: {}]
  %s4 = inlined_call_operand.vmem [shape: f32[2,1,768], index: 4, kind: input, shape index: {}]
  %s5 = inlined_call_operand.hbm [shape: bf16[2,256,128], index: 5, kind: input, shape index: {}]
  %s6 = inlined_call_operand.vmem [shape: f32[2,1,128], index: 6, kind: input, shape index: {}]
  %s7 = inlined_call_operand.vmem [shape: f32[2,1,128], index: 7, kind: input, shape index: {}]
  %s8 = inlined_call_operand.vmem [shape: f32[2,1,128], index: 8, kind: input, shape index: {}]
  %s9 = inlined_call_operand.hbm [shape: bf16[2,128,512], index: 9, kind: input, shape index: {}]
  %s10 = inlined_call_operand.vmem [shape: f32[2,1,512], index: 10, kind: input, shape index: {}]
  %s11 = inlined_call_operand.hbm [shape: bf16[2,512,128], index: 11, kind: input, shape index: {}]
  %s12 = inlined_call_operand.vmem [shape: f32[2,1,128], index: 12, kind: input, shape index: {}]
  %s13 = inlined_call_operand.vmem [shape: f32[2,1,128], index: 13, kind: input, shape index: {}]
  %s14 = inlined_call_operand.vmem [shape: f32[2,1,128], index: 14, kind: input, shape index: {}]
  %s15 = inlined_call_operand.vmem [shape: bf16[128,128], index: 15, kind: input, shape index: {}]
  %s16 = inlined_call_operand.vmem [shape: f32[1,128], index: 16, kind: input, shape index: {}]
  %s17 = inlined_call_operand.vmem [shape: bf16[128,128], index: 17, kind: input, shape index: {}]
  %s18 = inlined_call_operand.vmem [shape: f32[1,128], index: 18, kind: input, shape index: {}]
  %s19 = inlined_call_operand.vmem [shape: f32[16,128], index: 19, kind: output, shape index: {}]
  %s20 = sld [smem:[#allocation0]]
  $region102: #{nntest_forward.1} parent=0
    _
  %s22 = ssub.s32 1, %s20
  %s23 = scalar_select 0, %s22, %s20
  $region1: #{nntest_forward.1} parent=0
    #allocation2 [shape = 'u8[393216]{0}', space=vmem, size = 0x60000, scoped, tag = 'input window, operand 3, single buffered']
    #allocation3 [shape = 's32[1]{0}', space=sflag, size = 0x4, scoped, tag = 'scoped memory for nntest_forward.1']
    #allocation4 [shape = 'u8[131072]{0}', space=vmem, size = 0x20000, scoped, tag = 'input window, operand 5, single buffered']
    #allocation5 [shape = 's32[1]{0}', space=sflag, size = 0x4, scoped, tag = 'scoped memory for nntest_forward.1']
    #allocation6 [shape = 'u8[262144]{0}', space=vmem, size = 0x40000, scoped, tag = 'input window, operand 9, single buffered']
    #allocation7 [shape = 'u8[262144]{0}', space=vmem, size = 0x40000, scoped, tag = 'input window, operand 11, single buffered']
    #allocation8 [shape = 's32[1]{0}', space=sflag, size = 0x4, scoped, tag = 'scoped memory for nntest_forward.1']
    %24 = vsyncpa [#allocation3], 0
    %25 = vsyncpa [#allocation5], 0
    %26 = vsyncpa [#allocation8], 0
    // Predicated region
    $region2: #{nntest_forward.1} parent=1 // pred_check
      _
    $region3: #{nntest_forward.1} parent=1 // pred_check_branch
      %28 = sbr.rel (0) target = $region5
    $region4: #{nntest_forward.1} parent=1 // pred_region
      _
    $region5: #{nntest_forward.1} parent=1 // pred_fallthru
      _
    // Predicated region
    $region6: #{nntest_forward.1} parent=1 // pred_check
      _
    $region7: #{nntest_forward.1} parent=1 // pred_check_branch
      %30 = sbr.rel (0) target = $region9
    $region8: #{nntest_forward.1} parent=1 // pred_region
      _
    $region9: #{nntest_forward.1} parent=1 // pred_fallthru
      _
    // Predicated region
    $region10: #{nntest_forward.1} parent=1 // pred_check
      _
    $region11: #{nntest_forward.1} parent=1 // pred_check_branch
      %32 = sbr.rel (0) target = $region13
    $region12: #{nntest_forward.1} parent=1 // pred_region
      _
    $region13: #{nntest_forward.1} parent=1 // pred_fallthru
      _
    // Predicated region
    $region14: #{nntest_forward.1} parent=1 // pred_check
      _
    $region15: #{nntest_forward.1} parent=1 // pred_check_branch
      %34 = sbr.rel (0) target = $region17
    $region16: #{nntest_forward.1} parent=1 // pred_region
      %s36 = ssub.s32 12288, 12288
      %37 = vsyncadd [#allocation3], %s36
      %s38 = sshll.u32 [#allocation2], 4
      %s39 = int_to_ptr.vmem [resolvable:$true] %s38
      %44 = dma.hbm_to_vmem [thread:$0]  %s3, 12288, %s39, [#allocation3], 384, 384, 24
    $region17: #{nntest_forward.1} parent=1 // pred_fallthru
      _
    // Predicated region
    $region18: #{nntest_forward.1} parent=1 // pred_check
      _
    $region19: #{nntest_forward.1} parent=1 // pred_check_branch
      %46 = sbr.rel (0) target = $region21
    $region20: #{nntest_forward.1} parent=1 // pred_region
      _
    $region21: #{nntest_forward.1} parent=1 // pred_fallthru
      _
    // Predicated region
    $region22: #{nntest_forward.1} parent=1 // pred_check
      _
    $region23: #{nntest_forward.1} parent=1 // pred_check_branch
      %48 = sbr.rel (0) target = $region25
    $region24: #{nntest_forward.1} parent=1 // pred_region
      %s50 = ssub.s32 4096, 4096
      %51 = vsyncadd [#allocation5], %s50
      %s52 = sshll.u32 [#allocation4], 4
      %s53 = int_to_ptr.vmem [resolvable:$true] %s52
      %58 = dma.hbm_to_vmem [thread:$0]  %s5, 4096, %s53, [#allocation5], 64, 64, 4
    $region25: #{nntest_forward.1} parent=1 // pred_fallthru
      _
    // Predicated region
    $region26: #{nntest_forward.1} parent=1 // pred_check
      _
    $region27: #{nntest_forward.1} parent=1 // pred_check_branch
      %60 = sbr.rel (0) target = $region29
    $region28: #{nntest_forward.1} parent=1 // pred_region
      _
    $region29: #{nntest_forward.1} parent=1 // pred_fallthru
      _
    // Predicated region
    $region30: #{nntest_forward.1} parent=1 // pred_check
      _
    $region31: #{nntest_forward.1} parent=1 // pred_check_branch
      %62 = sbr.rel (0) target = $region33
    $region32: #{nntest_forward.1} parent=1 // pred_region
      _
    $region33: #{nntest_forward.1} parent=1 // pred_fallthru
      _
    // Predicated region
    $region34: #{nntest_forward.1} parent=1 // pred_check
      _
    $region35: #{nntest_forward.1} parent=1 // pred_check_branch
      %64 = sbr.rel (0) target = $region37
    $region36: #{nntest_forward.1} parent=1 // pred_region
      _
    $region37: #{nntest_forward.1} parent=1 // pred_fallthru
      _
    // Predicated region
    $region38: #{nntest_forward.1} parent=1 // pred_check
      _
    $region39: #{nntest_forward.1} parent=1 // pred_check_branch
      %66 = sbr.rel (0) target = $region41
    $region40: #{nntest_forward.1} parent=1 // pred_region
      %s68 = ssub.s32 8192, 8192
      %69 = vsyncadd [#allocation5], %s68
      %s70 = sshll.u32 [#allocation6], 4
      %s71 = int_to_ptr.vmem [resolvable:$true] %s70
      %76 = dma.hbm_to_vmem [thread:$0]  %s9, 8192, %s71, [#allocation5], 256, 256, 16
    $region41: #{nntest_forward.1} parent=1 // pred_fallthru
      _
    // Predicated region
    $region42: #{nntest_forward.1} parent=1 // pred_check
      _
    $region43: #{nntest_forward.1} parent=1 // pred_check_branch
      %78 = sbr.rel (0) target = $region45
    $region44: #{nntest_forward.1} parent=1 // pred_region
      _
    $region45: #{nntest_forward.1} parent=1 // pred_fallthru
      _
    // Predicated region
    $region46: #{nntest_forward.1} parent=1 // pred_check
      _
    $region47: #{nntest_forward.1} parent=1 // pred_check_branch
      %80 = sbr.rel (0) target = $region49
    $region48: #{nntest_forward.1} parent=1 // pred_region
      %s82 = ssub.s32 8192, 8192
      %83 = vsyncadd [#allocation8], %s82
      %s84 = sshll.u32 [#allocation7], 4
      %s85 = int_to_ptr.vmem [resolvable:$true] %s84
      %90 = dma.hbm_to_vmem [thread:$0]  %s11, 8192, %s85, [#allocation8], 64, 64, 4
    $region49: #{nntest_forward.1} parent=1 // pred_fallthru
      _
    // Predicated region
    $region50: #{nntest_forward.1} parent=1 // pred_check
      _
    $region51: #{nntest_forward.1} parent=1 // pred_check_branch
      %92 = sbr.rel (0) target = $region53
    $region52: #{nntest_forward.1} parent=1 // pred_region
      _
    $region53: #{nntest_forward.1} parent=1 // pred_fallthru
      _
    // Predicated region
    $region54: #{nntest_forward.1} parent=1 // pred_check
      _
    $region55: #{nntest_forward.1} parent=1 // pred_check_branch
      %94 = sbr.rel (0) target = $region57
    $region56: #{nntest_forward.1} parent=1 // pred_region
      _
    $region57: #{nntest_forward.1} parent=1 // pred_fallthru
      _
    // Predicated region
    $region58: #{nntest_forward.1} parent=1 // pred_check
      _
    $region59: #{nntest_forward.1} parent=1 // pred_check_branch
      %96 = sbr.rel (0) target = $region61
    $region60: #{nntest_forward.1} parent=1 // pred_region
      _
    $region61: #{nntest_forward.1} parent=1 // pred_fallthru
      _
    // Predicated region
    $region62: #{nntest_forward.1} parent=1 // pred_check
      _
    $region63: #{nntest_forward.1} parent=1 // pred_check_branch
      %98 = sbr.rel (0) target = $region65
    $region64: #{nntest_forward.1} parent=1 // pred_region
      _
    $region65: #{nntest_forward.1} parent=1 // pred_fallthru
      _
    // Predicated region
    $region66: #{nntest_forward.1} parent=1 // pred_check
      _
    $region67: #{nntest_forward.1} parent=1 // pred_check_branch
      %100 = sbr.rel (0) target = $region69
    $region68: #{nntest_forward.1} parent=1 // pred_region
      _
    $region69: #{nntest_forward.1} parent=1 // pred_fallthru
      _
    // Predicated region
    $region70: #{nntest_forward.1} parent=1 // pred_check
      _
    $region71: #{nntest_forward.1} parent=1 // pred_check_branch
      %102 = sbr.rel (0) target = $region73
    $region72: #{nntest_forward.1} parent=1 // pred_region
      _
    $region73: #{nntest_forward.1} parent=1 // pred_fallthru
      _
    // Predicated region
    $region74: #{nntest_forward.1} parent=1 // pred_check
      _
    $region75: #{nntest_forward.1} parent=1 // pred_check_branch
      %104 = sbr.rel (0) target = $region77
    $region76: #{nntest_forward.1} parent=1 // pred_region
      _
    $region77: #{nntest_forward.1} parent=1 // pred_fallthru
      _
    // Predicated region
    $region78: #{nntest_forward.1} parent=1 // pred_check
      _
    $region79: #{nntest_forward.1} parent=1 // pred_check_branch
      %106 = sbr.rel (0) target = $region81
    $region80: #{nntest_forward.1} parent=1 // pred_region
      %107 = dma.done [#allocation3], 12288
    $region81: #{nntest_forward.1} parent=1 // pred_fallthru
      _
    // Predicated region
    $region82: #{nntest_forward.1} parent=1 // pred_check
      _
    $region83: #{nntest_forward.1} parent=1 // pred_check_branch
      %109 = sbr.rel (0) target = $region85
    $region84: #{nntest_forward.1} parent=1 // pred_region
      %110 = dma.done [#allocation5], 4096
    $region85: #{nntest_forward.1} parent=1 // pred_fallthru
      _
    // Predicated region
    $region86: #{nntest_forward.1} parent=1 // pred_check
      _
    $region87: #{nntest_forward.1} parent=1 // pred_check_branch
      %112 = sbr.rel (0) target = $region89
    $region88: #{nntest_forward.1} parent=1 // pred_region
      %113 = dma.done [#allocation5], 8192
    $region89: #{nntest_forward.1} parent=1 // pred_fallthru
      _
    // Predicated region
    $region90: #{nntest_forward.1} parent=1 // pred_check
      _
    $region91: #{nntest_forward.1} parent=1 // pred_check_branch
      %115 = sbr.rel (0) target = $region93
    $region92: #{nntest_forward.1} parent=1 // pred_region
      %116 = dma.done [#allocation8], 8192
    $region93: #{nntest_forward.1} parent=1 // pred_fallthru
      _
    %v118 = vld [vmem:[%s0] sm:$0xff]
    %v119 = vld [vmem:[%s0 + $0x8] sm:$0xff]
    %v120 = vld [vmem:[%s1] sm:$0x1]
    %v121 = vld [vmem:[%s2] sm:$0x1]
    %122 = vadd.xlane.f32.xlu0 %v118
    %v123 = vpop.xlane.xlu0 %122
    %124 = vadd.xlane.f32.xlu0 %v119
    %v125 = vpop.xlane.xlu0 %124
    %v126 = vrcp.pop 128.0
    %v127 = vmul.f32 %v123, %v126
    %v128 = vmul.f32 %v125, %v126
    %v129 = vsub.f32 %v118, %v127
    %v130 = vsub.f32 %v119, %v128
    %v131 = vmul.f32 %v129, %v129
    %v132 = vmul.f32 %v130, %v130
    %133 = vadd.xlane.f32.xlu0 %v131
    %v134 = vpop.xlane.xlu0 %133
    %135 = vadd.xlane.f32.xlu0 %v132
    %v136 = vpop.xlane.xlu0 %135
    %v137 = vmul.f32 %v134, %v126
    %v138 = vmul.f32 %v136, %v126
    %v139 = vadd.f32 %v137, 1e-12
    %v140 = vadd.f32 %v138, 1e-12
    %v141 = vrsqrt.pop %v139
    %v142 = vrsqrt.pop %v140
    %v143 = vmul.f32 %v129, %v141
    %v144 = vmul.f32 %v130, %v142
    %v146 = vlaneseq
    %v147 = vshrl.u32 %v146, 7
    %v148 = vsub.s32 0, %v147
    %v149 = vrot.slane %v120, %v148
    %v151 = vmul.f32 %v143, %v149
    %v152 = vmul.f32 %v144, %v149
    %v154 = vlaneseq
    %v155 = vshrl.u32 %v154, 7
    %v156 = vsub.s32 0, %v155
    %v157 = vrot.slane %v121, %v156
    %v159 = vadd.f32 %v151, %v157
    %v160 = vadd.f32 %v152, %v157
    %v161 = vld [vmem:[#allocation2] sm:$0xff]
    %v162 = vld [vmem:[#allocation2 + $0x8] sm:$0xff]
    %v163 = vld [vmem:[#allocation2 + $0x10] sm:$0xff]
    %v164 = vld [vmem:[#allocation2 + $0x18] sm:$0xff]
    %v165 = vld [vmem:[#allocation2 + $0x20] sm:$0xff]
    %v166 = vld [vmem:[#allocation2 + $0x28] sm:$0xff]
    %v167 = vld [vmem:[#allocation2 + $0x30] sm:$0xff]
    %v168 = vld [vmem:[#allocation2 + $0x38] sm:$0xff]
    %v169 = vld [vmem:[#allocation2 + $0x40] sm:$0xff]
    %v170 = vld [vmem:[#allocation2 + $0x48] sm:$0xff]
    %v171 = vld [vmem:[#allocation2 + $0x50] sm:$0xff]
    %v172 = vld [vmem:[#allocation2 + $0x58] sm:$0xff]
    %v173 = vld [vmem:[#allocation2 + $0x60] sm:$0xff]
    %v174 = vld [vmem:[#allocation2 + $0x68] sm:$0xff]
    %v175 = vld [vmem:[#allocation2 + $0x70] sm:$0xff]
    %v176 = vld [vmem:[#allocation2 + $0x78] sm:$0xff]
    %v177 = vld [vmem:[#allocation2 + $0x80] sm:$0xff]
    %v178 = vld [vmem:[#allocation2 + $0x88] sm:$0xff]
    %v179 = vld [vmem:[#allocation2 + $0x90] sm:$0xff]
    %v180 = vld [vmem:[#allocation2 + $0x98] sm:$0xff]
    %v181 = vld [vmem:[#allocation2 + $0xa0] sm:$0xff]
    %v182 = vld [vmem:[#allocation2 + $0xa8] sm:$0xff]
    %v183 = vld [vmem:[#allocation2 + $0xb0] sm:$0xff]
    %v184 = vld [vmem:[#allocation2 + $0xb8] sm:$0xff]
    %v185 = vld [vmem:[#allocation2 + $0xc0] sm:$0xff]
    %v186 = vld [vmem:[#allocation2 + $0xc8] sm:$0xff]
    %v187 = vld [vmem:[#allocation2 + $0xd0] sm:$0xff]
    %v188 = vld [vmem:[#allocation2 + $0xd8] sm:$0xff]
    %v189 = vld [vmem:[#allocation2 + $0xe0] sm:$0xff]
    %v190 = vld [vmem:[#allocation2 + $0xe8] sm:$0xff]
    %v191 = vld [vmem:[#allocation2 + $0xf0] sm:$0xff]
    %v192 = vld [vmem:[#allocation2 + $0xf8] sm:$0xff]
    %v193 = vld [vmem:[#allocation2 + $0x100] sm:$0xff]
    %v194 = vld [vmem:[#allocation2 + $0x108] sm:$0xff]
    %v195 = vld [vmem:[#allocation2 + $0x110] sm:$0xff]
    %v196 = vld [vmem:[#allocation2 + $0x118] sm:$0xff]
    %v197 = vld [vmem:[#allocation2 + $0x120] sm:$0xff]
    %v198 = vld [vmem:[#allocation2 + $0x128] sm:$0xff]
    %v199 = vld [vmem:[#allocation2 + $0x130] sm:$0xff]
    %v200 = vld [vmem:[#allocation2 + $0x138] sm:$0xff]
    %v201 = vld [vmem:[#allocation2 + $0x140] sm:$0xff]
    %v202 = vld [vmem:[#allocation2 + $0x148] sm:$0xff]
    %v203 = vld [vmem:[#allocation2 + $0x150] sm:$0xff]
    %v204 = vld [vmem:[#allocation2 + $0x158] sm:$0xff]
    %v205 = vld [vmem:[#allocation2 + $0x160] sm:$0xff]
    %v206 = vld [vmem:[#allocation2 + $0x168] sm:$0xff]
    %v207 = vld [vmem:[#allocation2 + $0x170] sm:$0xff]
    %v208 = vld [vmem:[#allocation2 + $0x178] sm:$0xff]
    %v209 = vpack.c.bf16 %v160, %v159
    %v210 = vld [vmem:[%s4] sm:$0x3f]
    %v212 = vlaneseq
    %v213 = vshrl.u32 %v212, 7
    %v214 = vsub.s32 0, %v213
    %v215 = vrot.slane %v210, %v214
    %v216 = vlaneseq
    %v217 = vshrl.u32 %v216, 7
    %v218 = vsub.s32 1, %v217
    %v219 = vrot.slane %v210, %v218
    %v220 = vlaneseq
    %v221 = vshrl.u32 %v220, 7
    %v222 = vsub.s32 2, %v221
    %v223 = vrot.slane %v210, %v222
    %v224 = vlaneseq
    %v225 = vshrl.u32 %v224, 7
    %v226 = vsub.s32 3, %v225
    %v227 = vrot.slane %v210, %v226
    %v228 = vlaneseq
    %v229 = vshrl.u32 %v228, 7
    %v230 = vsub.s32 4, %v229
    %v231 = vrot.slane %v210, %v230
    %v232 = vlaneseq
    %v233 = vshrl.u32 %v232, 7
    %v234 = vsub.s32 5, %v233
    %v235 = vrot.slane %v210, %v234
    %v290 = vunpack.c.l.b16 %v161
    %v291 = vunpack.c.h.b16 %v161
    %v292 = vunpack.c.l.b16 %v162
    %v293 = vunpack.c.h.b16 %v162
    %v294 = vunpack.c.l.b16 %v163
    %v295 = vunpack.c.h.b16 %v163
    %v296 = vunpack.c.l.b16 %v164
    %v297 = vunpack.c.h.b16 %v164
    %v298 = vunpack.c.l.b16 %v165
    %v299 = vunpack.c.h.b16 %v165
    %v300 = vunpack.c.l.b16 %v166
    %v301 = vunpack.c.h.b16 %v166
    %v302 = vunpack.c.l.b16 %v167
    %v303 = vunpack.c.h.b16 %v167
    %v304 = vunpack.c.l.b16 %v168
    %v305 = vunpack.c.h.b16 %v168
    %v306 = vunpack.c.l.b16 %v169
    %v307 = vunpack.c.h.b16 %v169
    %v308 = vunpack.c.l.b16 %v170
    %v309 = vunpack.c.h.b16 %v170
    %v310 = vunpack.c.l.b16 %v171
    %v311 = vunpack.c.h.b16 %v171
    %v312 = vunpack.c.l.b16 %v172
    %v313 = vunpack.c.h.b16 %v172
    %v314 = vunpack.c.l.b16 %v173
    %v315 = vunpack.c.h.b16 %v173
    %v316 = vunpack.c.l.b16 %v174
    %v317 = vunpack.c.h.b16 %v174
    %v318 = vunpack.c.l.b16 %v175
    %v319 = vunpack.c.h.b16 %v175
    %v320 = vunpack.c.l.b16 %v176
    %v321 = vunpack.c.h.b16 %v176
    %v322 = vunpack.c.l.b16 %v177
    %v323 = vunpack.c.h.b16 %v177
    %v324 = vunpack.c.l.b16 %v178
    %v325 = vunpack.c.h.b16 %v178
    %v326 = vunpack.c.l.b16 %v179
    %v327 = vunpack.c.h.b16 %v179
    %v328 = vunpack.c.l.b16 %v180
    %v329 = vunpack.c.h.b16 %v180
    %v330 = vunpack.c.l.b16 %v181
    %v331 = vunpack.c.h.b16 %v181
    %v332 = vunpack.c.l.b16 %v182
    %v333 = vunpack.c.h.b16 %v182
    %v334 = vunpack.c.l.b16 %v183
    %v335 = vunpack.c.h.b16 %v183
    %v336 = vunpack.c.l.b16 %v184
    %v337 = vunpack.c.h.b16 %v184
    %v338 = vunpack.c.l.b16 %v185
    %v339 = vunpack.c.h.b16 %v185
    %v340 = vunpack.c.l.b16 %v186
    %v341 = vunpack.c.h.b16 %v186
    %v342 = vunpack.c.l.b16 %v187
    %v343 = vunpack.c.h.b16 %v187
    %v344 = vunpack.c.l.b16 %v188
    %v345 = vunpack.c.h.b16 %v188
    %v346 = vunpack.c.l.b16 %v189
    %v347 = vunpack.c.h.b16 %v189
    %v348 = vunpack.c.l.b16 %v190
    %v349 = vunpack.c.h.b16 %v190
    %v350 = vunpack.c.l.b16 %v191
    %v351 = vunpack.c.h.b16 %v191
    %v352 = vunpack.c.l.b16 %v192
    %v353 = vunpack.c.h.b16 %v192
    %v354 = vunpack.c.l.b16 %v193
    %v355 = vunpack.c.h.b16 %v193
    %v356 = vunpack.c.l.b16 %v194
    %v357 = vunpack.c.h.b16 %v194
    %v358 = vunpack.c.l.b16 %v195
    %v359 = vunpack.c.h.b16 %v195
    %v360 = vunpack.c.l.b16 %v196
    %v361 = vunpack.c.h.b16 %v196
    %v362 = vunpack.c.l.b16 %v197
    %v363 = vunpack.c.h.b16 %v197
    %v364 = vunpack.c.l.b16 %v198
    %v365 = vunpack.c.h.b16 %v198
    %v366 = vunpack.c.l.b16 %v199
    %v367 = vunpack.c.h.b16 %v199
    %v368 = vunpack.c.l.b16 %v200
    %v369 = vunpack.c.h.b16 %v200
    %v370 = vunpack.c.l.b16 %v201
    %v371 = vunpack.c.h.b16 %v201
    %v372 = vunpack.c.l.b16 %v202
    %v373 = vunpack.c.h.b16 %v202
    %v374 = vunpack.c.l.b16 %v203
    %v375 = vunpack.c.h.b16 %v203
    %v376 = vunpack.c.l.b16 %v204
    %v377 = vunpack.c.h.b16 %v204
    %v378 = vunpack.c.l.b16 %v205
    %v379 = vunpack.c.h.b16 %v205
    %v380 = vunpack.c.l.b16 %v206
    %v381 = vunpack.c.h.b16 %v206
    %v382 = vunpack.c.l.b16 %v207
    %v383 = vunpack.c.h.b16 %v207
    %v384 = vunpack.c.l.b16 %v208
    %v385 = vunpack.c.h.b16 %v208
    %v386 = vpack.c.b16 %v296, %v290
    %v387 = vpack.c.b16 %v297, %v291
    %v388 = vpack.c.b16 %v298, %v292
    %v389 = vpack.c.b16 %v299, %v293
    %v390 = vpack.c.b16 %v300, %v294
    %v391 = vpack.c.b16 %v301, %v295
    %v392 = vpack.c.b16 %v308, %v302
    %v393 = vpack.c.b16 %v309, %v303
    %v394 = vpack.c.b16 %v310, %v304
    %v395 = vpack.c.b16 %v311, %v305
    %v396 = vpack.c.b16 %v312, %v306
    %v397 = vpack.c.b16 %v313, %v307
    %v398 = vpack.c.b16 %v320, %v314
    %v399 = vpack.c.b16 %v321, %v315
    %v400 = vpack.c.b16 %v322, %v316
    %v401 = vpack.c.b16 %v323, %v317
    %v402 = vpack.c.b16 %v324, %v318
    %v403 = vpack.c.b16 %v325, %v319
    %v404 = vpack.c.b16 %v332, %v326
    %v405 = vpack.c.b16 %v333, %v327
    %v406 = vpack.c.b16 %v334, %v328
    %v407 = vpack.c.b16 %v335, %v329
    %v408 = vpack.c.b16 %v336, %v330
    %v409 = vpack.c.b16 %v337, %v331
    %v410 = vpack.c.b16 %v344, %v338
    %v411 = vpack.c.b16 %v345, %v339
    %v412 = vpack.c.b16 %v346, %v340
    %v413 = vpack.c.b16 %v347, %v341
    %v414 = vpack.c.b16 %v348, %v342
    %v415 = vpack.c.b16 %v349, %v343
    %v416 = vpack.c.b16 %v356, %v350
    %v417 = vpack.c.b16 %v357, %v351
    %v418 = vpack.c.b16 %v358, %v352
    %v419 = vpack.c.b16 %v359, %v353
    %v420 = vpack.c.b16 %v360, %v354
    %v421 = vpack.c.b16 %v361, %v355
    %v422 = vpack.c.b16 %v368, %v362
    %v423 = vpack.c.b16 %v369, %v363
    %v424 = vpack.c.b16 %v370, %v364
    %v425 = vpack.c.b16 %v371, %v365
    %v426 = vpack.c.b16 %v372, %v366
    %v427 = vpack.c.b16 %v373, %v367
    %v428 = vpack.c.b16 %v380, %v374
    %v429 = vpack.c.b16 %v381, %v375
    %v430 = vpack.c.b16 %v382, %v376
    %v431 = vpack.c.b16 %v383, %v377
    %v432 = vpack.c.b16 %v384, %v378
    %v433 = vpack.c.b16 %v385, %v379
    %482 = vmatprep.subr.bf16.mxu0 %v387
    %483 = vmatpush1.bf16.msra.mxu0 %v386
    %484 = vmatprep.subr.bf16.mxu0 %v393
    %485 = vmatpush1.bf16.msra.mxu0 %v392
    %486 = vmatprep.subr.bf16.mxu0 %v399
    %487 = vmatpush1.bf16.msra.mxu0 %v398
    %488 = vmatprep.subr.bf16.mxu0 %v405
    %489 = vmatpush1.bf16.msra.mxu0 %v404
    %490 = vmatprep.subr.bf16.mxu0 %v411
    %491 = vmatpush1.bf16.msra.mxu0 %v410
    %492 = vmatprep.subr.bf16.mxu0 %v417
    %493 = vmatpush1.bf16.msra.mxu0 %v416
    %494 = vmatprep.subr.bf16.mxu0 %v423
    %495 = vmatpush1.bf16.msra.mxu0 %v422
    %496 = vmatprep.subr.bf16.mxu0 %v429
    %497 = vmatpush1.bf16.msra.mxu0 %v428
    %498 = vmatprep.subr.bf16.mxu0 0
    %499 = vmatpush1.bf16.msra.mxu0 0
    %500 = vmatprep.subr.bf16.mxu0 0
    %501 = vmatpush1.bf16.msra.mxu0 0
    %502 = vmatprep.subr.bf16.mxu0 0
    %503 = vmatpush1.bf16.msra.mxu0 0
    %504 = vmatprep.subr.bf16.mxu0 0
    %505 = vmatpush1.bf16.msra.mxu0 0
    %506 = vmatprep.subr.bf16.mxu0 0
    %507 = vmatpush1.bf16.msra.mxu0 0
    %508 = vmatprep.subr.bf16.mxu0 0
    %509 = vmatpush1.bf16.msra.mxu0 0
    %510 = vmatprep.subr.bf16.mxu0 0
    %511 = vmatpush1.bf16.msra.mxu0 0
    %512 = vmatprep.subr.bf16.mxu0 0
    %513 = vmatpush1.bf16.msra.mxu0 0
    %514 = vmatprep.mubr.bf16.mxu0 0
    %515 = vmatmul.mubr.bf16.gmra.mrb[0].mxu0 %v209
    %v516 = vpop.f32.mrb[0].mxu0
    %v517 = vadd.f32 %v215, %v516
    %v518 = vpop.f32.mrb[0].mxu0
    %v519 = vadd.f32 %v219, %v518
    %v520 = vpop.f32.mrb[0].mxu0
    %v521 = vadd.f32 %v215, %v520
    %v522 = vpop.f32.mrb[0].mxu0
    %v523 = vadd.f32 %v219, %v522
    %524 = vdwg.mxu0
    %525 = vmatprep.subr.bf16.mxu0 %v389
    %526 = vmatpush1.bf16.msra.mxu0 %v388
    %527 = vmatprep.subr.bf16.mxu0 %v395
    %528 = vmatpush1.bf16.msra.mxu0 %v394
    %529 = vmatprep.subr.bf16.mxu0 %v401
    %530 = vmatpush1.bf16.msra.mxu0 %v400
    %531 = vmatprep.subr.bf16.mxu0 %v407
    %532 = vmatpush1.bf16.msra.mxu0 %v406
    %533 = vmatprep.subr.bf16.mxu0 %v413
    %534 = vmatpush1.bf16.msra.mxu0 %v412
    %535 = vmatprep.subr.bf16.mxu0 %v419
    %536 = vmatpush1.bf16.msra.mxu0 %v418
    %537 = vmatprep.subr.bf16.mxu0 %v425
    %538 = vmatpush1.bf16.msra.mxu0 %v424
    %539 = vmatprep.subr.bf16.mxu0 %v431
    %540 = vmatpush1.bf16.msra.mxu0 %v430
    %541 = vmatprep.subr.bf16.mxu0 0
    %542 = vmatpush1.bf16.msra.mxu0 0
    %543 = vmatprep.subr.bf16.mxu0 0
    %544 = vmatpush1.bf16.msra.mxu0 0
    %545 = vmatprep.subr.bf16.mxu0 0
    %546 = vmatpush1.bf16.msra.mxu0 0
    %547 = vmatprep.subr.bf16.mxu0 0
    %548 = vmatpush1.bf16.msra.mxu0 0
    %549 = vmatprep.subr.bf16.mxu0 0
    %550 = vmatpush1.bf16.msra.mxu0 0
    %551 = vmatprep.subr.bf16.mxu0 0
    %552 = vmatpush1.bf16.msra.mxu0 0
    %553 = vmatprep.subr.bf16.mxu0 0
    %554 = vmatpush1.bf16.msra.mxu0 0
    %555 = vmatprep.subr.bf16.mxu0 0
    %556 = vmatpush1.bf16.msra.mxu0 0
    %557 = vmatprep.mubr.bf16.mxu0 0
    %558 = vmatmul.mubr.bf16.gmra.mrb[0].mxu0 %v209
    %v559 = vpop.f32.mrb[0].mxu0
    %v560 = vadd.f32 %v223, %v559
    %v561 = vpop.f32.mrb[0].mxu0
    %v562 = vadd.f32 %v227, %v561
    %v563 = vpop.f32.mrb[0].mxu0
    %v564 = vadd.f32 %v223, %v563
    %v565 = vpop.f32.mrb[0].mxu0
    %v566 = vadd.f32 %v227, %v565
    %567 = vdwg.mxu0
    %568 = vmatprep.subr.bf16.mxu0 %v391
    %569 = vmatpush1.bf16.msra.mxu0 %v390
    %570 = vmatprep.subr.bf16.mxu0 %v397
    %571 = vmatpush1.bf16.msra.mxu0 %v396
    %572 = vmatprep.subr.bf16.mxu0 %v403
    %573 = vmatpush1.bf16.msra.mxu0 %v402
    %574 = vmatprep.subr.bf16.mxu0 %v409
    %575 = vmatpush1.bf16.msra.mxu0 %v408
    %576 = vmatprep.subr.bf16.mxu0 %v415
    %577 = vmatpush1.bf16.msra.mxu0 %v414
    %578 = vmatprep.subr.bf16.mxu0 %v421
    %579 = vmatpush1.bf16.msra.mxu0 %v420
    %580 = vmatprep.subr.bf16.mxu0 %v427
    %581 = vmatpush1.bf16.msra.mxu0 %v426
    %582 = vmatprep.subr.bf16.mxu0 %v433
    %583 = vmatpush1.bf16.msra.mxu0 %v432
    %584 = vmatprep.subr.bf16.mxu0 0
    %585 = vmatpush1.bf16.msra.mxu0 0
    %586 = vmatprep.subr.bf16.mxu0 0
    %587 = vmatpush1.bf16.msra.mxu0 0
    %588 = vmatprep.subr.bf16.mxu0 0
    %589 = vmatpush1.bf16.msra.mxu0 0
    %590 = vmatprep.subr.bf16.mxu0 0
    %591 = vmatpush1.bf16.msra.mxu0 0
    %592 = vmatprep.subr.bf16.mxu0 0
    %593 = vmatpush1.bf16.msra.mxu0 0
    %594 = vmatprep.subr.bf16.mxu0 0
    %595 = vmatpush1.bf16.msra.mxu0 0
    %596 = vmatprep.subr.bf16.mxu0 0
    %597 = vmatpush1.bf16.msra.mxu0 0
    %598 = vmatprep.subr.bf16.mxu0 0
    %599 = vmatpush1.bf16.msra.mxu0 0
    %600 = vmatprep.mubr.bf16.mxu0 0
    %601 = vmatmul.mubr.bf16.gmra.mrb[0].mxu0 %v209
    %v602 = vpop.f32.mrb[0].mxu0
    %v603 = vadd.f32 %v231, %v602
    %v604 = vpop.f32.mrb[0].mxu0
    %v605 = vadd.f32 %v235, %v604
    %v606 = vpop.f32.mrb[0].mxu0
    %v607 = vadd.f32 %v231, %v606
    %v608 = vpop.f32.mrb[0].mxu0
    %v609 = vadd.f32 %v235, %v608
    %610 = vdwg.mxu0
    %v611 = vpack.c.bf16 %v517, %v517
    %v612 = vpack.c.bf16 %v560, %v560
    %613 = vmatprep.subr.bf16.mxu0 0
    %614 = vmatpush1.bf16.xpose.msra.mxu0 %v612
    %615 = vmatprep.subr.bf16.mxu0 0
    %616 = vmatpush1.bf16.xpose.msra.mxu0 0
    %617 = vmatprep.subr.bf16.mxu0 0
    %618 = vmatpush1.bf16.xpose.msra.mxu0 0
    %619 = vmatprep.subr.bf16.mxu0 0
    %620 = vmatpush1.bf16.xpose.msra.mxu0 0
    %621 = vmatprep.subr.bf16.mxu0 0
    %622 = vmatpush1.bf16.xpose.msra.mxu0 0
    %623 = vmatprep.subr.bf16.mxu0 0
    %624 = vmatpush1.bf16.xpose.msra.mxu0 0
    %625 = vmatprep.subr.bf16.mxu0 0
    %626 = vmatpush1.bf16.xpose.msra.mxu0 0
    %627 = vmatprep.subr.bf16.mxu0 0
    %628 = vmatpush1.bf16.xpose.msra.mxu0 0
    %629 = vmatprep.subr.bf16.mxu0 0
    %630 = vmatpush1.bf16.xpose.msra.mxu0 0
    %631 = vmatprep.subr.bf16.mxu0 0
    %632 = vmatpush1.bf16.xpose.msra.mxu0 0
    %633 = vmatprep.subr.bf16.mxu0 0
    %634 = vmatpush1.bf16.xpose.msra.mxu0 0
    %635 = vmatprep.subr.bf16.mxu0 0
    %636 = vmatpush1.bf16.xpose.msra.mxu0 0
    %637 = vmatprep.subr.bf16.mxu0 0
    %638 = vmatpush1.bf16.xpose.msra.mxu0 0
    %639 = vmatprep.subr.bf16.mxu0 0
    %640 = vmatpush1.bf16.xpose.msra.mxu0 0
    %641 = vmatprep.subr.bf16.mxu0 0
    %642 = vmatpush1.bf16.xpose.msra.mxu0 0
    %643 = vmatprep.subr.bf16.mxu0 0
    %644 = vmatpush1.bf16.xpose.msra.mxu0 0
    %645 = vmatprep.mubr.bf16.mxu0 0
    %646 = vmatmul.mubr.bf16.gmra.mrb[0].mxu0 %v611
    %v647 = vpop.f32.mrb[0].mxu0
    %v648 = vadd.f32 0.0, %v647
    %v649 = vpop.f32.mrb[0].mxu0
    %v650 = vpop.f32.mrb[0].mxu0
    %v651 = vpop.f32.mrb[0].mxu0
    %652 = vdwg.mxu0
    %v653 = vmul.f32 %v648, 0.125
    %vm654 = vcmask 64512
    %v655 = vsel %vm654, %v653, -inf
    %656 = vmax.xlane.f32.xlu0 %v655
    %v657 = vpop.xlane.xlu0 %656
    %v658 = vsub.f32 %v653, %v657
    %v659 = vmul.f32 %v658, 1.442695
    %v660 = vpow.pop %v659
    %v661 = vsel %vm654, %v660, 0.0
    %662 = vadd.xlane.f32.xlu0 %v661
    %v663 = vpop.xlane.xlu0 %662
    %v664 = vrcp.pop %v663
    %v665 = vmul.f32 %v660, %v664
    %v666 = vpack.c.bf16 %v665, %v665
    %v667 = vpack.c.bf16 %v603, %v603
    %v669 = vsel %vm654, %v666, 0
    %vm671 = vcmask 1043456
    %v673 = vsel %vm671, %v667, 0
    %675 = vmatprep.subr.bf16.mxu0 0
    %676 = vmatpush1.bf16.msra.mxu0 %v673
    %677 = vmatprep.subr.bf16.mxu0 0
    %678 = vmatpush1.bf16.msra.mxu0 0
    %679 = vmatprep.subr.bf16.mxu0 0
    %680 = vmatpush1.bf16.msra.mxu0 0
    %681 = vmatprep.subr.bf16.mxu0 0
    %682 = vmatpush1.bf16.msra.mxu0 0
    %683 = vmatprep.subr.bf16.mxu0 0
    %684 = vmatpush1.bf16.msra.mxu0 0
    %685 = vmatprep.subr.bf16.mxu0 0
    %686 = vmatpush1.bf16.msra.mxu0 0
    %687 = vmatprep.subr.bf16.mxu0 0
    %688 = vmatpush1.bf16.msra.mxu0 0
    %689 = vmatprep.subr.bf16.mxu0 0
    %690 = vmatpush1.bf16.msra.mxu0 0
    %691 = vmatprep.subr.bf16.mxu0 0
    %692 = vmatpush1.bf16.msra.mxu0 0
    %693 = vmatprep.subr.bf16.mxu0 0
    %694 = vmatpush1.bf16.msra.mxu0 0
    %695 = vmatprep.subr.bf16.mxu0 0
    %696 = vmatpush1.bf16.msra.mxu0 0
    %697 = vmatprep.subr.bf16.mxu0 0
    %698 = vmatpush1.bf16.msra.mxu0 0
    %699 = vmatprep.subr.bf16.mxu0 0
    %700 = vmatpush1.bf16.msra.mxu0 0
    %701 = vmatprep.subr.bf16.mxu0 0
    %702 = vmatpush1.bf16.msra.mxu0 0
    %703 = vmatprep.subr.bf16.mxu0 0
    %704 = vmatpush1.bf16.msra.mxu0 0
    %705 = vmatprep.subr.bf16.mxu0 0
    %706 = vmatpush1.bf16.msra.mxu0 0
    %707 = vmatprep.mubr.bf16.mxu0 0
    %708 = vmatmul.mubr.bf16.gmra.mrb[0].mxu0 %v669
    %v709 = vpop.f32.mrb[0].mxu0
    %v710 = vadd.f32 0.0, %v709
    %v711 = vpop.f32.mrb[0].mxu0
    %v712 = vpop.f32.mrb[0].mxu0
    %v713 = vpop.f32.mrb[0].mxu0
    %714 = vdwg.mxu0
    %v715 = vpack.c.bf16 %v519, %v519
    %v716 = vpack.c.bf16 %v562, %v562
    %717 = vmatprep.subr.bf16.mxu0 0
    %718 = vmatpush1.bf16.xpose.msra.mxu0 %v716
    %719 = vmatprep.subr.bf16.mxu0 0
    %720 = vmatpush1.bf16.xpose.msra.mxu0 0
    %721 = vmatprep.subr.bf16.mxu0 0
    %722 = vmatpush1.bf16.xpose.msra.mxu0 0
    %723 = vmatprep.subr.bf16.mxu0 0
    %724 = vmatpush1.bf16.xpose.msra.mxu0 0
    %725 = vmatprep.subr.bf16.mxu0 0
    %726 = vmatpush1.bf16.xpose.msra.mxu0 0
    %727 = vmatprep.subr.bf16.mxu0 0
    %728 = vmatpush1.bf16.xpose.msra.mxu0 0
    %729 = vmatprep.subr.bf16.mxu0 0
    %730 = vmatpush1.bf16.xpose.msra.mxu0 0
    %731 = vmatprep.subr.bf16.mxu0 0
    %732 = vmatpush1.bf16.xpose.msra.mxu0 0
    %733 = vmatprep.subr.bf16.mxu0 0
    %734 = vmatpush1.bf16.xpose.msra.mxu0 0
    %735 = vmatprep.subr.bf16.mxu0 0
    %736 = vmatpush1.bf16.xpose.msra.mxu0 0
    %737 = vmatprep.subr.bf16.mxu0 0
    %738 = vmatpush1.bf16.xpose.msra.mxu0 0
    %739 = vmatprep.subr.bf16.mxu0 0
    %740 = vmatpush1.bf16.xpose.msra.mxu0 0
    %741 = vmatprep.subr.bf16.mxu0 0
    %742 = vmatpush1.bf16.xpose.msra.mxu0 0
    %743 = vmatprep.subr.bf16.mxu0 0
    %744 = vmatpush1.bf16.xpose.msra.mxu0 0
    %745 = vmatprep.subr.bf16.mxu0 0
    %746 = vmatpush1.bf16.xpose.msra.mxu0 0
    %747 = vmatprep.subr.bf16.mxu0 0
    %748 = vmatpush1.bf16.xpose.msra.mxu0 0
    %749 = vmatprep.mubr.bf16.mxu0 0
    %750 = vmatmul.mubr.bf16.gmra.mrb[0].mxu0 %v715
    %v751 = vpop.f32.mrb[0].mxu0
    %v752 = vadd.f32 0.0, %v751
    %v753 = vpop.f32.mrb[0].mxu0
    %v754 = vpop.f32.mrb[0].mxu0
    %v755 = vpop.f32.mrb[0].mxu0
    %756 = vdwg.mxu0
    %v757 = vmul.f32 %v752, 0.125
    %v758 = vsel %vm654, %v757, -inf
    %759 = vmax.xlane.f32.xlu0 %v758
    %v760 = vpop.xlane.xlu0 %759
    %v761 = vsub.f32 %v757, %v760
    %v762 = vmul.f32 %v761, 1.442695
    %v763 = vpow.pop %v762
    %v764 = vsel %vm654, %v763, 0.0
    %765 = vadd.xlane.f32.xlu0 %v764
    %v766 = vpop.xlane.xlu0 %765
    %v767 = vrcp.pop %v766
    %v768 = vmul.f32 %v763, %v767
    %v769 = vpack.c.bf16 %v768, %v768
    %v770 = vpack.c.bf16 %v605, %v605
    %v772 = vsel %vm654, %v769, 0
    %v775 = vsel %vm671, %v770, 0
    %777 = vmatprep.subr.bf16.mxu0 0
    %778 = vmatpush1.bf16.msra.mxu0 %v775
    %779 = vmatprep.subr.bf16.mxu0 0
    %780 = vmatpush1.bf16.msra.mxu0 0
    %781 = vmatprep.subr.bf16.mxu0 0
    %782 = vmatpush1.bf16.msra.mxu0 0
    %783 = vmatprep.subr.bf16.mxu0 0
    %784 = vmatpush1.bf16.msra.mxu0 0
    %785 = vmatprep.subr.bf16.mxu0 0
    %786 = vmatpush1.bf16.msra.mxu0 0
    %787 = vmatprep.subr.bf16.mxu0 0
    %788 = vmatpush1.bf16.msra.mxu0 0
    %789 = vmatprep.subr.bf16.mxu0 0
    %790 = vmatpush1.bf16.msra.mxu0 0
    %791 = vmatprep.subr.bf16.mxu0 0
    %792 = vmatpush1.bf16.msra.mxu0 0
    %793 = vmatprep.subr.bf16.mxu0 0
    %794 = vmatpush1.bf16.msra.mxu0 0
    %795 = vmatprep.subr.bf16.mxu0 0
    %796 = vmatpush1.bf16.msra.mxu0 0
    %797 = vmatprep.subr.bf16.mxu0 0
    %798 = vmatpush1.bf16.msra.mxu0 0
    %799 = vmatprep.subr.bf16.mxu0 0
    %800 = vmatpush1.bf16.msra.mxu0 0
    %801 = vmatprep.subr.bf16.mxu0 0
    %802 = vmatpush1.bf16.msra.mxu0 0
    %803 = vmatprep.subr.bf16.mxu0 0
    %804 = vmatpush1.bf16.msra.mxu0 0
    %805 = vmatprep.subr.bf16.mxu0 0
    %806 = vmatpush1.bf16.msra.mxu0 0
    %807 = vmatprep.subr.bf16.mxu0 0
    %808 = vmatpush1.bf16.msra.mxu0 0
    %809 = vmatprep.mubr.bf16.mxu0 0
    %810 = vmatmul.mubr.bf16.gmra.mrb[0].mxu0 %v772
    %v811 = vpop.f32.mrb[0].mxu0
    %v812 = vadd.f32 0.0, %v811
    %v813 = vpop.f32.mrb[0].mxu0
    %v814 = vpop.f32.mrb[0].mxu0
    %v815 = vpop.f32.mrb[0].mxu0
    %816 = vdwg.mxu0
    %v817 = vpack.c.bf16 %v521, %v521
    %v818 = vpack.c.bf16 %v564, %v564
    %819 = vmatprep.subr.bf16.mxu0 0
    %820 = vmatpush1.bf16.xpose.msra.mxu0 %v818
    %821 = vmatprep.subr.bf16.mxu0 0
    %822 = vmatpush1.bf16.xpose.msra.mxu0 0
    %823 = vmatprep.subr.bf16.mxu0 0
    %824 = vmatpush1.bf16.xpose.msra.mxu0 0
    %825 = vmatprep.subr.bf16.mxu0 0
    %826 = vmatpush1.bf16.xpose.msra.mxu0 0
    %827 = vmatprep.subr.bf16.mxu0 0
    %828 = vmatpush1.bf16.xpose.msra.mxu0 0
    %829 = vmatprep.subr.bf16.mxu0 0
    %830 = vmatpush1.bf16.xpose.msra.mxu0 0
    %831 = vmatprep.subr.bf16.mxu0 0
    %832 = vmatpush1.bf16.xpose.msra.mxu0 0
    %833 = vmatprep.subr.bf16.mxu0 0
    %834 = vmatpush1.bf16.xpose.msra.mxu0 0
    %835 = vmatprep.subr.bf16.mxu0 0
    %836 = vmatpush1.bf16.xpose.msra.mxu0 0
    %837 = vmatprep.subr.bf16.mxu0 0
    %838 = vmatpush1.bf16.xpose.msra.mxu0 0
    %839 = vmatprep.subr.bf16.mxu0 0
    %840 = vmatpush1.bf16.xpose.msra.mxu0 0
    %841 = vmatprep.subr.bf16.mxu0 0
    %842 = vmatpush1.bf16.xpose.msra.mxu0 0
    %843 = vmatprep.subr.bf16.mxu0 0
    %844 = vmatpush1.bf16.xpose.msra.mxu0 0
    %845 = vmatprep.subr.bf16.mxu0 0
    %846 = vmatpush1.bf16.xpose.msra.mxu0 0
    %847 = vmatprep.subr.bf16.mxu0 0
    %848 = vmatpush1.bf16.xpose.msra.mxu0 0
    %849 = vmatprep.subr.bf16.mxu0 0
    %850 = vmatpush1.bf16.xpose.msra.mxu0 0
    %851 = vmatprep.mubr.bf16.mxu0 0
    %852 = vmatmul.mubr.bf16.gmra.mrb[0].mxu0 %v817
    %v853 = vpop.f32.mrb[0].mxu0
    %v854 = vadd.f32 0.0, %v853
    %v855 = vpop.f32.mrb[0].mxu0
    %v856 = vpop.f32.mrb[0].mxu0
    %v857 = vpop.f32.mrb[0].mxu0
    %858 = vdwg.mxu0
    %v859 = vmul.f32 %v854, 0.125
    %v860 = vsel %vm654, %v859, -inf
    %861 = vmax.xlane.f32.xlu0 %v860
    %v862 = vpop.xlane.xlu0 %861
    %v863 = vsub.f32 %v859, %v862
    %v864 = vmul.f32 %v863, 1.442695
    %v865 = vpow.pop %v864
    %v866 = vsel %vm654, %v865, 0.0
    %867 = vadd.xlane.f32.xlu0 %v866
    %v868 = vpop.xlane.xlu0 %867
    %v869 = vrcp.pop %v868
    %v870 = vmul.f32 %v865, %v869
    %v871 = vpack.c.bf16 %v870, %v870
    %v872 = vpack.c.bf16 %v607, %v607
    %v874 = vsel %vm654, %v871, 0
    %v877 = vsel %vm671, %v872, 0
    %879 = vmatprep.subr.bf16.mxu0 0
    %880 = vmatpush1.bf16.msra.mxu0 %v877
    %881 = vmatprep.subr.bf16.mxu0 0
    %882 = vmatpush1.bf16.msra.mxu0 0
    %883 = vmatprep.subr.bf16.mxu0 0
    %884 = vmatpush1.bf16.msra.mxu0 0
    %885 = vmatprep.subr.bf16.mxu0 0
    %886 = vmatpush1.bf16.msra.mxu0 0
    %887 = vmatprep.subr.bf16.mxu0 0
    %888 = vmatpush1.bf16.msra.mxu0 0
    %889 = vmatprep.subr.bf16.mxu0 0
    %890 = vmatpush1.bf16.msra.mxu0 0
    %891 = vmatprep.subr.bf16.mxu0 0
    %892 = vmatpush1.bf16.msra.mxu0 0
    %893 = vmatprep.subr.bf16.mxu0 0
    %894 = vmatpush1.bf16.msra.mxu0 0
    %895 = vmatprep.subr.bf16.mxu0 0
    %896 = vmatpush1.bf16.msra.mxu0 0
    %897 = vmatprep.subr.bf16.mxu0 0
    %898 = vmatpush1.bf16.msra.mxu0 0
    %899 = vmatprep.subr.bf16.mxu0 0
    %900 = vmatpush1.bf16.msra.mxu0 0
    %901 = vmatprep.subr.bf16.mxu0 0
    %902 = vmatpush1.bf16.msra.mxu0 0
    %903 = vmatprep.subr.bf16.mxu0 0
    %904 = vmatpush1.bf16.msra.mxu0 0
    %905 = vmatprep.subr.bf16.mxu0 0
    %906 = vmatpush1.bf16.msra.mxu0 0
    %907 = vmatprep.subr.bf16.mxu0 0
    %908 = vmatpush1.bf16.msra.mxu0 0
    %909 = vmatprep.subr.bf16.mxu0 0
    %910 = vmatpush1.bf16.msra.mxu0 0
    %911 = vmatprep.mubr.bf16.mxu0 0
    %912 = vmatmul.mubr.bf16.gmra.mrb[0].mxu0 %v874
    %v913 = vpop.f32.mrb[0].mxu0
    %v914 = vadd.f32 0.0, %v913
    %v915 = vpop.f32.mrb[0].mxu0
    %v916 = vpop.f32.mrb[0].mxu0
    %v917 = vpop.f32.mrb[0].mxu0
    %918 = vdwg.mxu0
    %v919 = vpack.c.bf16 %v523, %v523
    %v920 = vpack.c.bf16 %v566, %v566
    %921 = vmatprep.subr.bf16.mxu0 0
    %922 = vmatpush1.bf16.xpose.msra.mxu0 %v920
    %923 = vmatprep.subr.bf16.mxu0 0
    %924 = vmatpush1.bf16.xpose.msra.mxu0 0
    %925 = vmatprep.subr.bf16.mxu0 0
    %926 = vmatpush1.bf16.xpose.msra.mxu0 0
    %927 = vmatprep.subr.bf16.mxu0 0
    %928 = vmatpush1.bf16.xpose.msra.mxu0 0
    %929 = vmatprep.subr.bf16.mxu0 0
    %930 = vmatpush1.bf16.xpose.msra.mxu0 0
    %931 = vmatprep.subr.bf16.mxu0 0
    %932 = vmatpush1.bf16.xpose.msra.mxu0 0
    %933 = vmatprep.subr.bf16.mxu0 0
    %934 = vmatpush1.bf16.xpose.msra.mxu0 0
    %935 = vmatprep.subr.bf16.mxu0 0
    %936 = vmatpush1.bf16.xpose.msra.mxu0 0
    %937 = vmatprep.subr.bf16.mxu0 0
    %938 = vmatpush1.bf16.xpose.msra.mxu0 0
    %939 = vmatprep.subr.bf16.mxu0 0
    %940 = vmatpush1.bf16.xpose.msra.mxu0 0
    %941 = vmatprep.subr.bf16.mxu0 0
    %942 = vmatpush1.bf16.xpose.msra.mxu0 0
    %943 = vmatprep.subr.bf16.mxu0 0
    %944 = vmatpush1.bf16.xpose.msra.mxu0 0
    %945 = vmatprep.subr.bf16.mxu0 0
    %946 = vmatpush1.bf16.xpose.msra.mxu0 0
    %947 = vmatprep.subr.bf16.mxu0 0
    %948 = vmatpush1.bf16.xpose.msra.mxu0 0
    %949 = vmatprep.subr.bf16.mxu0 0
    %950 = vmatpush1.bf16.xpose.msra.mxu0 0
    %951 = vmatprep.subr.bf16.mxu0 0
    %952 = vmatpush1.bf16.xpose.msra.mxu0 0
    %953 = vmatprep.mubr.bf16.mxu0 0
    %954 = vmatmul.mubr.bf16.gmra.mrb[0].mxu0 %v919
    %v955 = vpop.f32.mrb[0].mxu0
    %v956 = vadd.f32 0.0, %v955
    %v957 = vpop.f32.mrb[0].mxu0
    %v958 = vpop.f32.mrb[0].mxu0
    %v959 = vpop.f32.mrb[0].mxu0
    %960 = vdwg.mxu0
    %v961 = vmul.f32 %v956, 0.125
    %v962 = vsel %vm654, %v961, -inf
    %963 = vmax.xlane.f32.xlu0 %v962
    %v964 = vpop.xlane.xlu0 %963
    %v965 = vsub.f32 %v961, %v964
    %v966 = vmul.f32 %v965, 1.442695
    %v967 = vpow.pop %v966
    %v968 = vsel %vm654, %v967, 0.0
    %969 = vadd.xlane.f32.xlu0 %v968
    %v970 = vpop.xlane.xlu0 %969
    %v971 = vrcp.pop %v970
    %v972 = vmul.f32 %v967, %v971
    %v973 = vpack.c.bf16 %v972, %v972
    %v974 = vpack.c.bf16 %v609, %v609
    %v976 = vsel %vm654, %v973, 0
    %v979 = vsel %vm671, %v974, 0
    %981 = vmatprep.subr.bf16.mxu0 0
    %982 = vmatpush1.bf16.msra.mxu0 %v979
    %983 = vmatprep.subr.bf16.mxu0 0
    %984 = vmatpush1.bf16.msra.mxu0 0
    %985 = vmatprep.subr.bf16.mxu0 0
    %986 = vmatpush1.bf16.msra.mxu0 0
    %987 = vmatprep.subr.bf16.mxu0 0
    %988 = vmatpush1.bf16.msra.mxu0 0
    %989 = vmatprep.subr.bf16.mxu0 0
    %990 = vmatpush1.bf16.msra.mxu0 0
    %991 = vmatprep.subr.bf16.mxu0 0
    %992 = vmatpush1.bf16.msra.mxu0 0
    %993 = vmatprep.subr.bf16.mxu0 0
    %994 = vmatpush1.bf16.msra.mxu0 0
    %995 = vmatprep.subr.bf16.mxu0 0
    %996 = vmatpush1.bf16.msra.mxu0 0
    %997 = vmatprep.subr.bf16.mxu0 0
    %998 = vmatpush1.bf16.msra.mxu0 0
    %999 = vmatprep.subr.bf16.mxu0 0
    %1000 = vmatpush1.bf16.msra.mxu0 0
    %1001 = vmatprep.subr.bf16.mxu0 0
    %1002 = vmatpush1.bf16.msra.mxu0 0
    %1003 = vmatprep.subr.bf16.mxu0 0
    %1004 = vmatpush1.bf16.msra.mxu0 0
    %1005 = vmatprep.subr.bf16.mxu0 0
    %1006 = vmatpush1.bf16.msra.mxu0 0
    %1007 = vmatprep.subr.bf16.mxu0 0
    %1008 = vmatpush1.bf16.msra.mxu0 0
    %1009 = vmatprep.subr.bf16.mxu0 0
    %1010 = vmatpush1.bf16.msra.mxu0 0
    %1011 = vmatprep.subr.bf16.mxu0 0
    %1012 = vmatpush1.bf16.msra.mxu0 0
    %1013 = vmatprep.mubr.bf16.mxu0 0
    %1014 = vmatmul.mubr.bf16.gmra.mrb[0].mxu0 %v976
    %v1015 = vpop.f32.mrb[0].mxu0
    %v1016 = vadd.f32 0.0, %v1015
    %v1017 = vpop.f32.mrb[0].mxu0
    %v1018 = vpop.f32.mrb[0].mxu0
    %v1019 = vpop.f32.mrb[0].mxu0
    %1020 = vdwg.mxu0
    %v1021 = vld [vmem:[#allocation4] sm:$0xf]
    %v1022 = vld [vmem:[#allocation4 + $0x4] sm:$0xf]
    %v1023 = vld [vmem:[#allocation4 + $0x8] sm:$0xf]
    %v1024 = vld [vmem:[#allocation4 + $0xc] sm:$0xf]
    %v1025 = vld [vmem:[#allocation4 + $0x10] sm:$0xf]
    %v1026 = vld [vmem:[#allocation4 + $0x14] sm:$0xf]
    %v1027 = vld [vmem:[#allocation4 + $0x18] sm:$0xf]
    %v1028 = vld [vmem:[#allocation4 + $0x1c] sm:$0xf]
    %v1029 = vld [vmem:[#allocation4 + $0x20] sm:$0xf]
    %v1030 = vld [vmem:[#allocation4 + $0x24] sm:$0xf]
    %v1031 = vld [vmem:[#allocation4 + $0x28] sm:$0xf]
    %v1032 = vld [vmem:[#allocation4 + $0x2c] sm:$0xf]
    %v1033 = vld [vmem:[#allocation4 + $0x30] sm:$0xf]
    %v1034 = vld [vmem:[#allocation4 + $0x34] sm:$0xf]
    %v1035 = vld [vmem:[#allocation4 + $0x38] sm:$0xf]
    %v1036 = vld [vmem:[#allocation4 + $0x3c] sm:$0xf]
    %v1037 = vld [vmem:[#allocation4 + $0x40] sm:$0xf]
    %v1038 = vld [vmem:[#allocation4 + $0x44] sm:$0xf]
    %v1039 = vld [vmem:[#allocation4 + $0x48] sm:$0xf]
    %v1040 = vld [vmem:[#allocation4 + $0x4c] sm:$0xf]
    %v1041 = vld [vmem:[#allocation4 + $0x50] sm:$0xf]
    %v1042 = vld [vmem:[#allocation4 + $0x54] sm:$0xf]
    %v1043 = vld [vmem:[#allocation4 + $0x58] sm:$0xf]
    %v1044 = vld [vmem:[#allocation4 + $0x5c] sm:$0xf]
    %v1045 = vld [vmem:[#allocation4 + $0x60] sm:$0xf]
    %v1046 = vld [vmem:[#allocation4 + $0x64] sm:$0xf]
    %v1047 = vld [vmem:[#allocation4 + $0x68] sm:$0xf]
    %v1048 = vld [vmem:[#allocation4 + $0x6c] sm:$0xf]
    %v1049 = vld [vmem:[#allocation4 + $0x70] sm:$0xf]
    %v1050 = vld [vmem:[#allocation4 + $0x74] sm:$0xf]
    %v1051 = vld [vmem:[#allocation4 + $0x78] sm:$0xf]
    %v1052 = vld [vmem:[#allocation4 + $0x7c] sm:$0xf]
    %v1053 = vpack.c.bf16 %v914, %v710
    %v1054 = vpack.c.bf16 %v1016, %v812
    %v1055 = vld [vmem:[%s6] sm:$0x1]
    %v1057 = vlaneseq
    %v1058 = vshrl.u32 %v1057, 7
    %v1059 = vsub.s32 0, %v1058
    %v1060 = vrot.slane %v1055, %v1059
    %v1094 = vunpack.c.l.b16 %v1021
    %v1095 = vunpack.c.l.b16 %v1022
    %v1096 = vunpack.c.l.b16 %v1023
    %v1097 = vunpack.c.l.b16 %v1024
    %v1098 = vunpack.c.l.b16 %v1025
    %v1099 = vunpack.c.l.b16 %v1026
    %v1100 = vunpack.c.l.b16 %v1027
    %v1101 = vunpack.c.l.b16 %v1028
    %v1102 = vunpack.c.l.b16 %v1029
    %v1103 = vunpack.c.l.b16 %v1030
    %v1104 = vunpack.c.l.b16 %v1031
    %v1105 = vunpack.c.l.b16 %v1032
    %v1106 = vunpack.c.l.b16 %v1033
    %v1107 = vunpack.c.l.b16 %v1034
    %v1108 = vunpack.c.l.b16 %v1035
    %v1109 = vunpack.c.l.b16 %v1036
    %v1110 = vunpack.c.l.b16 %v1037
    %v1111 = vunpack.c.l.b16 %v1038
    %v1112 = vunpack.c.l.b16 %v1039
    %v1113 = vunpack.c.l.b16 %v1040
    %v1114 = vunpack.c.l.b16 %v1041
    %v1115 = vunpack.c.l.b16 %v1042
    %v1116 = vunpack.c.l.b16 %v1043
    %v1117 = vunpack.c.l.b16 %v1044
    %v1118 = vunpack.c.l.b16 %v1045
    %v1119 = vunpack.c.l.b16 %v1046
    %v1120 = vunpack.c.l.b16 %v1047
    %v1121 = vunpack.c.l.b16 %v1048
    %v1122 = vunpack.c.l.b16 %v1049
    %v1123 = vunpack.c.l.b16 %v1050
    %v1124 = vunpack.c.l.b16 %v1051
    %v1125 = vunpack.c.l.b16 %v1052
    %v1126 = vpack.c.b16 %v1095, %v1094
    %v1127 = vpack.c.b16 %v1097, %v1096
    %v1128 = vpack.c.b16 %v1099, %v1098
    %v1129 = vpack.c.b16 %v1101, %v1100
    %v1130 = vpack.c.b16 %v1103, %v1102
    %v1131 = vpack.c.b16 %v1105, %v1104
    %v1132 = vpack.c.b16 %v1107, %v1106
    %v1133 = vpack.c.b16 %v1109, %v1108
    %v1134 = vpack.c.b16 %v1111, %v1110
    %v1135 = vpack.c.b16 %v1113, %v1112
    %v1136 = vpack.c.b16 %v1115, %v1114
    %v1137 = vpack.c.b16 %v1117, %v1116
    %v1138 = vpack.c.b16 %v1119, %v1118
    %v1139 = vpack.c.b16 %v1121, %v1120
    %v1140 = vpack.c.b16 %v1123, %v1122
    %v1141 = vpack.c.b16 %v1125, %v1124
    %1158 = vmatprep.subr.bf16.mxu0 0
    %1159 = vmatpush1.bf16.msra.mxu0 %v1126
    %1160 = vmatprep.subr.bf16.mxu0 0
    %1161 = vmatpush1.bf16.msra.mxu0 %v1127
    %1162 = vmatprep.subr.bf16.mxu0 0
    %1163 = vmatpush1.bf16.msra.mxu0 %v1128
    %1164 = vmatprep.subr.bf16.mxu0 0
    %1165 = vmatpush1.bf16.msra.mxu0 %v1129
    %1166 = vmatprep.subr.bf16.mxu0 0
    %1167 = vmatpush1.bf16.msra.mxu0 %v1130
    %1168 = vmatprep.subr.bf16.mxu0 0
    %1169 = vmatpush1.bf16.msra.mxu0 %v1131
    %1170 = vmatprep.subr.bf16.mxu0 0
    %1171 = vmatpush1.bf16.msra.mxu0 %v1132
    %1172 = vmatprep.subr.bf16.mxu0 0
    %1173 = vmatpush1.bf16.msra.mxu0 %v1133
    %1174 = vmatprep.subr.bf16.mxu0 0
    %1175 = vmatpush1.bf16.msra.mxu0 %v1134
    %1176 = vmatprep.subr.bf16.mxu0 0
    %1177 = vmatpush1.bf16.msra.mxu0 %v1135
    %1178 = vmatprep.subr.bf16.mxu0 0
    %1179 = vmatpush1.bf16.msra.mxu0 %v1136
    %1180 = vmatprep.subr.bf16.mxu0 0
    %1181 = vmatpush1.bf16.msra.mxu0 %v1137
    %1182 = vmatprep.subr.bf16.mxu0 0
    %1183 = vmatpush1.bf16.msra.mxu0 %v1138
    %1184 = vmatprep.subr.bf16.mxu0 0
    %1185 = vmatpush1.bf16.msra.mxu0 %v1139
    %1186 = vmatprep.subr.bf16.mxu0 0
    %1187 = vmatpush1.bf16.msra.mxu0 %v1140
    %1188 = vmatprep.subr.bf16.mxu0 0
    %1189 = vmatpush1.bf16.msra.mxu0 %v1141
    %1190 = vmatprep.mubr.bf16.mxu0 %v1054
    %1191 = vmatmul.mubr.bf16.gmra.mrb[0].mxu0 %v1053
    %v1192 = vpop.f32.mrb[0].mxu0
    %v1193 = vadd.f32 %v1060, %v1192
    %v1194 = vpop.f32.mrb[0].mxu0
    %v1195 = vpop.f32.mrb[0].mxu0
    %v1196 = vadd.f32 %v1060, %v1195
    %v1197 = vpop.f32.mrb[0].mxu0
    %1198 = vdwg.mxu0
    %v1199 = vadd.f32 %v1193, %v159
    %v1200 = vadd.f32 %v1196, %v160
    %v1201 = vld [vmem:[%s7] sm:$0x1]
    %v1202 = vld [vmem:[%s8] sm:$0x1]
    %1203 = vadd.xlane.f32.xlu0 %v1199
    %v1204 = vpop.xlane.xlu0 %1203
    %1205 = vadd.xlane.f32.xlu0 %v1200
    %v1206 = vpop.xlane.xlu0 %1205
    %v1207 = vmul.f32 %v1204, %v126
    %v1208 = vmul.f32 %v1206, %v126
    %v1209 = vsub.f32 %v1199, %v1207
    %v1210 = vsub.f32 %v1200, %v1208
    %v1211 = vmul.f32 %v1209, %v1209
    %v1212 = vmul.f32 %v1210, %v1210
    %1213 = vadd.xlane.f32.xlu0 %v1211
    %v1214 = vpop.xlane.xlu0 %1213
    %1215 = vadd.xlane.f32.xlu0 %v1212
    %v1216 = vpop.xlane.xlu0 %1215
    %v1217 = vmul.f32 %v1214, %v126
    %v1218 = vmul.f32 %v1216, %v126
    %v1219 = vadd.f32 %v1217, 1e-12
    %v1220 = vadd.f32 %v1218, 1e-12
    %v1221 = vrsqrt.pop %v1219
    %v1222 = vrsqrt.pop %v1220
    %v1223 = vmul.f32 %v1209, %v1221
    %v1224 = vmul.f32 %v1210, %v1222
    %v1226 = vlaneseq
    %v1227 = vshrl.u32 %v1226, 7
    %v1228 = vsub.s32 0, %v1227
    %v1229 = vrot.slane %v1201, %v1228
    %v1231 = vmul.f32 %v1223, %v1229
    %v1232 = vmul.f32 %v1224, %v1229
    %v1234 = vlaneseq
    %v1235 = vshrl.u32 %v1234, 7
    %v1236 = vsub.s32 0, %v1235
    %v1237 = vrot.slane %v1202, %v1236
    %v1239 = vadd.f32 %v1231, %v1237
    %v1240 = vadd.f32 %v1232, %v1237
    %v1241 = vld [vmem:[#allocation6] sm:$0xff]
    %v1242 = vld [vmem:[#allocation6 + $0x8] sm:$0xff]
    %v1243 = vld [vmem:[#allocation6 + $0x10] sm:$0xff]
    %v1244 = vld [vmem:[#allocation6 + $0x18] sm:$0xff]
    %v1245 = vld [vmem:[#allocation6 + $0x20] sm:$0xff]
    %v1246 = vld [vmem:[#allocation6 + $0x28] sm:$0xff]
    %v1247 = vld [vmem:[#allocation6 + $0x30] sm:$0xff]
    %v1248 = vld [vmem:[#allocation6 + $0x38] sm:$0xff]
    %v1249 = vld [vmem:[#allocation6 + $0x40] sm:$0xff]
    %v1250 = vld [vmem:[#allocation6 + $0x48] sm:$0xff]
    %v1251 = vld [vmem:[#allocation6 + $0x50] sm:$0xff]
    %v1252 = vld [vmem:[#allocation6 + $0x58] sm:$0xff]
    %v1253 = vld [vmem:[#allocation6 + $0x60] sm:$0xff]
    %v1254 = vld [vmem:[#allocation6 + $0x68] sm:$0xff]
    %v1255 = vld [vmem:[#allocation6 + $0x70] sm:$0xff]
    %v1256 = vld [vmem:[#allocation6 + $0x78] sm:$0xff]
    %v1257 = vld [vmem:[#allocation6 + $0x80] sm:$0xff]
    %v1258 = vld [vmem:[#allocation6 + $0x88] sm:$0xff]
    %v1259 = vld [vmem:[#allocation6 + $0x90] sm:$0xff]
    %v1260 = vld [vmem:[#allocation6 + $0x98] sm:$0xff]
    %v1261 = vld [vmem:[#allocation6 + $0xa0] sm:$0xff]
    %v1262 = vld [vmem:[#allocation6 + $0xa8] sm:$0xff]
    %v1263 = vld [vmem:[#allocation6 + $0xb0] sm:$0xff]
    %v1264 = vld [vmem:[#allocation6 + $0xb8] sm:$0xff]
    %v1265 = vld [vmem:[#allocation6 + $0xc0] sm:$0xff]
    %v1266 = vld [vmem:[#allocation6 + $0xc8] sm:$0xff]
    %v1267 = vld [vmem:[#allocation6 + $0xd0] sm:$0xff]
    %v1268 = vld [vmem:[#allocation6 + $0xd8] sm:$0xff]
    %v1269 = vld [vmem:[#allocation6 + $0xe0] sm:$0xff]
    %v1270 = vld [vmem:[#allocation6 + $0xe8] sm:$0xff]
    %v1271 = vld [vmem:[#allocation6 + $0xf0] sm:$0xff]
    %v1272 = vld [vmem:[#allocation6 + $0xf8] sm:$0xff]
    %v1273 = vpack.c.bf16 %v1240, %v1239
    %v1274 = vld [vmem:[%s10] sm:$0xf]
    %v1276 = vlaneseq
    %v1277 = vshrl.u32 %v1276, 7
    %v1278 = vsub.s32 0, %v1277
    %v1279 = vrot.slane %v1274, %v1278
    %v1280 = vlaneseq
    %v1281 = vshrl.u32 %v1280, 7
    %v1282 = vsub.s32 1, %v1281
    %v1283 = vrot.slane %v1274, %v1282
    %v1284 = vlaneseq
    %v1285 = vshrl.u32 %v1284, 7
    %v1286 = vsub.s32 2, %v1285
    %v1287 = vrot.slane %v1274, %v1286
    %v1288 = vlaneseq
    %v1289 = vshrl.u32 %v1288, 7
    %v1290 = vsub.s32 3, %v1289
    %v1291 = vrot.slane %v1274, %v1290
    %v1328 = vunpack.c.l.b16 %v1241
    %v1329 = vunpack.c.h.b16 %v1241
    %v1330 = vunpack.c.l.b16 %v1242
    %v1331 = vunpack.c.h.b16 %v1242
    %v1332 = vunpack.c.l.b16 %v1243
    %v1333 = vunpack.c.h.b16 %v1243
    %v1334 = vunpack.c.l.b16 %v1244
    %v1335 = vunpack.c.h.b16 %v1244
    %v1336 = vunpack.c.l.b16 %v1245
    %v1337 = vunpack.c.h.b16 %v1245
    %v1338 = vunpack.c.l.b16 %v1246
    %v1339 = vunpack.c.h.b16 %v1246
    %v1340 = vunpack.c.l.b16 %v1247
    %v1341 = vunpack.c.h.b16 %v1247
    %v1342 = vunpack.c.l.b16 %v1248
    %v1343 = vunpack.c.h.b16 %v1248
    %v1344 = vunpack.c.l.b16 %v1249
    %v1345 = vunpack.c.h.b16 %v1249
    %v1346 = vunpack.c.l.b16 %v1250
    %v1347 = vunpack.c.h.b16 %v1250
    %v1348 = vunpack.c.l.b16 %v1251
    %v1349 = vunpack.c.h.b16 %v1251
    %v1350 = vunpack.c.l.b16 %v1252
    %v1351 = vunpack.c.h.b16 %v1252
    %v1352 = vunpack.c.l.b16 %v1253
    %v1353 = vunpack.c.h.b16 %v1253
    %v1354 = vunpack.c.l.b16 %v1254
    %v1355 = vunpack.c.h.b16 %v1254
    %v1356 = vunpack.c.l.b16 %v1255
    %v1357 = vunpack.c.h.b16 %v1255
    %v1358 = vunpack.c.l.b16 %v1256
    %v1359 = vunpack.c.h.b16 %v1256
    %v1360 = vunpack.c.l.b16 %v1257
    %v1361 = vunpack.c.h.b16 %v1257
    %v1362 = vunpack.c.l.b16 %v1258
    %v1363 = vunpack.c.h.b16 %v1258
    %v1364 = vunpack.c.l.b16 %v1259
    %v1365 = vunpack.c.h.b16 %v1259
    %v1366 = vunpack.c.l.b16 %v1260
    %v1367 = vunpack.c.h.b16 %v1260
    %v1368 = vunpack.c.l.b16 %v1261
    %v1369 = vunpack.c.h.b16 %v1261
    %v1370 = vunpack.c.l.b16 %v1262
    %v1371 = vunpack.c.h.b16 %v1262
    %v1372 = vunpack.c.l.b16 %v1263
    %v1373 = vunpack.c.h.b16 %v1263
    %v1374 = vunpack.c.l.b16 %v1264
    %v1375 = vunpack.c.h.b16 %v1264
    %v1376 = vunpack.c.l.b16 %v1265
    %v1377 = vunpack.c.h.b16 %v1265
    %v1378 = vunpack.c.l.b16 %v1266
    %v1379 = vunpack.c.h.b16 %v1266
    %v1380 = vunpack.c.l.b16 %v1267
    %v1381 = vunpack.c.h.b16 %v1267
    %v1382 = vunpack.c.l.b16 %v1268
    %v1383 = vunpack.c.h.b16 %v1268
    %v1384 = vunpack.c.l.b16 %v1269
    %v1385 = vunpack.c.h.b16 %v1269
    %v1386 = vunpack.c.l.b16 %v1270
    %v1387 = vunpack.c.h.b16 %v1270
    %v1388 = vunpack.c.l.b16 %v1271
    %v1389 = vunpack.c.h.b16 %v1271
    %v1390 = vunpack.c.l.b16 %v1272
    %v1391 = vunpack.c.h.b16 %v1272
    %v1392 = vpack.c.b16 %v1332, %v1328
    %v1393 = vpack.c.b16 %v1333, %v1329
    %v1394 = vpack.c.b16 %v1334, %v1330
    %v1395 = vpack.c.b16 %v1335, %v1331
    %v1396 = vpack.c.b16 %v1340, %v1336
    %v1397 = vpack.c.b16 %v1341, %v1337
    %v1398 = vpack.c.b16 %v1342, %v1338
    %v1399 = vpack.c.b16 %v1343, %v1339
    %v1400 = vpack.c.b16 %v1348, %v1344
    %v1401 = vpack.c.b16 %v1349, %v1345
    %v1402 = vpack.c.b16 %v1350, %v1346
    %v1403 = vpack.c.b16 %v1351, %v1347
    %v1404 = vpack.c.b16 %v1356, %v1352
    %v1405 = vpack.c.b16 %v1357, %v1353
    %v1406 = vpack.c.b16 %v1358, %v1354
    %v1407 = vpack.c.b16 %v1359, %v1355
    %v1408 = vpack.c.b16 %v1364, %v1360
    %v1409 = vpack.c.b16 %v1365, %v1361
    %v1410 = vpack.c.b16 %v1366, %v1362
    %v1411 = vpack.c.b16 %v1367, %v1363
    %v1412 = vpack.c.b16 %v1372, %v1368
    %v1413 = vpack.c.b16 %v1373, %v1369
    %v1414 = vpack.c.b16 %v1374, %v1370
    %v1415 = vpack.c.b16 %v1375, %v1371
    %v1416 = vpack.c.b16 %v1380, %v1376
    %v1417 = vpack.c.b16 %v1381, %v1377
    %v1418 = vpack.c.b16 %v1382, %v1378
    %v1419 = vpack.c.b16 %v1383, %v1379
    %v1420 = vpack.c.b16 %v1388, %v1384
    %v1421 = vpack.c.b16 %v1389, %v1385
    %v1422 = vpack.c.b16 %v1390, %v1386
    %v1423 = vpack.c.b16 %v1391, %v1387
    %1456 = vmatprep.subr.bf16.mxu0 %v1393
    %1457 = vmatpush1.bf16.msra.mxu0 %v1392
    %1458 = vmatprep.subr.bf16.mxu0 %v1397
    %1459 = vmatpush1.bf16.msra.mxu0 %v1396
    %1460 = vmatprep.subr.bf16.mxu0 %v1401
    %1461 = vmatpush1.bf16.msra.mxu0 %v1400
    %1462 = vmatprep.subr.bf16.mxu0 %v1405
    %1463 = vmatpush1.bf16.msra.mxu0 %v1404
    %1464 = vmatprep.subr.bf16.mxu0 %v1409
    %1465 = vmatpush1.bf16.msra.mxu0 %v1408
    %1466 = vmatprep.subr.bf16.mxu0 %v1413
    %1467 = vmatpush1.bf16.msra.mxu0 %v1412
    %1468 = vmatprep.subr.bf16.mxu0 %v1417
    %1469 = vmatpush1.bf16.msra.mxu0 %v1416
    %1470 = vmatprep.subr.bf16.mxu0 %v1421
    %1471 = vmatpush1.bf16.msra.mxu0 %v1420
    %1472 = vmatprep.subr.bf16.mxu0 0
    %1473 = vmatpush1.bf16.msra.mxu0 0
    %1474 = vmatprep.subr.bf16.mxu0 0
    %1475 = vmatpush1.bf16.msra.mxu0 0
    %1476 = vmatprep.subr.bf16.mxu0 0
    %1477 = vmatpush1.bf16.msra.mxu0 0
    %1478 = vmatprep.subr.bf16.mxu0 0
    %1479 = vmatpush1.bf16.msra.mxu0 0
    %1480 = vmatprep.subr.bf16.mxu0 0
    %1481 = vmatpush1.bf16.msra.mxu0 0
    %1482 = vmatprep.subr.bf16.mxu0 0
    %1483 = vmatpush1.bf16.msra.mxu0 0
    %1484 = vmatprep.subr.bf16.mxu0 0
    %1485 = vmatpush1.bf16.msra.mxu0 0
    %1486 = vmatprep.subr.bf16.mxu0 0
    %1487 = vmatpush1.bf16.msra.mxu0 0
    %1488 = vmatprep.mubr.bf16.mxu0 0
    %1489 = vmatmul.mubr.bf16.gmra.mrb[0].mxu0 %v1273
    %v1490 = vpop.f32.mrb[0].mxu0
    %v1491 = vadd.f32 %v1279, %v1490
    %v1492 = vpop.f32.mrb[0].mxu0
    %v1493 = vadd.f32 %v1283, %v1492
    %v1494 = vpop.f32.mrb[0].mxu0
    %v1495 = vadd.f32 %v1279, %v1494
    %v1496 = vpop.f32.mrb[0].mxu0
    %v1497 = vadd.f32 %v1283, %v1496
    %1498 = vdwg.mxu0
    %1499 = vmatprep.subr.bf16.mxu0 %v1395
    %1500 = vmatpush1.bf16.msra.mxu0 %v1394
    %1501 = vmatprep.subr.bf16.mxu0 %v1399
    %1502 = vmatpush1.bf16.msra.mxu0 %v1398
    %1503 = vmatprep.subr.bf16.mxu0 %v1403
    %1504 = vmatpush1.bf16.msra.mxu0 %v1402
    %1505 = vmatprep.subr.bf16.mxu0 %v1407
    %1506 = vmatpush1.bf16.msra.mxu0 %v1406
    %1507 = vmatprep.subr.bf16.mxu0 %v1411
    %1508 = vmatpush1.bf16.msra.mxu0 %v1410
    %1509 = vmatprep.subr.bf16.mxu0 %v1415
    %1510 = vmatpush1.bf16.msra.mxu0 %v1414
    %1511 = vmatprep.subr.bf16.mxu0 %v1419
    %1512 = vmatpush1.bf16.msra.mxu0 %v1418
    %1513 = vmatprep.subr.bf16.mxu0 %v1423
    %1514 = vmatpush1.bf16.msra.mxu0 %v1422
    %1515 = vmatprep.subr.bf16.mxu0 0
    %1516 = vmatpush1.bf16.msra.mxu0 0
    %1517 = vmatprep.subr.bf16.mxu0 0
    %1518 = vmatpush1.bf16.msra.mxu0 0
    %1519 = vmatprep.subr.bf16.mxu0 0
    %1520 = vmatpush1.bf16.msra.mxu0 0
    %1521 = vmatprep.subr.bf16.mxu0 0
    %1522 = vmatpush1.bf16.msra.mxu0 0
    %1523 = vmatprep.subr.bf16.mxu0 0
    %1524 = vmatpush1.bf16.msra.mxu0 0
    %1525 = vmatprep.subr.bf16.mxu0 0
    %1526 = vmatpush1.bf16.msra.mxu0 0
    %1527 = vmatprep.subr.bf16.mxu0 0
    %1528 = vmatpush1.bf16.msra.mxu0 0
    %1529 = vmatprep.subr.bf16.mxu0 0
    %1530 = vmatpush1.bf16.msra.mxu0 0
    %1531 = vmatprep.mubr.bf16.mxu0 0
    %1532 = vmatmul.mubr.bf16.gmra.mrb[0].mxu0 %v1273
    %v1533 = vpop.f32.mrb[0].mxu0
    %v1534 = vadd.f32 %v1287, %v1533
    %v1535 = vpop.f32.mrb[0].mxu0
    %v1536 = vadd.f32 %v1291, %v1535
    %v1537 = vpop.f32.mrb[0].mxu0
    %v1538 = vadd.f32 %v1287, %v1537
    %v1539 = vpop.f32.mrb[0].mxu0
    %v1540 = vadd.f32 %v1291, %v1539
    %1541 = vdwg.mxu0
    %v1542 = vmul.f32 %v1491, %v1491
    %v1543 = vmul.f32 %v1493, %v1493
    %v1544 = vmul.f32 %v1534, %v1534
    %v1545 = vmul.f32 %v1536, %v1536
    %v1546 = vmul.f32 %v1495, %v1495
    %v1547 = vmul.f32 %v1497, %v1497
    %v1548 = vmul.f32 %v1538, %v1538
    %v1549 = vmul.f32 %v1540, %v1540
    %v1550 = vmul.f32 %v1491, %v1542
    %v1551 = vmul.f32 %v1493, %v1543
    %v1552 = vmul.f32 %v1534, %v1544
    %v1553 = vmul.f32 %v1536, %v1545
    %v1554 = vmul.f32 %v1495, %v1546
    %v1555 = vmul.f32 %v1497, %v1547
    %v1556 = vmul.f32 %v1538, %v1548
    %v1557 = vmul.f32 %v1540, %v1549
    %v1558 = vmul.f32 %v1550, 0.044715
    %v1559 = vmul.f32 %v1551, 0.044715
    %v1560 = vmul.f32 %v1552, 0.044715
    %v1561 = vmul.f32 %v1553, 0.044715
    %v1562 = vmul.f32 %v1554, 0.044715
    %v1563 = vmul.f32 %v1555, 0.044715
    %v1564 = vmul.f32 %v1556, 0.044715
    %v1565 = vmul.f32 %v1557, 0.044715
    %v1566 = vadd.f32 %v1491, %v1558
    %v1567 = vadd.f32 %v1493, %v1559
    %v1568 = vadd.f32 %v1534, %v1560
    %v1569 = vadd.f32 %v1536, %v1561
    %v1570 = vadd.f32 %v1495, %v1562
    %v1571 = vadd.f32 %v1497, %v1563
    %v1572 = vadd.f32 %v1538, %v1564
    %v1573 = vadd.f32 %v1540, %v1565
    %v1574 = vmul.f32 %v1566, 0.7978846
    %v1575 = vmul.f32 %v1567, 0.7978846
    %v1576 = vmul.f32 %v1568, 0.7978846
    %v1577 = vmul.f32 %v1569, 0.7978846
    %v1578 = vmul.f32 %v1570, 0.7978846
    %v1579 = vmul.f32 %v1571, 0.7978846
    %v1580 = vmul.f32 %v1572, 0.7978846
    %v1581 = vmul.f32 %v1573, 0.7978846
    %v1582 = vtanh.pop %v1574
    %v1583 = vtanh.pop %v1575
    %v1584 = vtanh.pop %v1576
    %v1585 = vtanh.pop %v1577
    %v1586 = vtanh.pop %v1578
    %v1587 = vtanh.pop %v1579
    %v1588 = vtanh.pop %v1580
    %v1589 = vtanh.pop %v1581
    %v1590 = vadd.f32 %v1582, 1.0
    %v1591 = vadd.f32 %v1583, 1.0
    %v1592 = vadd.f32 %v1584, 1.0
    %v1593 = vadd.f32 %v1585, 1.0
    %v1594 = vadd.f32 %v1586, 1.0
    %v1595 = vadd.f32 %v1587, 1.0
    %v1596 = vadd.f32 %v1588, 1.0
    %v1597 = vadd.f32 %v1589, 1.0
    %v1598 = vmul.f32 %v1590, 0.5
    %v1599 = vmul.f32 %v1591, 0.5
    %v1600 = vmul.f32 %v1592, 0.5
    %v1601 = vmul.f32 %v1593, 0.5
    %v1602 = vmul.f32 %v1594, 0.5
    %v1603 = vmul.f32 %v1595, 0.5
    %v1604 = vmul.f32 %v1596, 0.5
    %v1605 = vmul.f32 %v1597, 0.5
    %v1606 = vmul.f32 %v1491, %v1598
    %v1607 = vmul.f32 %v1493, %v1599
    %v1608 = vmul.f32 %v1534, %v1600
    %v1609 = vmul.f32 %v1536, %v1601
    %v1610 = vmul.f32 %v1495, %v1602
    %v1611 = vmul.f32 %v1497, %v1603
    %v1612 = vmul.f32 %v1538, %v1604
    %v1613 = vmul.f32 %v1540, %v1605
    %v1614 = vld [vmem:[#allocation7] sm:$0xf]
    %v1615 = vld [vmem:[#allocation7 + $0x4] sm:$0xf]
    %v1616 = vld [vmem:[#allocation7 + $0x8] sm:$0xf]
    %v1617 = vld [vmem:[#allocation7 + $0xc] sm:$0xf]
    %v1618 = vld [vmem:[#allocation7 + $0x10] sm:$0xf]
    %v1619 = vld [vmem:[#allocation7 + $0x14] sm:$0xf]
    %v1620 = vld [vmem:[#allocation7 + $0x18] sm:$0xf]
    %v1621 = vld [vmem:[#allocation7 + $0x1c] sm:$0xf]
    %v1622 = vld [vmem:[#allocation7 + $0x20] sm:$0xf]
    %v1623 = vld [vmem:[#allocation7 + $0x24] sm:$0xf]
    %v1624 = vld [vmem:[#allocation7 + $0x28] sm:$0xf]
    %v1625 = vld [vmem:[#allocation7 + $0x2c] sm:$0xf]
    %v1626 = vld [vmem:[#allocation7 + $0x30] sm:$0xf]
    %v1627 = vld [vmem:[#allocation7 + $0x34] sm:$0xf]
    %v1628 = vld [vmem:[#allocation7 + $0x38] sm:$0xf]
    %v1629 = vld [vmem:[#allocation7 + $0x3c] sm:$0xf]
    %v1630 = vld [vmem:[#allocation7 + $0x40] sm:$0xf]
    %v1631 = vld [vmem:[#allocation7 + $0x44] sm:$0xf]
    %v1632 = vld [vmem:[#allocation7 + $0x48] sm:$0xf]
    %v1633 = vld [vmem:[#allocation7 + $0x4c] sm:$0xf]
    %v1634 = vld [vmem:[#allocation7 + $0x50] sm:$0xf]
    %v1635 = vld [vmem:[#allocation7 + $0x54] sm:$0xf]
    %v1636 = vld [vmem:[#allocation7 + $0x58] sm:$0xf]
    %v1637 = vld [vmem:[#allocation7 + $0x5c] sm:$0xf]
    %v1638 = vld [vmem:[#allocation7 + $0x60] sm:$0xf]
    %v1639 = vld [vmem:[#allocation7 + $0x64] sm:$0xf]
    %v1640 = vld [vmem:[#allocation7 + $0x68] sm:$0xf]
    %v1641 = vld [vmem:[#allocation7 + $0x6c] sm:$0xf]
    %v1642 = vld [vmem:[#allocation7 + $0x70] sm:$0xf]
    %v1643 = vld [vmem:[#allocation7 + $0x74] sm:$0xf]
    %v1644 = vld [vmem:[#allocation7 + $0x78] sm:$0xf]
    %v1645 = vld [vmem:[#allocation7 + $0x7c] sm:$0xf]
    %v1646 = vld [vmem:[#allocation7 + $0x80] sm:$0xf]
    %v1647 = vld [vmem:[#allocation7 + $0x84] sm:$0xf]
    %v1648 = vld [vmem:[#allocation7 + $0x88] sm:$0xf]
    %v1649 = vld [vmem:[#allocation7 + $0x8c] sm:$0xf]
    %v1650 = vld [vmem:[#allocation7 + $0x90] sm:$0xf]
    %v1651 = vld [vmem:[#allocation7 + $0x94] sm:$0xf]
    %v1652 = vld [vmem:[#allocation7 + $0x98] sm:$0xf]
    %v1653 = vld [vmem:[#allocation7 + $0x9c] sm:$0xf]
    %v1654 = vld [vmem:[#allocation7 + $0xa0] sm:$0xf]
    %v1655 = vld [vmem:[#allocation7 + $0xa4] sm:$0xf]
    %v1656 = vld [vmem:[#allocation7 + $0xa8] sm:$0xf]
    %v1657 = vld [vmem:[#allocation7 + $0xac] sm:$0xf]
    %v1658 = vld [vmem:[#allocation7 + $0xb0] sm:$0xf]
    %v1659 = vld [vmem:[#allocation7 + $0xb4] sm:$0xf]
    %v1660 = vld [vmem:[#allocation7 + $0xb8] sm:$0xf]
    %v1661 = vld [vmem:[#allocation7 + $0xbc] sm:$0xf]
    %v1662 = vld [vmem:[#allocation7 + $0xc0] sm:$0xf]
    %v1663 = vld [vmem:[#allocation7 + $0xc4] sm:$0xf]
    %v1664 = vld [vmem:[#allocation7 + $0xc8] sm:$0xf]
    %v1665 = vld [vmem:[#allocation7 + $0xcc] sm:$0xf]
    %v1666 = vld [vmem:[#allocation7 + $0xd0] sm:$0xf]
    %v1667 = vld [vmem:[#allocation7 + $0xd4] sm:$0xf]
    %v1668 = vld [vmem:[#allocation7 + $0xd8] sm:$0xf]
    %v1669 = vld [vmem:[#allocation7 + $0xdc] sm:$0xf]
    %v1670 = vld [vmem:[#allocation7 + $0xe0] sm:$0xf]
    %v1671 = vld [vmem:[#allocation7 + $0xe4] sm:$0xf]
    %v1672 = vld [vmem:[#allocation7 + $0xe8] sm:$0xf]
    %v1673 = vld [vmem:[#allocation7 + $0xec] sm:$0xf]
    %v1674 = vld [vmem:[#allocation7 + $0xf0] sm:$0xf]
    %v1675 = vld [vmem:[#allocation7 + $0xf4] sm:$0xf]
    %v1676 = vld [vmem:[#allocation7 + $0xf8] sm:$0xf]
    %v1677 = vld [vmem:[#allocation7 + $0xfc] sm:$0xf]
    %v1678 = vpack.c.bf16 %v1610, %v1606
    %v1679 = vpack.c.bf16 %v1611, %v1607
    %v1680 = vpack.c.bf16 %v1612, %v1608
    %v1681 = vpack.c.bf16 %v1613, %v1609
    %v1682 = vld [vmem:[%s12] sm:$0x1]
    %v1684 = vlaneseq
    %v1685 = vshrl.u32 %v1684, 7
    %v1686 = vsub.s32 0, %v1685
    %v1687 = vrot.slane %v1682, %v1686
    %v1753 = vunpack.c.l.b16 %v1614
    %v1754 = vunpack.c.l.b16 %v1615
    %v1755 = vunpack.c.l.b16 %v1616
    %v1756 = vunpack.c.l.b16 %v1617
    %v1757 = vunpack.c.l.b16 %v1618
    %v1758 = vunpack.c.l.b16 %v1619
    %v1759 = vunpack.c.l.b16 %v1620
    %v1760 = vunpack.c.l.b16 %v1621
    %v1761 = vunpack.c.l.b16 %v1622
    %v1762 = vunpack.c.l.b16 %v1623
    %v1763 = vunpack.c.l.b16 %v1624
    %v1764 = vunpack.c.l.b16 %v1625
    %v1765 = vunpack.c.l.b16 %v1626
    %v1766 = vunpack.c.l.b16 %v1627
    %v1767 = vunpack.c.l.b16 %v1628
    %v1768 = vunpack.c.l.b16 %v1629
    %v1769 = vunpack.c.l.b16 %v1630
    %v1770 = vunpack.c.l.b16 %v1631
    %v1771 = vunpack.c.l.b16 %v1632
    %v1772 = vunpack.c.l.b16 %v1633
    %v1773 = vunpack.c.l.b16 %v1634
    %v1774 = vunpack.c.l.b16 %v1635
    %v1775 = vunpack.c.l.b16 %v1636
    %v1776 = vunpack.c.l.b16 %v1637
    %v1777 = vunpack.c.l.b16 %v1638
    %v1778 = vunpack.c.l.b16 %v1639
    %v1779 = vunpack.c.l.b16 %v1640
    %v1780 = vunpack.c.l.b16 %v1641
    %v1781 = vunpack.c.l.b16 %v1642
    %v1782 = vunpack.c.l.b16 %v1643
    %v1783 = vunpack.c.l.b16 %v1644
    %v1784 = vunpack.c.l.b16 %v1645
    %v1785 = vunpack.c.l.b16 %v1646
    %v1786 = vunpack.c.l.b16 %v1647
    %v1787 = vunpack.c.l.b16 %v1648
    %v1788 = vunpack.c.l.b16 %v1649
    %v1789 = vunpack.c.l.b16 %v1650
    %v1790 = vunpack.c.l.b16 %v1651
    %v1791 = vunpack.c.l.b16 %v1652
    %v1792 = vunpack.c.l.b16 %v1653
    %v1793 = vunpack.c.l.b16 %v1654
    %v1794 = vunpack.c.l.b16 %v1655
    %v1795 = vunpack.c.l.b16 %v1656
    %v1796 = vunpack.c.l.b16 %v1657
    %v1797 = vunpack.c.l.b16 %v1658
    %v1798 = vunpack.c.l.b16 %v1659
    %v1799 = vunpack.c.l.b16 %v1660
    %v1800 = vunpack.c.l.b16 %v1661
    %v1801 = vunpack.c.l.b16 %v1662
    %v1802 = vunpack.c.l.b16 %v1663
    %v1803 = vunpack.c.l.b16 %v1664
    %v1804 = vunpack.c.l.b16 %v1665
    %v1805 = vunpack.c.l.b16 %v1666
    %v1806 = vunpack.c.l.b16 %v1667
    %v1807 = vunpack.c.l.b16 %v1668
    %v1808 = vunpack.c.l.b16 %v1669
    %v1809 = vunpack.c.l.b16 %v1670
    %v1810 = vunpack.c.l.b16 %v1671
    %v1811 = vunpack.c.l.b16 %v1672
    %v1812 = vunpack.c.l.b16 %v1673
    %v1813 = vunpack.c.l.b16 %v1674
    %v1814 = vunpack.c.l.b16 %v1675
    %v1815 = vunpack.c.l.b16 %v1676
    %v1816 = vunpack.c.l.b16 %v1677
    %v1817 = vpack.c.b16 %v1754, %v1753
    %v1818 = vpack.c.b16 %v1756, %v1755
    %v1819 = vpack.c.b16 %v1758, %v1757
    %v1820 = vpack.c.b16 %v1760, %v1759
    %v1821 = vpack.c.b16 %v1762, %v1761
    %v1822 = vpack.c.b16 %v1764, %v1763
    %v1823 = vpack.c.b16 %v1766, %v1765
    %v1824 = vpack.c.b16 %v1768, %v1767
    %v1825 = vpack.c.b16 %v1770, %v1769
    %v1826 = vpack.c.b16 %v1772, %v1771
    %v1827 = vpack.c.b16 %v1774, %v1773
    %v1828 = vpack.c.b16 %v1776, %v1775
    %v1829 = vpack.c.b16 %v1778, %v1777
    %v1830 = vpack.c.b16 %v1780, %v1779
    %v1831 = vpack.c.b16 %v1782, %v1781
    %v1832 = vpack.c.b16 %v1784, %v1783
    %v1833 = vpack.c.b16 %v1786, %v1785
    %v1834 = vpack.c.b16 %v1788, %v1787
    %v1835 = vpack.c.b16 %v1790, %v1789
    %v1836 = vpack.c.b16 %v1792, %v1791
    %v1837 = vpack.c.b16 %v1794, %v1793
    %v1838 = vpack.c.b16 %v1796, %v1795
    %v1839 = vpack.c.b16 %v1798, %v1797
    %v1840 = vpack.c.b16 %v1800, %v1799
    %v1841 = vpack.c.b16 %v1802, %v1801
    %v1842 = vpack.c.b16 %v1804, %v1803
    %v1843 = vpack.c.b16 %v1806, %v1805
    %v1844 = vpack.c.b16 %v1808, %v1807
    %v1845 = vpack.c.b16 %v1810, %v1809
    %v1846 = vpack.c.b16 %v1812, %v1811
    %v1847 = vpack.c.b16 %v1814, %v1813
    %v1848 = vpack.c.b16 %v1816, %v1815
    %1881 = vmatprep.subr.bf16.mxu0 0
    %1882 = vmatpush1.bf16.msra.mxu0 %v1817
    %1883 = vmatprep.subr.bf16.mxu0 0
    %1884 = vmatpush1.bf16.msra.mxu0 %v1818
    %1885 = vmatprep.subr.bf16.mxu0 0
    %1886 = vmatpush1.bf16.msra.mxu0 %v1819
    %1887 = vmatprep.subr.bf16.mxu0 0
    %1888 = vmatpush1.bf16.msra.mxu0 %v1820
    %1889 = vmatprep.subr.bf16.mxu0 0
    %1890 = vmatpush1.bf16.msra.mxu0 %v1821
    %1891 = vmatprep.subr.bf16.mxu0 0
    %1892 = vmatpush1.bf16.msra.mxu0 %v1822
    %1893 = vmatprep.subr.bf16.mxu0 0
    %1894 = vmatpush1.bf16.msra.mxu0 %v1823
    %1895 = vmatprep.subr.bf16.mxu0 0
    %1896 = vmatpush1.bf16.msra.mxu0 %v1824
    %1897 = vmatprep.subr.bf16.mxu0 0
    %1898 = vmatpush1.bf16.msra.mxu0 %v1825
    %1899 = vmatprep.subr.bf16.mxu0 0
    %1900 = vmatpush1.bf16.msra.mxu0 %v1826
    %1901 = vmatprep.subr.bf16.mxu0 0
    %1902 = vmatpush1.bf16.msra.mxu0 %v1827
    %1903 = vmatprep.subr.bf16.mxu0 0
    %1904 = vmatpush1.bf16.msra.mxu0 %v1828
    %1905 = vmatprep.subr.bf16.mxu0 0
    %1906 = vmatpush1.bf16.msra.mxu0 %v1829
    %1907 = vmatprep.subr.bf16.mxu0 0
    %1908 = vmatpush1.bf16.msra.mxu0 %v1830
    %1909 = vmatprep.subr.bf16.mxu0 0
    %1910 = vmatpush1.bf16.msra.mxu0 %v1831
    %1911 = vmatprep.subr.bf16.mxu0 0
    %1912 = vmatpush1.bf16.msra.mxu0 %v1832
    %1913 = vmatprep.mubr.bf16.mxu0 %v1679
    %1914 = vmatmul.mubr.bf16.gmra.mrb[0].mxu0 %v1678
    %v1915 = vpop.f32.mrb[0].mxu0
    %v1916 = vadd.f32 %v1687, %v1915
    %v1917 = vpop.f32.mrb[0].mxu0
    %v1918 = vpop.f32.mrb[0].mxu0
    %v1919 = vadd.f32 %v1687, %v1918
    %v1920 = vpop.f32.mrb[0].mxu0
    %1921 = vdwg.mxu0
    %1922 = vmatprep.subr.bf16.mxu0 0
    %1923 = vmatpush1.bf16.msra.mxu0 %v1833
    %1924 = vmatprep.subr.bf16.mxu0 0
    %1925 = vmatpush1.bf16.msra.mxu0 %v1834
    %1926 = vmatprep.subr.bf16.mxu0 0
    %1927 = vmatpush1.bf16.msra.mxu0 %v1835
    %1928 = vmatprep.subr.bf16.mxu0 0
    %1929 = vmatpush1.bf16.msra.mxu0 %v1836
    %1930 = vmatprep.subr.bf16.mxu0 0
    %1931 = vmatpush1.bf16.msra.mxu0 %v1837
    %1932 = vmatprep.subr.bf16.mxu0 0
    %1933 = vmatpush1.bf16.msra.mxu0 %v1838
    %1934 = vmatprep.subr.bf16.mxu0 0
    %1935 = vmatpush1.bf16.msra.mxu0 %v1839
    %1936 = vmatprep.subr.bf16.mxu0 0
    %1937 = vmatpush1.bf16.msra.mxu0 %v1840
    %1938 = vmatprep.subr.bf16.mxu0 0
    %1939 = vmatpush1.bf16.msra.mxu0 %v1841
    %1940 = vmatprep.subr.bf16.mxu0 0
    %1941 = vmatpush1.bf16.msra.mxu0 %v1842
    %1942 = vmatprep.subr.bf16.mxu0 0
    %1943 = vmatpush1.bf16.msra.mxu0 %v1843
    %1944 = vmatprep.subr.bf16.mxu0 0
    %1945 = vmatpush1.bf16.msra.mxu0 %v1844
    %1946 = vmatprep.subr.bf16.mxu0 0
    %1947 = vmatpush1.bf16.msra.mxu0 %v1845
    %1948 = vmatprep.subr.bf16.mxu0 0
    %1949 = vmatpush1.bf16.msra.mxu0 %v1846
    %1950 = vmatprep.subr.bf16.mxu0 0
    %1951 = vmatpush1.bf16.msra.mxu0 %v1847
    %1952 = vmatprep.subr.bf16.mxu0 0
    %1953 = vmatpush1.bf16.msra.mxu0 %v1848
    %1954 = vmatprep.mubr.bf16.mxu0 %v1681
    %1955 = vmatmul.mubr.bf16.gmra.mrb[0].mxu0 %v1680
    %v1956 = vpop.f32.mrb[0].mxu0
    %v1957 = vadd.f32 %v1916, %v1956
    %v1958 = vpop.f32.mrb[0].mxu0
    %v1959 = vpop.f32.mrb[0].mxu0
    %v1960 = vadd.f32 %v1919, %v1959
    %v1961 = vpop.f32.mrb[0].mxu0
    %1962 = vdwg.mxu0
    %v1963 = vadd.f32 %v1957, %v1239
    %v1964 = vadd.f32 %v1960, %v1240
    %v1965 = vld [vmem:[%s13] sm:$0x1]
    %v1966 = vld [vmem:[%s14] sm:$0x1]
    %1967 = vadd.xlane.f32.xlu0 %v1963
    %v1968 = vpop.xlane.xlu0 %1967
    %1969 = vadd.xlane.f32.xlu0 %v1964
    %v1970 = vpop.xlane.xlu0 %1969
    %v1971 = vmul.f32 %v1968, %v126
    %v1972 = vmul.f32 %v1970, %v126
    %v1973 = vsub.f32 %v1963, %v1971
    %v1974 = vsub.f32 %v1964, %v1972
    %v1975 = vmul.f32 %v1973, %v1973
    %v1976 = vmul.f32 %v1974, %v1974
    %1977 = vadd.xlane.f32.xlu0 %v1975
    %v1978 = vpop.xlane.xlu0 %1977
    %1979 = vadd.xlane.f32.xlu0 %v1976
    %v1980 = vpop.xlane.xlu0 %1979
    %v1981 = vmul.f32 %v1978, %v126
    %v1982 = vmul.f32 %v1980, %v126
    %v1983 = vadd.f32 %v1981, 1e-12
    %v1984 = vadd.f32 %v1982, 1e-12
    %v1985 = vrsqrt.pop %v1983
    %v1986 = vrsqrt.pop %v1984
    %v1987 = vmul.f32 %v1973, %v1985
    %v1988 = vmul.f32 %v1974, %v1986
    %v1990 = vlaneseq
    %v1991 = vshrl.u32 %v1990, 7
    %v1992 = vsub.s32 0, %v1991
    %v1993 = vrot.slane %v1965, %v1992
    %v1995 = vmul.f32 %v1987, %v1993
    %v1996 = vmul.f32 %v1988, %v1993
    %v1998 = vlaneseq
    %v1999 = vshrl.u32 %v1998, 7
    %v2000 = vsub.s32 0, %v1999
    %v2001 = vrot.slane %v1966, %v2000
    %v2003 = vadd.f32 %v1995, %v2001
    %v2004 = vadd.f32 %v1996, %v2001
    %s2005 = scalar_lea.vmem [#allocation2], 384
    %v2006 = vld [vmem:[%s2005] sm:$0xff]
    %v2007 = vld [vmem:[%s2005 + $0x8] sm:$0xff]
    %v2008 = vld [vmem:[%s2005 + $0x10] sm:$0xff]
    %v2009 = vld [vmem:[%s2005 + $0x18] sm:$0xff]
    %v2010 = vld [vmem:[%s2005 + $0x20] sm:$0xff]
    %v2011 = vld [vmem:[%s2005 + $0x28] sm:$0xff]
    %v2012 = vld [vmem:[%s2005 + $0x30] sm:$0xff]
    %v2013 = vld [vmem:[%s2005 + $0x38] sm:$0xff]
    %v2014 = vld [vmem:[%s2005 + $0x40] sm:$0xff]
    %v2015 = vld [vmem:[%s2005 + $0x48] sm:$0xff]
    %v2016 = vld [vmem:[%s2005 + $0x50] sm:$0xff]
    %v2017 = vld [vmem:[%s2005 + $0x58] sm:$0xff]
    %v2018 = vld [vmem:[%s2005 + $0x60] sm:$0xff]
    %v2019 = vld [vmem:[%s2005 + $0x68] sm:$0xff]
    %v2020 = vld [vmem:[%s2005 + $0x70] sm:$0xff]
    %v2021 = vld [vmem:[%s2005 + $0x78] sm:$0xff]
    %v2022 = vld [vmem:[%s2005 + $0x80] sm:$0xff]
    %v2023 = vld [vmem:[%s2005 + $0x88] sm:$0xff]
    %v2024 = vld [vmem:[%s2005 + $0x90] sm:$0xff]
    %v2025 = vld [vmem:[%s2005 + $0x98] sm:$0xff]
    %v2026 = vld [vmem:[%s2005 + $0xa0] sm:$0xff]
    %v2027 = vld [vmem:[%s2005 + $0xa8] sm:$0xff]
    %v2028 = vld [vmem:[%s2005 + $0xb0] sm:$0xff]
    %v2029 = vld [vmem:[%s2005 + $0xb8] sm:$0xff]
    %v2030 = vld [vmem:[%s2005 + $0xc0] sm:$0xff]
    %v2031 = vld [vmem:[%s2005 + $0xc8] sm:$0xff]
    %v2032 = vld [vmem:[%s2005 + $0xd0] sm:$0xff]
    %v2033 = vld [vmem:[%s2005 + $0xd8] sm:$0xff]
    %v2034 = vld [vmem:[%s2005 + $0xe0] sm:$0xff]
    %v2035 = vld [vmem:[%s2005 + $0xe8] sm:$0xff]
    %v2036 = vld [vmem:[%s2005 + $0xf0] sm:$0xff]
    %v2037 = vld [vmem:[%s2005 + $0xf8] sm:$0xff]
    %v2038 = vld [vmem:[%s2005 + $0x100] sm:$0xff]
    %v2039 = vld [vmem:[%s2005 + $0x108] sm:$0xff]
    %v2040 = vld [vmem:[%s2005 + $0x110] sm:$0xff]
    %v2041 = vld [vmem:[%s2005 + $0x118] sm:$0xff]
    %v2042 = vld [vmem:[%s2005 + $0x120] sm:$0xff]
    %v2043 = vld [vmem:[%s2005 + $0x128] sm:$0xff]
    %v2044 = vld [vmem:[%s2005 + $0x130] sm:$0xff]
    %v2045 = vld [vmem:[%s2005 + $0x138] sm:$0xff]
    %v2046 = vld [vmem:[%s2005 + $0x140] sm:$0xff]
    %v2047 = vld [vmem:[%s2005 + $0x148] sm:$0xff]
    %v2048 = vld [vmem:[%s2005 + $0x150] sm:$0xff]
    %v2049 = vld [vmem:[%s2005 + $0x158] sm:$0xff]
    %v2050 = vld [vmem:[%s2005 + $0x160] sm:$0xff]
    %v2051 = vld [vmem:[%s2005 + $0x168] sm:$0xff]
    %v2052 = vld [vmem:[%s2005 + $0x170] sm:$0xff]
    %v2053 = vld [vmem:[%s2005 + $0x178] sm:$0xff]
    %v2054 = vpack.c.bf16 %v2004, %v2003
    %s2055 = scalar_lea.vmem %s4, 6
    %v2056 = vld [vmem:[%s2055] sm:$0x3f]
    %v2058 = vlaneseq
    %v2059 = vshrl.u32 %v2058, 7
    %v2060 = vsub.s32 0, %v2059
    %v2061 = vrot.slane %v2056, %v2060
    %v2062 = vlaneseq
    %v2063 = vshrl.u32 %v2062, 7
    %v2064 = vsub.s32 1, %v2063
    %v2065 = vrot.slane %v2056, %v2064
    %v2066 = vlaneseq
    %v2067 = vshrl.u32 %v2066, 7
    %v2068 = vsub.s32 2, %v2067
    %v2069 = vrot.slane %v2056, %v2068
    %v2070 = vlaneseq
    %v2071 = vshrl.u32 %v2070, 7
    %v2072 = vsub.s32 3, %v2071
    %v2073 = vrot.slane %v2056, %v2072
    %v2074 = vlaneseq
    %v2075 = vshrl.u32 %v2074, 7
    %v2076 = vsub.s32 4, %v2075
    %v2077 = vrot.slane %v2056, %v2076
    %v2078 = vlaneseq
    %v2079 = vshrl.u32 %v2078, 7
    %v2080 = vsub.s32 5, %v2079
    %v2081 = vrot.slane %v2056, %v2080
    %v2136 = vunpack.c.l.b16 %v2006
    %v2137 = vunpack.c.h.b16 %v2006
    %v2138 = vunpack.c.l.b16 %v2007
    %v2139 = vunpack.c.h.b16 %v2007
    %v2140 = vunpack.c.l.b16 %v2008
    %v2141 = vunpack.c.h.b16 %v2008
    %v2142 = vunpack.c.l.b16 %v2009
    %v2143 = vunpack.c.h.b16 %v2009
    %v2144 = vunpack.c.l.b16 %v2010
    %v2145 = vunpack.c.h.b16 %v2010
    %v2146 = vunpack.c.l.b16 %v2011
    %v2147 = vunpack.c.h.b16 %v2011
    %v2148 = vunpack.c.l.b16 %v2012
    %v2149 = vunpack.c.h.b16 %v2012
    %v2150 = vunpack.c.l.b16 %v2013
    %v2151 = vunpack.c.h.b16 %v2013
    %v2152 = vunpack.c.l.b16 %v2014
    %v2153 = vunpack.c.h.b16 %v2014
    %v2154 = vunpack.c.l.b16 %v2015
    %v2155 = vunpack.c.h.b16 %v2015
    %v2156 = vunpack.c.l.b16 %v2016
    %v2157 = vunpack.c.h.b16 %v2016
    %v2158 = vunpack.c.l.b16 %v2017
    %v2159 = vunpack.c.h.b16 %v2017
    %v2160 = vunpack.c.l.b16 %v2018
    %v2161 = vunpack.c.h.b16 %v2018
    %v2162 = vunpack.c.l.b16 %v2019
    %v2163 = vunpack.c.h.b16 %v2019
    %v2164 = vunpack.c.l.b16 %v2020
    %v2165 = vunpack.c.h.b16 %v2020
    %v2166 = vunpack.c.l.b16 %v2021
    %v2167 = vunpack.c.h.b16 %v2021
    %v2168 = vunpack.c.l.b16 %v2022
    %v2169 = vunpack.c.h.b16 %v2022
    %v2170 = vunpack.c.l.b16 %v2023
    %v2171 = vunpack.c.h.b16 %v2023
    %v2172 = vunpack.c.l.b16 %v2024
    %v2173 = vunpack.c.h.b16 %v2024
    %v2174 = vunpack.c.l.b16 %v2025
    %v2175 = vunpack.c.h.b16 %v2025
    %v2176 = vunpack.c.l.b16 %v2026
    %v2177 = vunpack.c.h.b16 %v2026
    %v2178 = vunpack.c.l.b16 %v2027
    %v2179 = vunpack.c.h.b16 %v2027
    %v2180 = vunpack.c.l.b16 %v2028
    %v2181 = vunpack.c.h.b16 %v2028
    %v2182 = vunpack.c.l.b16 %v2029
    %v2183 = vunpack.c.h.b16 %v2029
    %v2184 = vunpack.c.l.b16 %v2030
    %v2185 = vunpack.c.h.b16 %v2030
    %v2186 = vunpack.c.l.b16 %v2031
    %v2187 = vunpack.c.h.b16 %v2031
    %v2188 = vunpack.c.l.b16 %v2032
    %v2189 = vunpack.c.h.b16 %v2032
    %v2190 = vunpack.c.l.b16 %v2033
    %v2191 = vunpack.c.h.b16 %v2033
    %v2192 = vunpack.c.l.b16 %v2034
    %v2193 = vunpack.c.h.b16 %v2034
    %v2194 = vunpack.c.l.b16 %v2035
    %v2195 = vunpack.c.h.b16 %v2035
    %v2196 = vunpack.c.l.b16 %v2036
    %v2197 = vunpack.c.h.b16 %v2036
    %v2198 = vunpack.c.l.b16 %v2037
    %v2199 = vunpack.c.h.b16 %v2037
    %v2200 = vunpack.c.l.b16 %v2038
    %v2201 = vunpack.c.h.b16 %v2038
    %v2202 = vunpack.c.l.b16 %v2039
    %v2203 = vunpack.c.h.b16 %v2039
    %v2204 = vunpack.c.l.b16 %v2040
    %v2205 = vunpack.c.h.b16 %v2040
    %v2206 = vunpack.c.l.b16 %v2041
    %v2207 = vunpack.c.h.b16 %v2041
    %v2208 = vunpack.c.l.b16 %v2042
    %v2209 = vunpack.c.h.b16 %v2042
    %v2210 = vunpack.c.l.b16 %v2043
    %v2211 = vunpack.c.h.b16 %v2043
    %v2212 = vunpack.c.l.b16 %v2044
    %v2213 = vunpack.c.h.b16 %v2044
    %v2214 = vunpack.c.l.b16 %v2045
    %v2215 = vunpack.c.h.b16 %v2045
    %v2216 = vunpack.c.l.b16 %v2046
    %v2217 = vunpack.c.h.b16 %v2046
    %v2218 = vunpack.c.l.b16 %v2047
    %v2219 = vunpack.c.h.b16 %v2047
    %v2220 = vunpack.c.l.b16 %v2048
    %v2221 = vunpack.c.h.b16 %v2048
    %v2222 = vunpack.c.l.b16 %v2049
    %v2223 = vunpack.c.h.b16 %v2049
    %v2224 = vunpack.c.l.b16 %v2050
    %v2225 = vunpack.c.h.b16 %v2050
    %v2226 = vunpack.c.l.b16 %v2051
    %v2227 = vunpack.c.h.b16 %v2051
    %v2228 = vunpack.c.l.b16 %v2052
    %v2229 = vunpack.c.h.b16 %v2052
    %v2230 = vunpack.c.l.b16 %v2053
    %v2231 = vunpack.c.h.b16 %v2053
    %v2232 = vpack.c.b16 %v2142, %v2136
    %v2233 = vpack.c.b16 %v2143, %v2137
    %v2234 = vpack.c.b16 %v2144, %v2138
    %v2235 = vpack.c.b16 %v2145, %v2139
    %v2236 = vpack.c.b16 %v2146, %v2140
    %v2237 = vpack.c.b16 %v2147, %v2141
    %v2238 = vpack.c.b16 %v2154, %v2148
    %v2239 = vpack.c.b16 %v2155, %v2149
    %v2240 = vpack.c.b16 %v2156, %v2150
    %v2241 = vpack.c.b16 %v2157, %v2151
    %v2242 = vpack.c.b16 %v2158, %v2152
    %v2243 = vpack.c.b16 %v2159, %v2153
    %v2244 = vpack.c.b16 %v2166, %v2160
    %v2245 = vpack.c.b16 %v2167, %v2161
    %v2246 = vpack.c.b16 %v2168, %v2162
    %v2247 = vpack.c.b16 %v2169, %v2163
    %v2248 = vpack.c.b16 %v2170, %v2164
    %v2249 = vpack.c.b16 %v2171, %v2165
    %v2250 = vpack.c.b16 %v2178, %v2172
    %v2251 = vpack.c.b16 %v2179, %v2173
    %v2252 = vpack.c.b16 %v2180, %v2174
    %v2253 = vpack.c.b16 %v2181, %v2175
    %v2254 = vpack.c.b16 %v2182, %v2176
    %v2255 = vpack.c.b16 %v2183, %v2177
    %v2256 = vpack.c.b16 %v2190, %v2184
    %v2257 = vpack.c.b16 %v2191, %v2185
    %v2258 = vpack.c.b16 %v2192, %v2186
    %v2259 = vpack.c.b16 %v2193, %v2187
    %v2260 = vpack.c.b16 %v2194, %v2188
    %v2261 = vpack.c.b16 %v2195, %v2189
    %v2262 = vpack.c.b16 %v2202, %v2196
    %v2263 = vpack.c.b16 %v2203, %v2197
    %v2264 = vpack.c.b16 %v2204, %v2198
    %v2265 = vpack.c.b16 %v2205, %v2199
    %v2266 = vpack.c.b16 %v2206, %v2200
    %v2267 = vpack.c.b16 %v2207, %v2201
    %v2268 = vpack.c.b16 %v2214, %v2208
    %v2269 = vpack.c.b16 %v2215, %v2209
    %v2270 = vpack.c.b16 %v2216, %v2210
    %v2271 = vpack.c.b16 %v2217, %v2211
    %v2272 = vpack.c.b16 %v2218, %v2212
    %v2273 = vpack.c.b16 %v2219, %v2213
    %v2274 = vpack.c.b16 %v2226, %v2220
    %v2275 = vpack.c.b16 %v2227, %v2221
    %v2276 = vpack.c.b16 %v2228, %v2222
    %v2277 = vpack.c.b16 %v2229, %v2223
    %v2278 = vpack.c.b16 %v2230, %v2224
    %v2279 = vpack.c.b16 %v2231, %v2225
    %2328 = vmatprep.subr.bf16.mxu0 %v2233
    %2329 = vmatpush1.bf16.msra.mxu0 %v2232
    %2330 = vmatprep.subr.bf16.mxu0 %v2239
    %2331 = vmatpush1.bf16.msra.mxu0 %v2238
    %2332 = vmatprep.subr.bf16.mxu0 %v2245
    %2333 = vmatpush1.bf16.msra.mxu0 %v2244
    %2334 = vmatprep.subr.bf16.mxu0 %v2251
    %2335 = vmatpush1.bf16.msra.mxu0 %v2250
    %2336 = vmatprep.subr.bf16.mxu0 %v2257
    %2337 = vmatpush1.bf16.msra.mxu0 %v2256
    %2338 = vmatprep.subr.bf16.mxu0 %v2263
    %2339 = vmatpush1.bf16.msra.mxu0 %v2262
    %2340 = vmatprep.subr.bf16.mxu0 %v2269
    %2341 = vmatpush1.bf16.msra.mxu0 %v2268
    %2342 = vmatprep.subr.bf16.mxu0 %v2275
    %2343 = vmatpush1.bf16.msra.mxu0 %v2274
    %2344 = vmatprep.subr.bf16.mxu0 0
    %2345 = vmatpush1.bf16.msra.mxu0 0
    %2346 = vmatprep.subr.bf16.mxu0 0
    %2347 = vmatpush1.bf16.msra.mxu0 0
    %2348 = vmatprep.subr.bf16.mxu0 0
    %2349 = vmatpush1.bf16.msra.mxu0 0
    %2350 = vmatprep.subr.bf16.mxu0 0
    %2351 = vmatpush1.bf16.msra.mxu0 0
    %2352 = vmatprep.subr.bf16.mxu0 0
    %2353 = vmatpush1.bf16.msra.mxu0 0
    %2354 = vmatprep.subr.bf16.mxu0 0
    %2355 = vmatpush1.bf16.msra.mxu0 0
    %2356 = vmatprep.subr.bf16.mxu0 0
    %2357 = vmatpush1.bf16.msra.mxu0 0
    %2358 = vmatprep.subr.bf16.mxu0 0
    %2359 = vmatpush1.bf16.msra.mxu0 0
    %2360 = vmatprep.mubr.bf16.mxu0 0
    %2361 = vmatmul.mubr.bf16.gmra.mrb[0].mxu0 %v2054
    %v2362 = vpop.f32.mrb[0].mxu0
    %v2363 = vadd.f32 %v2061, %v2362
    %v2364 = vpop.f32.mrb[0].mxu0
    %v2365 = vadd.f32 %v2065, %v2364
    %v2366 = vpop.f32.mrb[0].mxu0
    %v2367 = vadd.f32 %v2061, %v2366
    %v2368 = vpop.f32.mrb[0].mxu0
    %v2369 = vadd.f32 %v2065, %v2368
    %2370 = vdwg.mxu0
    %2371 = vmatprep.subr.bf16.mxu0 %v2235
    %2372 = vmatpush1.bf16.msra.mxu0 %v2234
    %2373 = vmatprep.subr.bf16.mxu0 %v2241
    %2374 = vmatpush1.bf16.msra.mxu0 %v2240
    %2375 = vmatprep.subr.bf16.mxu0 %v2247
    %2376 = vmatpush1.bf16.msra.mxu0 %v2246
    %2377 = vmatprep.subr.bf16.mxu0 %v2253
    %2378 = vmatpush1.bf16.msra.mxu0 %v2252
    %2379 = vmatprep.subr.bf16.mxu0 %v2259
    %2380 = vmatpush1.bf16.msra.mxu0 %v2258
    %2381 = vmatprep.subr.bf16.mxu0 %v2265
    %2382 = vmatpush1.bf16.msra.mxu0 %v2264
    %2383 = vmatprep.subr.bf16.mxu0 %v2271
    %2384 = vmatpush1.bf16.msra.mxu0 %v2270
    %2385 = vmatprep.subr.bf16.mxu0 %v2277
    %2386 = vmatpush1.bf16.msra.mxu0 %v2276
    %2387 = vmatprep.subr.bf16.mxu0 0
    %2388 = vmatpush1.bf16.msra.mxu0 0
    %2389 = vmatprep.subr.bf16.mxu0 0
    %2390 = vmatpush1.bf16.msra.mxu0 0
    %2391 = vmatprep.subr.bf16.mxu0 0
    %2392 = vmatpush1.bf16.msra.mxu0 0
    %2393 = vmatprep.subr.bf16.mxu0 0
    %2394 = vmatpush1.bf16.msra.mxu0 0
    %2395 = vmatprep.subr.bf16.mxu0 0
    %2396 = vmatpush1.bf16.msra.mxu0 0
    %2397 = vmatprep.subr.bf16.mxu0 0
    %2398 = vmatpush1.bf16.msra.mxu0 0
    %2399 = vmatprep.subr.bf16.mxu0 0
    %2400 = vmatpush1.bf16.msra.mxu0 0
    %2401 = vmatprep.subr.bf16.mxu0 0
    %2402 = vmatpush1.bf16.msra.mxu0 0
    %2403 = vmatprep.mubr.bf16.mxu0 0
    %2404 = vmatmul.mubr.bf16.gmra.mrb[0].mxu0 %v2054
    %v2405 = vpop.f32.mrb[0].mxu0
    %v2406 = vadd.f32 %v2069, %v2405
    %v2407 = vpop.f32.mrb[0].mxu0
    %v2408 = vadd.f32 %v2073, %v2407
    %v2409 = vpop.f32.mrb[0].mxu0
    %v2410 = vadd.f32 %v2069, %v2409
    %v2411 = vpop.f32.mrb[0].mxu0
    %v2412 = vadd.f32 %v2073, %v2411
    %2413 = vdwg.mxu0
    %2414 = vmatprep.subr.bf16.mxu0 %v2237
    %2415 = vmatpush1.bf16.msra.mxu0 %v2236
    %2416 = vmatprep.subr.bf16.mxu0 %v2243
    %2417 = vmatpush1.bf16.msra.mxu0 %v2242
    %2418 = vmatprep.subr.bf16.mxu0 %v2249
    %2419 = vmatpush1.bf16.msra.mxu0 %v2248
    %2420 = vmatprep.subr.bf16.mxu0 %v2255
    %2421 = vmatpush1.bf16.msra.mxu0 %v2254
    %2422 = vmatprep.subr.bf16.mxu0 %v2261
    %2423 = vmatpush1.bf16.msra.mxu0 %v2260
    %2424 = vmatprep.subr.bf16.mxu0 %v2267
    %2425 = vmatpush1.bf16.msra.mxu0 %v2266
    %2426 = vmatprep.subr.bf16.mxu0 %v2273
    %2427 = vmatpush1.bf16.msra.mxu0 %v2272
    %2428 = vmatprep.subr.bf16.mxu0 %v2279
    %2429 = vmatpush1.bf16.msra.mxu0 %v2278
    %2430 = vmatprep.subr.bf16.mxu0 0
    %2431 = vmatpush1.bf16.msra.mxu0 0
    %2432 = vmatprep.subr.bf16.mxu0 0
    %2433 = vmatpush1.bf16.msra.mxu0 0
    %2434 = vmatprep.subr.bf16.mxu0 0
    %2435 = vmatpush1.bf16.msra.mxu0 0
    %2436 = vmatprep.subr.bf16.mxu0 0
    %2437 = vmatpush1.bf16.msra.mxu0 0
    %2438 = vmatprep.subr.bf16.mxu0 0
    %2439 = vmatpush1.bf16.msra.mxu0 0
    %2440 = vmatprep.subr.bf16.mxu0 0
    %2441 = vmatpush1.bf16.msra.mxu0 0
    %2442 = vmatprep.subr.bf16.mxu0 0
    %2443 = vmatpush1.bf16.msra.mxu0 0
    %2444 = vmatprep.subr.bf16.mxu0 0
    %2445 = vmatpush1.bf16.msra.mxu0 0
    %2446 = vmatprep.mubr.bf16.mxu0 0
    %2447 = vmatmul.mubr.bf16.gmra.mrb[0].mxu0 %v2054
    %v2448 = vpop.f32.mrb[0].mxu0
    %v2449 = vadd.f32 %v2077, %v2448
    %v2450 = vpop.f32.mrb[0].mxu0
    %v2451 = vadd.f32 %v2081, %v2450
    %v2452 = vpop.f32.mrb[0].mxu0
    %v2453 = vadd.f32 %v2077, %v2452
    %v2454 = vpop.f32.mrb[0].mxu0
    %v2455 = vadd.f32 %v2081, %v2454
    %2456 = vdwg.mxu0
    %v2457 = vpack.c.bf16 %v2363, %v2363
    %v2458 = vpack.c.bf16 %v2406, %v2406
    %2459 = vmatprep.subr.bf16.mxu0 0
    %2460 = vmatpush1.bf16.xpose.msra.mxu0 %v2458
    %2461 = vmatprep.subr.bf16.mxu0 0
    %2462 = vmatpush1.bf16.xpose.msra.mxu0 0
    %2463 = vmatprep.subr.bf16.mxu0 0
    %2464 = vmatpush1.bf16.xpose.msra.mxu0 0
    %2465 = vmatprep.subr.bf16.mxu0 0
    %2466 = vmatpush1.bf16.xpose.msra.mxu0 0
    %2467 = vmatprep.subr.bf16.mxu0 0
    %2468 = vmatpush1.bf16.xpose.msra.mxu0 0
    %2469 = vmatprep.subr.bf16.mxu0 0
    %2470 = vmatpush1.bf16.xpose.msra.mxu0 0
    %2471 = vmatprep.subr.bf16.mxu0 0
    %2472 = vmatpush1.bf16.xpose.msra.mxu0 0
    %2473 = vmatprep.subr.bf16.mxu0 0
    %2474 = vmatpush1.bf16.xpose.msra.mxu0 0
    %2475 = vmatprep.subr.bf16.mxu0 0
    %2476 = vmatpush1.bf16.xpose.msra.mxu0 0
    %2477 = vmatprep.subr.bf16.mxu0 0
    %2478 = vmatpush1.bf16.xpose.msra.mxu0 0
    %2479 = vmatprep.subr.bf16.mxu0 0
    %2480 = vmatpush1.bf16.xpose.msra.mxu0 0
    %2481 = vmatprep.subr.bf16.mxu0 0
    %2482 = vmatpush1.bf16.xpose.msra.mxu0 0
    %2483 = vmatprep.subr.bf16.mxu0 0
    %2484 = vmatpush1.bf16.xpose.msra.mxu0 0
    %2485 = vmatprep.subr.bf16.mxu0 0
    %2486 = vmatpush1.bf16.xpose.msra.mxu0 0
    %2487 = vmatprep.subr.bf16.mxu0 0
    %2488 = vmatpush1.bf16.xpose.msra.mxu0 0
    %2489 = vmatprep.subr.bf16.mxu0 0
    %2490 = vmatpush1.bf16.xpose.msra.mxu0 0
    %2491 = vmatprep.mubr.bf16.mxu0 0
    %2492 = vmatmul.mubr.bf16.gmra.mrb[0].mxu0 %v2457
    %v2493 = vpop.f32.mrb[0].mxu0
    %v2494 = vadd.f32 0.0, %v2493
    %v2495 = vpop.f32.mrb[0].mxu0
    %v2496 = vpop.f32.mrb[0].mxu0
    %v2497 = vpop.f32.mrb[0].mxu0
    %2498 = vdwg.mxu0
    %v2499 = vmul.f32 %v2494, 0.125
    %v2500 = vsel %vm654, %v2499, -inf
    %2501 = vmax.xlane.f32.xlu0 %v2500
    %v2502 = vpop.xlane.xlu0 %2501
    %v2503 = vsub.f32 %v2499, %v2502
    %v2504 = vmul.f32 %v2503, 1.442695
    %v2505 = vpow.pop %v2504
    %v2506 = vsel %vm654, %v2505, 0.0
    %2507 = vadd.xlane.f32.xlu0 %v2506
    %v2508 = vpop.xlane.xlu0 %2507
    %v2509 = vrcp.pop %v2508
    %v2510 = vmul.f32 %v2505, %v2509
    %v2511 = vpack.c.bf16 %v2510, %v2510
    %v2512 = vpack.c.bf16 %v2449, %v2449
    %v2514 = vsel %vm654, %v2511, 0
    %v2517 = vsel %vm671, %v2512, 0
    %2519 = vmatprep.subr.bf16.mxu0 0
    %2520 = vmatpush1.bf16.msra.mxu0 %v2517
    %2521 = vmatprep.subr.bf16.mxu0 0
    %2522 = vmatpush1.bf16.msra.mxu0 0
    %2523 = vmatprep.subr.bf16.mxu0 0
    %2524 = vmatpush1.bf16.msra.mxu0 0
    %2525 = vmatprep.subr.bf16.mxu0 0
    %2526 = vmatpush1.bf16.msra.mxu0 0
    %2527 = vmatprep.subr.bf16.mxu0 0
    %2528 = vmatpush1.bf16.msra.mxu0 0
    %2529 = vmatprep.subr.bf16.mxu0 0
    %2530 = vmatpush1.bf16.msra.mxu0 0
    %2531 = vmatprep.subr.bf16.mxu0 0
    %2532 = vmatpush1.bf16.msra.mxu0 0
    %2533 = vmatprep.subr.bf16.mxu0 0
    %2534 = vmatpush1.bf16.msra.mxu0 0
    %2535 = vmatprep.subr.bf16.mxu0 0
    %2536 = vmatpush1.bf16.msra.mxu0 0
    %2537 = vmatprep.subr.bf16.mxu0 0
    %2538 = vmatpush1.bf16.msra.mxu0 0
    %2539 = vmatprep.subr.bf16.mxu0 0
    %2540 = vmatpush1.bf16.msra.mxu0 0
    %2541 = vmatprep.subr.bf16.mxu0 0
    %2542 = vmatpush1.bf16.msra.mxu0 0
    %2543 = vmatprep.subr.bf16.mxu0 0
    %2544 = vmatpush1.bf16.msra.mxu0 0
    %2545 = vmatprep.subr.bf16.mxu0 0
    %2546 = vmatpush1.bf16.msra.mxu0 0
    %2547 = vmatprep.subr.bf16.mxu0 0
    %2548 = vmatpush1.bf16.msra.mxu0 0
    %2549 = vmatprep.subr.bf16.mxu0 0
    %2550 = vmatpush1.bf16.msra.mxu0 0
    %2551 = vmatprep.mubr.bf16.mxu0 0
    %2552 = vmatmul.mubr.bf16.gmra.mrb[0].mxu0 %v2514
    %v2553 = vpop.f32.mrb[0].mxu0
    %v2554 = vadd.f32 0.0, %v2553
    %v2555 = vpop.f32.mrb[0].mxu0
    %v2556 = vpop.f32.mrb[0].mxu0
    %v2557 = vpop.f32.mrb[0].mxu0
    %2558 = vdwg.mxu0
    %v2559 = vpack.c.bf16 %v2365, %v2365
    %v2560 = vpack.c.bf16 %v2408, %v2408
    %2561 = vmatprep.subr.bf16.mxu0 0
    %2562 = vmatpush1.bf16.xpose.msra.mxu0 %v2560
    %2563 = vmatprep.subr.bf16.mxu0 0
    %2564 = vmatpush1.bf16.xpose.msra.mxu0 0
    %2565 = vmatprep.subr.bf16.mxu0 0
    %2566 = vmatpush1.bf16.xpose.msra.mxu0 0
    %2567 = vmatprep.subr.bf16.mxu0 0
    %2568 = vmatpush1.bf16.xpose.msra.mxu0 0
    %2569 = vmatprep.subr.bf16.mxu0 0
    %2570 = vmatpush1.bf16.xpose.msra.mxu0 0
    %2571 = vmatprep.subr.bf16.mxu0 0
    %2572 = vmatpush1.bf16.xpose.msra.mxu0 0
    %2573 = vmatprep.subr.bf16.mxu0 0
    %2574 = vmatpush1.bf16.xpose.msra.mxu0 0
    %2575 = vmatprep.subr.bf16.mxu0 0
    %2576 = vmatpush1.bf16.xpose.msra.mxu0 0
    %2577 = vmatprep.subr.bf16.mxu0 0
    %2578 = vmatpush1.bf16.xpose.msra.mxu0 0
    %2579 = vmatprep.subr.bf16.mxu0 0
    %2580 = vmatpush1.bf16.xpose.msra.mxu0 0
    %2581 = vmatprep.subr.bf16.mxu0 0
    %2582 = vmatpush1.bf16.xpose.msra.mxu0 0
    %2583 = vmatprep.subr.bf16.mxu0 0
    %2584 = vmatpush1.bf16.xpose.msra.mxu0 0
    %2585 = vmatprep.subr.bf16.mxu0 0
    %2586 = vmatpush1.bf16.xpose.msra.mxu0 0
    %2587 = vmatprep.subr.bf16.mxu0 0
    %2588 = vmatpush1.bf16.xpose.msra.mxu0 0
    %2589 = vmatprep.subr.bf16.mxu0 0
    %2590 = vmatpush1.bf16.xpose.msra.mxu0 0
    %2591 = vmatprep.subr.bf16.mxu0 0
    %2592 = vmatpush1.bf16.xpose.msra.mxu0 0
    %2593 = vmatprep.mubr.bf16.mxu0 0
    %2594 = vmatmul.mubr.bf16.gmra.mrb[0].mxu0 %v2559
    %v2595 = vpop.f32.mrb[0].mxu0
    %v2596 = vadd.f32 0.0, %v2595
    %v2597 = vpop.f32.mrb[0].mxu0
    %v2598 = vpop.f32.mrb[0].mxu0
    %v2599 = vpop.f32.mrb[0].mxu0
    %2600 = vdwg.mxu0
    %v2601 = vmul.f32 %v2596, 0.125
    %v2602 = vsel %vm654, %v2601, -inf
    %2603 = vmax.xlane.f32.xlu0 %v2602
    %v2604 = vpop.xlane.xlu0 %2603
    %v2605 = vsub.f32 %v2601, %v2604
    %v2606 = vmul.f32 %v2605, 1.442695
    %v2607 = vpow.pop %v2606
    %v2608 = vsel %vm654, %v2607, 0.0
    %2609 = vadd.xlane.f32.xlu0 %v2608
    %v2610 = vpop.xlane.xlu0 %2609
    %v2611 = vrcp.pop %v2610
    %v2612 = vmul.f32 %v2607, %v2611
    %v2613 = vpack.c.bf16 %v2612, %v2612
    %v2614 = vpack.c.bf16 %v2451, %v2451
    %v2616 = vsel %vm654, %v2613, 0
    %v2619 = vsel %vm671, %v2614, 0
    %2621 = vmatprep.subr.bf16.mxu0 0
    %2622 = vmatpush1.bf16.msra.mxu0 %v2619
    %2623 = vmatprep.subr.bf16.mxu0 0
    %2624 = vmatpush1.bf16.msra.mxu0 0
    %2625 = vmatprep.subr.bf16.mxu0 0
    %2626 = vmatpush1.bf16.msra.mxu0 0
    %2627 = vmatprep.subr.bf16.mxu0 0
    %2628 = vmatpush1.bf16.msra.mxu0 0
    %2629 = vmatprep.subr.bf16.mxu0 0
    %2630 = vmatpush1.bf16.msra.mxu0 0
    %2631 = vmatprep.subr.bf16.mxu0 0
    %2632 = vmatpush1.bf16.msra.mxu0 0
    %2633 = vmatprep.subr.bf16.mxu0 0
    %2634 = vmatpush1.bf16.msra.mxu0 0
    %2635 = vmatprep.subr.bf16.mxu0 0
    %2636 = vmatpush1.bf16.msra.mxu0 0
    %2637 = vmatprep.subr.bf16.mxu0 0
    %2638 = vmatpush1.bf16.msra.mxu0 0
    %2639 = vmatprep.subr.bf16.mxu0 0
    %2640 = vmatpush1.bf16.msra.mxu0 0
    %2641 = vmatprep.subr.bf16.mxu0 0
    %2642 = vmatpush1.bf16.msra.mxu0 0
    %2643 = vmatprep.subr.bf16.mxu0 0
    %2644 = vmatpush1.bf16.msra.mxu0 0
    %2645 = vmatprep.subr.bf16.mxu0 0
    %2646 = vmatpush1.bf16.msra.mxu0 0
    %2647 = vmatprep.subr.bf16.mxu0 0
    %2648 = vmatpush1.bf16.msra.mxu0 0
    %2649 = vmatprep.subr.bf16.mxu0 0
    %2650 = vmatpush1.bf16.msra.mxu0 0
    %2651 = vmatprep.subr.bf16.mxu0 0
    %2652 = vmatpush1.bf16.msra.mxu0 0
    %2653 = vmatprep.mubr.bf16.mxu0 0
    %2654 = vmatmul.mubr.bf16.gmra.mrb[0].mxu0 %v2616
    %v2655 = vpop.f32.mrb[0].mxu0
    %v2656 = vadd.f32 0.0, %v2655
    %v2657 = vpop.f32.mrb[0].mxu0
    %v2658 = vpop.f32.mrb[0].mxu0
    %v2659 = vpop.f32.mrb[0].mxu0
    %2660 = vdwg.mxu0
    %v2661 = vpack.c.bf16 %v2367, %v2367
    %v2662 = vpack.c.bf16 %v2410, %v2410
    %2663 = vmatprep.subr.bf16.mxu0 0
    %2664 = vmatpush1.bf16.xpose.msra.mxu0 %v2662
    %2665 = vmatprep.subr.bf16.mxu0 0
    %2666 = vmatpush1.bf16.xpose.msra.mxu0 0
    %2667 = vmatprep.subr.bf16.mxu0 0
    %2668 = vmatpush1.bf16.xpose.msra.mxu0 0
    %2669 = vmatprep.subr.bf16.mxu0 0
    %2670 = vmatpush1.bf16.xpose.msra.mxu0 0
    %2671 = vmatprep.subr.bf16.mxu0 0
    %2672 = vmatpush1.bf16.xpose.msra.mxu0 0
    %2673 = vmatprep.subr.bf16.mxu0 0
    %2674 = vmatpush1.bf16.xpose.msra.mxu0 0
    %2675 = vmatprep.subr.bf16.mxu0 0
    %2676 = vmatpush1.bf16.xpose.msra.mxu0 0
    %2677 = vmatprep.subr.bf16.mxu0 0
    %2678 = vmatpush1.bf16.xpose.msra.mxu0 0
    %2679 = vmatprep.subr.bf16.mxu0 0
    %2680 = vmatpush1.bf16.xpose.msra.mxu0 0
    %2681 = vmatprep.subr.bf16.mxu0 0
    %2682 = vmatpush1.bf16.xpose.msra.mxu0 0
    %2683 = vmatprep.subr.bf16.mxu0 0
    %2684 = vmatpush1.bf16.xpose.msra.mxu0 0
    %2685 = vmatprep.subr.bf16.mxu0 0
    %2686 = vmatpush1.bf16.xpose.msra.mxu0 0
    %2687 = vmatprep.subr.bf16.mxu0 0
    %2688 = vmatpush1.bf16.xpose.msra.mxu0 0
    %2689 = vmatprep.subr.bf16.mxu0 0
    %2690 = vmatpush1.bf16.xpose.msra.mxu0 0
    %2691 = vmatprep.subr.bf16.mxu0 0
    %2692 = vmatpush1.bf16.xpose.msra.mxu0 0
    %2693 = vmatprep.subr.bf16.mxu0 0
    %2694 = vmatpush1.bf16.xpose.msra.mxu0 0
    %2695 = vmatprep.mubr.bf16.mxu0 0
    %2696 = vmatmul.mubr.bf16.gmra.mrb[0].mxu0 %v2661
    %v2697 = vpop.f32.mrb[0].mxu0
    %v2698 = vadd.f32 0.0, %v2697
    %v2699 = vpop.f32.mrb[0].mxu0
    %v2700 = vpop.f32.mrb[0].mxu0
    %v2701 = vpop.f32.mrb[0].mxu0
    %2702 = vdwg.mxu0
    %v2703 = vmul.f32 %v2698, 0.125
    %v2704 = vsel %vm654, %v2703, -inf
    %2705 = vmax.xlane.f32.xlu0 %v2704
    %v2706 = vpop.xlane.xlu0 %2705
    %v2707 = vsub.f32 %v2703, %v2706
    %v2708 = vmul.f32 %v2707, 1.442695
    %v2709 = vpow.pop %v2708
    %v2710 = vsel %vm654, %v2709, 0.0
    %2711 = vadd.xlane.f32.xlu0 %v2710
    %v2712 = vpop.xlane.xlu0 %2711
    %v2713 = vrcp.pop %v2712
    %v2714 = vmul.f32 %v2709, %v2713
    %v2715 = vpack.c.bf16 %v2714, %v2714
    %v2716 = vpack.c.bf16 %v2453, %v2453
    %v2718 = vsel %vm654, %v2715, 0
    %v2721 = vsel %vm671, %v2716, 0
    %2723 = vmatprep.subr.bf16.mxu0 0
    %2724 = vmatpush1.bf16.msra.mxu0 %v2721
    %2725 = vmatprep.subr.bf16.mxu0 0
    %2726 = vmatpush1.bf16.msra.mxu0 0
    %2727 = vmatprep.subr.bf16.mxu0 0
    %2728 = vmatpush1.bf16.msra.mxu0 0
    %2729 = vmatprep.subr.bf16.mxu0 0
    %2730 = vmatpush1.bf16.msra.mxu0 0
    %2731 = vmatprep.subr.bf16.mxu0 0
    %2732 = vmatpush1.bf16.msra.mxu0 0
    %2733 = vmatprep.subr.bf16.mxu0 0
    %2734 = vmatpush1.bf16.msra.mxu0 0
    %2735 = vmatprep.subr.bf16.mxu0 0
    %2736 = vmatpush1.bf16.msra.mxu0 0
    %2737 = vmatprep.subr.bf16.mxu0 0
    %2738 = vmatpush1.bf16.msra.mxu0 0
    %2739 = vmatprep.subr.bf16.mxu0 0
    %2740 = vmatpush1.bf16.msra.mxu0 0
    %2741 = vmatprep.subr.bf16.mxu0 0
    %2742 = vmatpush1.bf16.msra.mxu0 0
    %2743 = vmatprep.subr.bf16.mxu0 0
    %2744 = vmatpush1.bf16.msra.mxu0 0
    %2745 = vmatprep.subr.bf16.mxu0 0
    %2746 = vmatpush1.bf16.msra.mxu0 0
    %2747 = vmatprep.subr.bf16.mxu0 0
    %2748 = vmatpush1.bf16.msra.mxu0 0
    %2749 = vmatprep.subr.bf16.mxu0 0
    %2750 = vmatpush1.bf16.msra.mxu0 0
    %2751 = vmatprep.subr.bf16.mxu0 0
    %2752 = vmatpush1.bf16.msra.mxu0 0
    %2753 = vmatprep.subr.bf16.mxu0 0
    %2754 = vmatpush1.bf16.msra.mxu0 0
    %2755 = vmatprep.mubr.bf16.mxu0 0
    %2756 = vmatmul.mubr.bf16.gmra.mrb[0].mxu0 %v2718
    %v2757 = vpop.f32.mrb[0].mxu0
    %v2758 = vadd.f32 0.0, %v2757
    %v2759 = vpop.f32.mrb[0].mxu0
    %v2760 = vpop.f32.mrb[0].mxu0
    %v2761 = vpop.f32.mrb[0].mxu0
    %2762 = vdwg.mxu0
    %v2763 = vpack.c.bf16 %v2369, %v2369
    %v2764 = vpack.c.bf16 %v2412, %v2412
    %2765 = vmatprep.subr.bf16.mxu0 0
    %2766 = vmatpush1.bf16.xpose.msra.mxu0 %v2764
    %2767 = vmatprep.subr.bf16.mxu0 0
    %2768 = vmatpush1.bf16.xpose.msra.mxu0 0
    %2769 = vmatprep.subr.bf16.mxu0 0
    %2770 = vmatpush1.bf16.xpose.msra.mxu0 0
    %2771 = vmatprep.subr.bf16.mxu0 0
    %2772 = vmatpush1.bf16.xpose.msra.mxu0 0
    %2773 = vmatprep.subr.bf16.mxu0 0
    %2774 = vmatpush1.bf16.xpose.msra.mxu0 0
    %2775 = vmatprep.subr.bf16.mxu0 0
    %2776 = vmatpush1.bf16.xpose.msra.mxu0 0
    %2777 = vmatprep.subr.bf16.mxu0 0
    %2778 = vmatpush1.bf16.xpose.msra.mxu0 0
    %2779 = vmatprep.subr.bf16.mxu0 0
    %2780 = vmatpush1.bf16.xpose.msra.mxu0 0
    %2781 = vmatprep.subr.bf16.mxu0 0
    %2782 = vmatpush1.bf16.xpose.msra.mxu0 0
    %2783 = vmatprep.subr.bf16.mxu0 0
    %2784 = vmatpush1.bf16.xpose.msra.mxu0 0
    %2785 = vmatprep.subr.bf16.mxu0 0
    %2786 = vmatpush1.bf16.xpose.msra.mxu0 0
    %2787 = vmatprep.subr.bf16.mxu0 0
    %2788 = vmatpush1.bf16.xpose.msra.mxu0 0
    %2789 = vmatprep.subr.bf16.mxu0 0
    %2790 = vmatpush1.bf16.xpose.msra.mxu0 0
    %2791 = vmatprep.subr.bf16.mxu0 0
    %2792 = vmatpush1.bf16.xpose.msra.mxu0 0
    %2793 = vmatprep.subr.bf16.mxu0 0
    %2794 = vmatpush1.bf16.xpose.msra.mxu0 0
    %2795 = vmatprep.subr.bf16.mxu0 0
    %2796 = vmatpush1.bf16.xpose.msra.mxu0 0
    %2797 = vmatprep.mubr.bf16.mxu0 0
    %2798 = vmatmul.mubr.bf16.gmra.mrb[0].mxu0 %v2763
    %v2799 = vpop.f32.mrb[0].mxu0
    %v2800 = vadd.f32 0.0, %v2799
    %v2801 = vpop.f32.mrb[0].mxu0
    %v2802 = vpop.f32.mrb[0].mxu0
    %v2803 = vpop.f32.mrb[0].mxu0
    %2804 = vdwg.mxu0
    %v2805 = vmul.f32 %v2800, 0.125
    %v2806 = vsel %vm654, %v2805, -inf
    %2807 = vmax.xlane.f32.xlu0 %v2806
    %v2808 = vpop.xlane.xlu0 %2807
    %v2809 = vsub.f32 %v2805, %v2808
    %v2810 = vmul.f32 %v2809, 1.442695
    %v2811 = vpow.pop %v2810
    %v2812 = vsel %vm654, %v2811, 0.0
    %2813 = vadd.xlane.f32.xlu0 %v2812
    %v2814 = vpop.xlane.xlu0 %2813
    %v2815 = vrcp.pop %v2814
    %v2816 = vmul.f32 %v2811, %v2815
    %v2817 = vpack.c.bf16 %v2816, %v2816
    %v2818 = vpack.c.bf16 %v2455, %v2455
    %v2820 = vsel %vm654, %v2817, 0
    %v2823 = vsel %vm671, %v2818, 0
    %2825 = vmatprep.subr.bf16.mxu0 0
    %2826 = vmatpush1.bf16.msra.mxu0 %v2823
    %2827 = vmatprep.subr.bf16.mxu0 0
    %2828 = vmatpush1.bf16.msra.mxu0 0
    %2829 = vmatprep.subr.bf16.mxu0 0
    %2830 = vmatpush1.bf16.msra.mxu0 0
    %2831 = vmatprep.subr.bf16.mxu0 0
    %2832 = vmatpush1.bf16.msra.mxu0 0
    %2833 = vmatprep.subr.bf16.mxu0 0
    %2834 = vmatpush1.bf16.msra.mxu0 0
    %2835 = vmatprep.subr.bf16.mxu0 0
    %2836 = vmatpush1.bf16.msra.mxu0 0
    %2837 = vmatprep.subr.bf16.mxu0 0
    %2838 = vmatpush1.bf16.msra.mxu0 0
    %2839 = vmatprep.subr.bf16.mxu0 0
    %2840 = vmatpush1.bf16.msra.mxu0 0
    %2841 = vmatprep.subr.bf16.mxu0 0
    %2842 = vmatpush1.bf16.msra.mxu0 0
    %2843 = vmatprep.subr.bf16.mxu0 0
    %2844 = vmatpush1.bf16.msra.mxu0 0
    %2845 = vmatprep.subr.bf16.mxu0 0
    %2846 = vmatpush1.bf16.msra.mxu0 0
    %2847 = vmatprep.subr.bf16.mxu0 0
    %2848 = vmatpush1.bf16.msra.mxu0 0
    %2849 = vmatprep.subr.bf16.mxu0 0
    %2850 = vmatpush1.bf16.msra.mxu0 0
    %2851 = vmatprep.subr.bf16.mxu0 0
    %2852 = vmatpush1.bf16.msra.mxu0 0
    %2853 = vmatprep.subr.bf16.mxu0 0
    %2854 = vmatpush1.bf16.msra.mxu0 0
    %2855 = vmatprep.subr.bf16.mxu0 0
    %2856 = vmatpush1.bf16.msra.mxu0 0
    %2857 = vmatprep.mubr.bf16.mxu0 0
    %2858 = vmatmul.mubr.bf16.gmra.mrb[0].mxu0 %v2820
    %v2859 = vpop.f32.mrb[0].mxu0
    %v2860 = vadd.f32 0.0, %v2859
    %v2861 = vpop.f32.mrb[0].mxu0
    %v2862 = vpop.f32.mrb[0].mxu0
    %v2863 = vpop.f32.mrb[0].mxu0
    %2864 = vdwg.mxu0
    %s2865 = scalar_lea.vmem [#allocation4], 128
    %v2866 = vld [vmem:[%s2865] sm:$0xf]
    %v2867 = vld [vmem:[%s2865 + $0x4] sm:$0xf]
    %v2868 = vld [vmem:[%s2865 + $0x8] sm:$0xf]
    %v2869 = vld [vmem:[%s2865 + $0xc] sm:$0xf]
    %v2870 = vld [vmem:[%s2865 + $0x10] sm:$0xf]
    %v2871 = vld [vmem:[%s2865 + $0x14] sm:$0xf]
    %v2872 = vld [vmem:[%s2865 + $0x18] sm:$0xf]
    %v2873 = vld [vmem:[%s2865 + $0x1c] sm:$0xf]
    %v2874 = vld [vmem:[%s2865 + $0x20] sm:$0xf]
    %v2875 = vld [vmem:[%s2865 + $0x24] sm:$0xf]
    %v2876 = vld [vmem:[%s2865 + $0x28] sm:$0xf]
    %v2877 = vld [vmem:[%s2865 + $0x2c] sm:$0xf]
    %v2878 = vld [vmem:[%s2865 + $0x30] sm:$0xf]
    %v2879 = vld [vmem:[%s2865 + $0x34] sm:$0xf]
    %v2880 = vld [vmem:[%s2865 + $0x38] sm:$0xf]
    %v2881 = vld [vmem:[%s2865 + $0x3c] sm:$0xf]
    %v2882 = vld [vmem:[%s2865 + $0x40] sm:$0xf]
    %v2883 = vld [vmem:[%s2865 + $0x44] sm:$0xf]
    %v2884 = vld [vmem:[%s2865 + $0x48] sm:$0xf]
    %v2885 = vld [vmem:[%s2865 + $0x4c] sm:$0xf]
    %v2886 = vld [vmem:[%s2865 + $0x50] sm:$0xf]
    %v2887 = vld [vmem:[%s2865 + $0x54] sm:$0xf]
    %v2888 = vld [vmem:[%s2865 + $0x58] sm:$0xf]
    %v2889 = vld [vmem:[%s2865 + $0x5c] sm:$0xf]
    %v2890 = vld [vmem:[%s2865 + $0x60] sm:$0xf]
    %v2891 = vld [vmem:[%s2865 + $0x64] sm:$0xf]
    %v2892 = vld [vmem:[%s2865 + $0x68] sm:$0xf]
    %v2893 = vld [vmem:[%s2865 + $0x6c] sm:$0xf]
    %v2894 = vld [vmem:[%s2865 + $0x70] sm:$0xf]
    %v2895 = vld [vmem:[%s2865 + $0x74] sm:$0xf]
    %v2896 = vld [vmem:[%s2865 + $0x78] sm:$0xf]
    %v2897 = vld [vmem:[%s2865 + $0x7c] sm:$0xf]
    %v2898 = vpack.c.bf16 %v2758, %v2554
    %v2899 = vpack.c.bf16 %v2860, %v2656
    %s2900 = scalar_lea.vmem %s6, 1
    %v2901 = vld [vmem:[%s2900] sm:$0x1]
    %v2903 = vlaneseq
    %v2904 = vshrl.u32 %v2903, 7
    %v2905 = vsub.s32 0, %v2904
    %v2906 = vrot.slane %v2901, %v2905
    %v2940 = vunpack.c.l.b16 %v2866
    %v2941 = vunpack.c.l.b16 %v2867
    %v2942 = vunpack.c.l.b16 %v2868
    %v2943 = vunpack.c.l.b16 %v2869
    %v2944 = vunpack.c.l.b16 %v2870
    %v2945 = vunpack.c.l.b16 %v2871
    %v2946 = vunpack.c.l.b16 %v2872
    %v2947 = vunpack.c.l.b16 %v2873
    %v2948 = vunpack.c.l.b16 %v2874
    %v2949 = vunpack.c.l.b16 %v2875
    %v2950 = vunpack.c.l.b16 %v2876
    %v2951 = vunpack.c.l.b16 %v2877
    %v2952 = vunpack.c.l.b16 %v2878
    %v2953 = vunpack.c.l.b16 %v2879
    %v2954 = vunpack.c.l.b16 %v2880
    %v2955 = vunpack.c.l.b16 %v2881
    %v2956 = vunpack.c.l.b16 %v2882
    %v2957 = vunpack.c.l.b16 %v2883
    %v2958 = vunpack.c.l.b16 %v2884
    %v2959 = vunpack.c.l.b16 %v2885
    %v2960 = vunpack.c.l.b16 %v2886
    %v2961 = vunpack.c.l.b16 %v2887
    %v2962 = vunpack.c.l.b16 %v2888
    %v2963 = vunpack.c.l.b16 %v2889
    %v2964 = vunpack.c.l.b16 %v2890
    %v2965 = vunpack.c.l.b16 %v2891
    %v2966 = vunpack.c.l.b16 %v2892
    %v2967 = vunpack.c.l.b16 %v2893
    %v2968 = vunpack.c.l.b16 %v2894
    %v2969 = vunpack.c.l.b16 %v2895
    %v2970 = vunpack.c.l.b16 %v2896
    %v2971 = vunpack.c.l.b16 %v2897
    %v2972 = vpack.c.b16 %v2941, %v2940
    %v2973 = vpack.c.b16 %v2943, %v2942
    %v2974 = vpack.c.b16 %v2945, %v2944
    %v2975 = vpack.c.b16 %v2947, %v2946
    %v2976 = vpack.c.b16 %v2949, %v2948
    %v2977 = vpack.c.b16 %v2951, %v2950
    %v2978 = vpack.c.b16 %v2953, %v2952
    %v2979 = vpack.c.b16 %v2955, %v2954
    %v2980 = vpack.c.b16 %v2957, %v2956
    %v2981 = vpack.c.b16 %v2959, %v2958
    %v2982 = vpack.c.b16 %v2961, %v2960
    %v2983 = vpack.c.b16 %v2963, %v2962
    %v2984 = vpack.c.b16 %v2965, %v2964
    %v2985 = vpack.c.b16 %v2967, %v2966
    %v2986 = vpack.c.b16 %v2969, %v2968
    %v2987 = vpack.c.b16 %v2971, %v2970
    %3004 = vmatprep.subr.bf16.mxu0 0
    %3005 = vmatpush1.bf16.msra.mxu0 %v2972
    %3006 = vmatprep.subr.bf16.mxu0 0
    %3007 = vmatpush1.bf16.msra.mxu0 %v2973
    %3008 = vmatprep.subr.bf16.mxu0 0
    %3009 = vmatpush1.bf16.msra.mxu0 %v2974
    %3010 = vmatprep.subr.bf16.mxu0 0
    %3011 = vmatpush1.bf16.msra.mxu0 %v2975
    %3012 = vmatprep.subr.bf16.mxu0 0
    %3013 = vmatpush1.bf16.msra.mxu0 %v2976
    %3014 = vmatprep.subr.bf16.mxu0 0
    %3015 = vmatpush1.bf16.msra.mxu0 %v2977
    %3016 = vmatprep.subr.bf16.mxu0 0
    %3017 = vmatpush1.bf16.msra.mxu0 %v2978
    %3018 = vmatprep.subr.bf16.mxu0 0
    %3019 = vmatpush1.bf16.msra.mxu0 %v2979
    %3020 = vmatprep.subr.bf16.mxu0 0
    %3021 = vmatpush1.bf16.msra.mxu0 %v2980
    %3022 = vmatprep.subr.bf16.mxu0 0
    %3023 = vmatpush1.bf16.msra.mxu0 %v2981
    %3024 = vmatprep.subr.bf16.mxu0 0
    %3025 = vmatpush1.bf16.msra.mxu0 %v2982
    %3026 = vmatprep.subr.bf16.mxu0 0
    %3027 = vmatpush1.bf16.msra.mxu0 %v2983
    %3028 = vmatprep.subr.bf16.mxu0 0
    %3029 = vmatpush1.bf16.msra.mxu0 %v2984
    %3030 = vmatprep.subr.bf16.mxu0 0
    %3031 = vmatpush1.bf16.msra.mxu0 %v2985
    %3032 = vmatprep.subr.bf16.mxu0 0
    %3033 = vmatpush1.bf16.msra.mxu0 %v2986
    %3034 = vmatprep.subr.bf16.mxu0 0
    %3035 = vmatpush1.bf16.msra.mxu0 %v2987
    %3036 = vmatprep.mubr.bf16.mxu0 %v2899
    %3037 = vmatmul.mubr.bf16.gmra.mrb[0].mxu0 %v2898
    %v3038 = vpop.f32.mrb[0].mxu0
    %v3039 = vadd.f32 %v2906, %v3038
    %v3040 = vpop.f32.mrb[0].mxu0
    %v3041 = vpop.f32.mrb[0].mxu0
    %v3042 = vadd.f32 %v2906, %v3041
    %v3043 = vpop.f32.mrb[0].mxu0
    %3044 = vdwg.mxu0
    %v3045 = vadd.f32 %v3039, %v2003
    %v3046 = vadd.f32 %v3042, %v2004
    %s3047 = scalar_lea.vmem %s7, 1
    %v3048 = vld [vmem:[%s3047] sm:$0x1]
    %s3049 = scalar_lea.vmem %s8, 1
    %v3050 = vld [vmem:[%s3049] sm:$0x1]
    %3051 = vadd.xlane.f32.xlu0 %v3045
    %v3052 = vpop.xlane.xlu0 %3051
    %3053 = vadd.xlane.f32.xlu0 %v3046
    %v3054 = vpop.xlane.xlu0 %3053
    %v3055 = vmul.f32 %v3052, %v126
    %v3056 = vmul.f32 %v3054, %v126
    %v3057 = vsub.f32 %v3045, %v3055
    %v3058 = vsub.f32 %v3046, %v3056
    %v3059 = vmul.f32 %v3057, %v3057
    %v3060 = vmul.f32 %v3058, %v3058
    %3061 = vadd.xlane.f32.xlu0 %v3059
    %v3062 = vpop.xlane.xlu0 %3061
    %3063 = vadd.xlane.f32.xlu0 %v3060
    %v3064 = vpop.xlane.xlu0 %3063
    %v3065 = vmul.f32 %v3062, %v126
    %v3066 = vmul.f32 %v3064, %v126
    %v3067 = vadd.f32 %v3065, 1e-12
    %v3068 = vadd.f32 %v3066, 1e-12
    %v3069 = vrsqrt.pop %v3067
    %v3070 = vrsqrt.pop %v3068
    %v3071 = vmul.f32 %v3057, %v3069
    %v3072 = vmul.f32 %v3058, %v3070
    %v3074 = vlaneseq
    %v3075 = vshrl.u32 %v3074, 7
    %v3076 = vsub.s32 0, %v3075
    %v3077 = vrot.slane %v3048, %v3076
    %v3079 = vmul.f32 %v3071, %v3077
    %v3080 = vmul.f32 %v3072, %v3077
    %v3082 = vlaneseq
    %v3083 = vshrl.u32 %v3082, 7
    %v3084 = vsub.s32 0, %v3083
    %v3085 = vrot.slane %v3050, %v3084
    %v3087 = vadd.f32 %v3079, %v3085
    %v3088 = vadd.f32 %v3080, %v3085
    %s3089 = scalar_lea.vmem [#allocation6], 256
    %v3090 = vld [vmem:[%s3089] sm:$0xff]
    %v3091 = vld [vmem:[%s3089 + $0x8] sm:$0xff]
    %v3092 = vld [vmem:[%s3089 + $0x10] sm:$0xff]
    %v3093 = vld [vmem:[%s3089 + $0x18] sm:$0xff]
    %v3094 = vld [vmem:[%s3089 + $0x20] sm:$0xff]
    %v3095 = vld [vmem:[%s3089 + $0x28] sm:$0xff]
    %v3096 = vld [vmem:[%s3089 + $0x30] sm:$0xff]
    %v3097 = vld [vmem:[%s3089 + $0x38] sm:$0xff]
    %v3098 = vld [vmem:[%s3089 + $0x40] sm:$0xff]
    %v3099 = vld [vmem:[%s3089 + $0x48] sm:$0xff]
    %v3100 = vld [vmem:[%s3089 + $0x50] sm:$0xff]
    %v3101 = vld [vmem:[%s3089 + $0x58] sm:$0xff]
    %v3102 = vld [vmem:[%s3089 + $0x60] sm:$0xff]
    %v3103 = vld [vmem:[%s3089 + $0x68] sm:$0xff]
    %v3104 = vld [vmem:[%s3089 + $0x70] sm:$0xff]
    %v3105 = vld [vmem:[%s3089 + $0x78] sm:$0xff]
    %v3106 = vld [vmem:[%s3089 + $0x80] sm:$0xff]
    %v3107 = vld [vmem:[%s3089 + $0x88] sm:$0xff]
    %v3108 = vld [vmem:[%s3089 + $0x90] sm:$0xff]
    %v3109 = vld [vmem:[%s3089 + $0x98] sm:$0xff]
    %v3110 = vld [vmem:[%s3089 + $0xa0] sm:$0xff]
    %v3111 = vld [vmem:[%s3089 + $0xa8] sm:$0xff]
    %v3112 = vld [vmem:[%s3089 + $0xb0] sm:$0xff]
    %v3113 = vld [vmem:[%s3089 + $0xb8] sm:$0xff]
    %v3114 = vld [vmem:[%s3089 + $0xc0] sm:$0xff]
    %v3115 = vld [vmem:[%s3089 + $0xc8] sm:$0xff]
    %v3116 = vld [vmem:[%s3089 + $0xd0] sm:$0xff]
    %v3117 = vld [vmem:[%s3089 + $0xd8] sm:$0xff]
    %v3118 = vld [vmem:[%s3089 + $0xe0] sm:$0xff]
    %v3119 = vld [vmem:[%s3089 + $0xe8] sm:$0xff]
    %v3120 = vld [vmem:[%s3089 + $0xf0] sm:$0xff]
    %v3121 = vld [vmem:[%s3089 + $0xf8] sm:$0xff]
    %v3122 = vpack.c.bf16 %v3088, %v3087
    %s3123 = scalar_lea.vmem %s10, 4
    %v3124 = vld [vmem:[%s3123] sm:$0xf]
    %v3126 = vlaneseq
    %v3127 = vshrl.u32 %v3126, 7
    %v3128 = vsub.s32 0, %v3127
    %v3129 = vrot.slane %v3124, %v3128
    %v3130 = vlaneseq
    %v3131 = vshrl.u32 %v3130, 7
    %v3132 = vsub.s32 1, %v3131
    %v3133 = vrot.slane %v3124, %v3132
    %v3134 = vlaneseq
    %v3135 = vshrl.u32 %v3134, 7
    %v3136 = vsub.s32 2, %v3135
    %v3137 = vrot.slane %v3124, %v3136
    %v3138 = vlaneseq
    %v3139 = vshrl.u32 %v3138, 7
    %v3140 = vsub.s32 3, %v3139
    %v3141 = vrot.slane %v3124, %v3140
    %v3178 = vunpack.c.l.b16 %v3090
    %v3179 = vunpack.c.h.b16 %v3090
    %v3180 = vunpack.c.l.b16 %v3091
    %v3181 = vunpack.c.h.b16 %v3091
    %v3182 = vunpack.c.l.b16 %v3092
    %v3183 = vunpack.c.h.b16 %v3092
    %v3184 = vunpack.c.l.b16 %v3093
    %v3185 = vunpack.c.h.b16 %v3093
    %v3186 = vunpack.c.l.b16 %v3094
    %v3187 = vunpack.c.h.b16 %v3094
    %v3188 = vunpack.c.l.b16 %v3095
    %v3189 = vunpack.c.h.b16 %v3095
    %v3190 = vunpack.c.l.b16 %v3096
    %v3191 = vunpack.c.h.b16 %v3096
    %v3192 = vunpack.c.l.b16 %v3097
    %v3193 = vunpack.c.h.b16 %v3097
    %v3194 = vunpack.c.l.b16 %v3098
    %v3195 = vunpack.c.h.b16 %v3098
    %v3196 = vunpack.c.l.b16 %v3099
    %v3197 = vunpack.c.h.b16 %v3099
    %v3198 = vunpack.c.l.b16 %v3100
    %v3199 = vunpack.c.h.b16 %v3100
    %v3200 = vunpack.c.l.b16 %v3101
    %v3201 = vunpack.c.h.b16 %v3101
    %v3202 = vunpack.c.l.b16 %v3102
    %v3203 = vunpack.c.h.b16 %v3102
    %v3204 = vunpack.c.l.b16 %v3103
    %v3205 = vunpack.c.h.b16 %v3103
    %v3206 = vunpack.c.l.b16 %v3104
    %v3207 = vunpack.c.h.b16 %v3104
    %v3208 = vunpack.c.l.b16 %v3105
    %v3209 = vunpack.c.h.b16 %v3105
    %v3210 = vunpack.c.l.b16 %v3106
    %v3211 = vunpack.c.h.b16 %v3106
    %v3212 = vunpack.c.l.b16 %v3107
    %v3213 = vunpack.c.h.b16 %v3107
    %v3214 = vunpack.c.l.b16 %v3108
    %v3215 = vunpack.c.h.b16 %v3108
    %v3216 = vunpack.c.l.b16 %v3109
    %v3217 = vunpack.c.h.b16 %v3109
    %v3218 = vunpack.c.l.b16 %v3110
    %v3219 = vunpack.c.h.b16 %v3110
    %v3220 = vunpack.c.l.b16 %v3111
    %v3221 = vunpack.c.h.b16 %v3111
    %v3222 = vunpack.c.l.b16 %v3112
    %v3223 = vunpack.c.h.b16 %v3112
    %v3224 = vunpack.c.l.b16 %v3113
    %v3225 = vunpack.c.h.b16 %v3113
    %v3226 = vunpack.c.l.b16 %v3114
    %v3227 = vunpack.c.h.b16 %v3114
    %v3228 = vunpack.c.l.b16 %v3115
    %v3229 = vunpack.c.h.b16 %v3115
    %v3230 = vunpack.c.l.b16 %v3116
    %v3231 = vunpack.c.h.b16 %v3116
    %v3232 = vunpack.c.l.b16 %v3117
    %v3233 = vunpack.c.h.b16 %v3117
    %v3234 = vunpack.c.l.b16 %v3118
    %v3235 = vunpack.c.h.b16 %v3118
    %v3236 = vunpack.c.l.b16 %v3119
    %v3237 = vunpack.c.h.b16 %v3119
    %v3238 = vunpack.c.l.b16 %v3120
    %v3239 = vunpack.c.h.b16 %v3120
    %v3240 = vunpack.c.l.b16 %v3121
    %v3241 = vunpack.c.h.b16 %v3121
    %v3242 = vpack.c.b16 %v3182, %v3178
    %v3243 = vpack.c.b16 %v3183, %v3179
    %v3244 = vpack.c.b16 %v3184, %v3180
    %v3245 = vpack.c.b16 %v3185, %v3181
    %v3246 = vpack.c.b16 %v3190, %v3186
    %v3247 = vpack.c.b16 %v3191, %v3187
    %v3248 = vpack.c.b16 %v3192, %v3188
    %v3249 = vpack.c.b16 %v3193, %v3189
    %v3250 = vpack.c.b16 %v3198, %v3194
    %v3251 = vpack.c.b16 %v3199, %v3195
    %v3252 = vpack.c.b16 %v3200, %v3196
    %v3253 = vpack.c.b16 %v3201, %v3197
    %v3254 = vpack.c.b16 %v3206, %v3202
    %v3255 = vpack.c.b16 %v3207, %v3203
    %v3256 = vpack.c.b16 %v3208, %v3204
    %v3257 = vpack.c.b16 %v3209, %v3205
    %v3258 = vpack.c.b16 %v3214, %v3210
    %v3259 = vpack.c.b16 %v3215, %v3211
    %v3260 = vpack.c.b16 %v3216, %v3212
    %v3261 = vpack.c.b16 %v3217, %v3213
    %v3262 = vpack.c.b16 %v3222, %v3218
    %v3263 = vpack.c.b16 %v3223, %v3219
    %v3264 = vpack.c.b16 %v3224, %v3220
    %v3265 = vpack.c.b16 %v3225, %v3221
    %v3266 = vpack.c.b16 %v3230, %v3226
    %v3267 = vpack.c.b16 %v3231, %v3227
    %v3268 = vpack.c.b16 %v3232, %v3228
    %v3269 = vpack.c.b16 %v3233, %v3229
    %v3270 = vpack.c.b16 %v3238, %v3234
    %v3271 = vpack.c.b16 %v3239, %v3235
    %v3272 = vpack.c.b16 %v3240, %v3236
    %v3273 = vpack.c.b16 %v3241, %v3237
    %3306 = vmatprep.subr.bf16.mxu0 %v3243
    %3307 = vmatpush1.bf16.msra.mxu0 %v3242
    %3308 = vmatprep.subr.bf16.mxu0 %v3247
    %3309 = vmatpush1.bf16.msra.mxu0 %v3246
    %3310 = vmatprep.subr.bf16.mxu0 %v3251
    %3311 = vmatpush1.bf16.msra.mxu0 %v3250
    %3312 = vmatprep.subr.bf16.mxu0 %v3255
    %3313 = vmatpush1.bf16.msra.mxu0 %v3254
    %3314 = vmatprep.subr.bf16.mxu0 %v3259
    %3315 = vmatpush1.bf16.msra.mxu0 %v3258
    %3316 = vmatprep.subr.bf16.mxu0 %v3263
    %3317 = vmatpush1.bf16.msra.mxu0 %v3262
    %3318 = vmatprep.subr.bf16.mxu0 %v3267
    %3319 = vmatpush1.bf16.msra.mxu0 %v3266
    %3320 = vmatprep.subr.bf16.mxu0 %v3271
    %3321 = vmatpush1.bf16.msra.mxu0 %v3270
    %3322 = vmatprep.subr.bf16.mxu0 0
    %3323 = vmatpush1.bf16.msra.mxu0 0
    %3324 = vmatprep.subr.bf16.mxu0 0
    %3325 = vmatpush1.bf16.msra.mxu0 0
    %3326 = vmatprep.subr.bf16.mxu0 0
    %3327 = vmatpush1.bf16.msra.mxu0 0
    %3328 = vmatprep.subr.bf16.mxu0 0
    %3329 = vmatpush1.bf16.msra.mxu0 0
    %3330 = vmatprep.subr.bf16.mxu0 0
    %3331 = vmatpush1.bf16.msra.mxu0 0
    %3332 = vmatprep.subr.bf16.mxu0 0
    %3333 = vmatpush1.bf16.msra.mxu0 0
    %3334 = vmatprep.subr.bf16.mxu0 0
    %3335 = vmatpush1.bf16.msra.mxu0 0
    %3336 = vmatprep.subr.bf16.mxu0 0
    %3337 = vmatpush1.bf16.msra.mxu0 0
    %3338 = vmatprep.mubr.bf16.mxu0 0
    %3339 = vmatmul.mubr.bf16.gmra.mrb[0].mxu0 %v3122
    %v3340 = vpop.f32.mrb[0].mxu0
    %v3341 = vadd.f32 %v3129, %v3340
    %v3342 = vpop.f32.mrb[0].mxu0
    %v3343 = vadd.f32 %v3133, %v3342
    %v3344 = vpop.f32.mrb[0].mxu0
    %v3345 = vadd.f32 %v3129, %v3344
    %v3346 = vpop.f32.mrb[0].mxu0
    %v3347 = vadd.f32 %v3133, %v3346
    %3348 = vdwg.mxu0
    %3349 = vmatprep.subr.bf16.mxu0 %v3245
    %3350 = vmatpush1.bf16.msra.mxu0 %v3244
    %3351 = vmatprep.subr.bf16.mxu0 %v3249
    %3352 = vmatpush1.bf16.msra.mxu0 %v3248
    %3353 = vmatprep.subr.bf16.mxu0 %v3253
    %3354 = vmatpush1.bf16.msra.mxu0 %v3252
    %3355 = vmatprep.subr.bf16.mxu0 %v3257
    %3356 = vmatpush1.bf16.msra.mxu0 %v3256
    %3357 = vmatprep.subr.bf16.mxu0 %v3261
    %3358 = vmatpush1.bf16.msra.mxu0 %v3260
    %3359 = vmatprep.subr.bf16.mxu0 %v3265
    %3360 = vmatpush1.bf16.msra.mxu0 %v3264
    %3361 = vmatprep.subr.bf16.mxu0 %v3269
    %3362 = vmatpush1.bf16.msra.mxu0 %v3268
    %3363 = vmatprep.subr.bf16.mxu0 %v3273
    %3364 = vmatpush1.bf16.msra.mxu0 %v3272
    %3365 = vmatprep.subr.bf16.mxu0 0
    %3366 = vmatpush1.bf16.msra.mxu0 0
    %3367 = vmatprep.subr.bf16.mxu0 0
    %3368 = vmatpush1.bf16.msra.mxu0 0
    %3369 = vmatprep.subr.bf16.mxu0 0
    %3370 = vmatpush1.bf16.msra.mxu0 0
    %3371 = vmatprep.subr.bf16.mxu0 0
    %3372 = vmatpush1.bf16.msra.mxu0 0
    %3373 = vmatprep.subr.bf16.mxu0 0
    %3374 = vmatpush1.bf16.msra.mxu0 0
    %3375 = vmatprep.subr.bf16.mxu0 0
    %3376 = vmatpush1.bf16.msra.mxu0 0
    %3377 = vmatprep.subr.bf16.mxu0 0
    %3378 = vmatpush1.bf16.msra.mxu0 0
    %3379 = vmatprep.subr.bf16.mxu0 0
    %3380 = vmatpush1.bf16.msra.mxu0 0
    %3381 = vmatprep.mubr.bf16.mxu0 0
    %3382 = vmatmul.mubr.bf16.gmra.mrb[0].mxu0 %v3122
    %v3383 = vpop.f32.mrb[0].mxu0
    %v3384 = vadd.f32 %v3137, %v3383
    %v3385 = vpop.f32.mrb[0].mxu0
    %v3386 = vadd.f32 %v3141, %v3385
    %v3387 = vpop.f32.mrb[0].mxu0
    %v3388 = vadd.f32 %v3137, %v3387
    %v3389 = vpop.f32.mrb[0].mxu0
    %v3390 = vadd.f32 %v3141, %v3389
    %3391 = vdwg.mxu0
    %v3392 = vmul.f32 %v3341, %v3341
    %v3393 = vmul.f32 %v3343, %v3343
    %v3394 = vmul.f32 %v3384, %v3384
    %v3395 = vmul.f32 %v3386, %v3386
    %v3396 = vmul.f32 %v3345, %v3345
    %v3397 = vmul.f32 %v3347, %v3347
    %v3398 = vmul.f32 %v3388, %v3388
    %v3399 = vmul.f32 %v3390, %v3390
    %v3400 = vmul.f32 %v3341, %v3392
    %v3401 = vmul.f32 %v3343, %v3393
    %v3402 = vmul.f32 %v3384, %v3394
    %v3403 = vmul.f32 %v3386, %v3395
    %v3404 = vmul.f32 %v3345, %v3396
    %v3405 = vmul.f32 %v3347, %v3397
    %v3406 = vmul.f32 %v3388, %v3398
    %v3407 = vmul.f32 %v3390, %v3399
    %v3408 = vmul.f32 %v3400, 0.044715
    %v3409 = vmul.f32 %v3401, 0.044715
    %v3410 = vmul.f32 %v3402, 0.044715
    %v3411 = vmul.f32 %v3403, 0.044715
    %v3412 = vmul.f32 %v3404, 0.044715
    %v3413 = vmul.f32 %v3405, 0.044715
    %v3414 = vmul.f32 %v3406, 0.044715
    %v3415 = vmul.f32 %v3407, 0.044715
    %v3416 = vadd.f32 %v3341, %v3408
    %v3417 = vadd.f32 %v3343, %v3409
    %v3418 = vadd.f32 %v3384, %v3410
    %v3419 = vadd.f32 %v3386, %v3411
    %v3420 = vadd.f32 %v3345, %v3412
    %v3421 = vadd.f32 %v3347, %v3413
    %v3422 = vadd.f32 %v3388, %v3414
    %v3423 = vadd.f32 %v3390, %v3415
    %v3424 = vmul.f32 %v3416, 0.7978846
    %v3425 = vmul.f32 %v3417, 0.7978846
    %v3426 = vmul.f32 %v3418, 0.7978846
    %v3427 = vmul.f32 %v3419, 0.7978846
    %v3428 = vmul.f32 %v3420, 0.7978846
    %v3429 = vmul.f32 %v3421, 0.7978846
    %v3430 = vmul.f32 %v3422, 0.7978846
    %v3431 = vmul.f32 %v3423, 0.7978846
    %v3432 = vtanh.pop %v3424
    %v3433 = vtanh.pop %v3425
    %v3434 = vtanh.pop %v3426
    %v3435 = vtanh.pop %v3427
    %v3436 = vtanh.pop %v3428
    %v3437 = vtanh.pop %v3429
    %v3438 = vtanh.pop %v3430
    %v3439 = vtanh.pop %v3431
    %v3440 = vadd.f32 %v3432, 1.0
    %v3441 = vadd.f32 %v3433, 1.0
    %v3442 = vadd.f32 %v3434, 1.0
    %v3443 = vadd.f32 %v3435, 1.0
    %v3444 = vadd.f32 %v3436, 1.0
    %v3445 = vadd.f32 %v3437, 1.0
    %v3446 = vadd.f32 %v3438, 1.0
    %v3447 = vadd.f32 %v3439, 1.0
    %v3448 = vmul.f32 %v3440, 0.5
    %v3449 = vmul.f32 %v3441, 0.5
    %v3450 = vmul.f32 %v3442, 0.5
    %v3451 = vmul.f32 %v3443, 0.5
    %v3452 = vmul.f32 %v3444, 0.5
    %v3453 = vmul.f32 %v3445, 0.5
    %v3454 = vmul.f32 %v3446, 0.5
    %v3455 = vmul.f32 %v3447, 0.5
    %v3456 = vmul.f32 %v3341, %v3448
    %v3457 = vmul.f32 %v3343, %v3449
    %v3458 = vmul.f32 %v3384, %v3450
    %v3459 = vmul.f32 %v3386, %v3451
    %v3460 = vmul.f32 %v3345, %v3452
    %v3461 = vmul.f32 %v3347, %v3453
    %v3462 = vmul.f32 %v3388, %v3454
    %v3463 = vmul.f32 %v3390, %v3455
    %s3464 = scalar_lea.vmem [#allocation7], 256
    %v3465 = vld [vmem:[%s3464] sm:$0xf]
    %v3466 = vld [vmem:[%s3464 + $0x4] sm:$0xf]
    %v3467 = vld [vmem:[%s3464 + $0x8] sm:$0xf]
    %v3468 = vld [vmem:[%s3464 + $0xc] sm:$0xf]
    %v3469 = vld [vmem:[%s3464 + $0x10] sm:$0xf]
    %v3470 = vld [vmem:[%s3464 + $0x14] sm:$0xf]
    %v3471 = vld [vmem:[%s3464 + $0x18] sm:$0xf]
    %v3472 = vld [vmem:[%s3464 + $0x1c] sm:$0xf]
    %v3473 = vld [vmem:[%s3464 + $0x20] sm:$0xf]
    %v3474 = vld [vmem:[%s3464 + $0x24] sm:$0xf]
    %v3475 = vld [vmem:[%s3464 + $0x28] sm:$0xf]
    %v3476 = vld [vmem:[%s3464 + $0x2c] sm:$0xf]
    %v3477 = vld [vmem:[%s3464 + $0x30] sm:$0xf]
    %v3478 = vld [vmem:[%s3464 + $0x34] sm:$0xf]
    %v3479 = vld [vmem:[%s3464 + $0x38] sm:$0xf]
    %v3480 = vld [vmem:[%s3464 + $0x3c] sm:$0xf]
    %v3481 = vld [vmem:[%s3464 + $0x40] sm:$0xf]
    %v3482 = vld [vmem:[%s3464 + $0x44] sm:$0xf]
    %v3483 = vld [vmem:[%s3464 + $0x48] sm:$0xf]
    %v3484 = vld [vmem:[%s3464 + $0x4c] sm:$0xf]
    %v3485 = vld [vmem:[%s3464 + $0x50] sm:$0xf]
    %v3486 = vld [vmem:[%s3464 + $0x54] sm:$0xf]
    %v3487 = vld [vmem:[%s3464 + $0x58] sm:$0xf]
    %v3488 = vld [vmem:[%s3464 + $0x5c] sm:$0xf]
    %v3489 = vld [vmem:[%s3464 + $0x60] sm:$0xf]
    %v3490 = vld [vmem:[%s3464 + $0x64] sm:$0xf]
    %v3491 = vld [vmem:[%s3464 + $0x68] sm:$0xf]
    %v3492 = vld [vmem:[%s3464 + $0x6c] sm:$0xf]
    %v3493 = vld [vmem:[%s3464 + $0x70] sm:$0xf]
    %v3494 = vld [vmem:[%s3464 + $0x74] sm:$0xf]
    %v3495 = vld [vmem:[%s3464 + $0x78] sm:$0xf]
    %v3496 = vld [vmem:[%s3464 + $0x7c] sm:$0xf]
    %v3497 = vld [vmem:[%s3464 + $0x80] sm:$0xf]
    %v3498 = vld [vmem:[%s3464 + $0x84] sm:$0xf]
    %v3499 = vld [vmem:[%s3464 + $0x88] sm:$0xf]
    %v3500 = vld [vmem:[%s3464 + $0x8c] sm:$0xf]
    %v3501 = vld [vmem:[%s3464 + $0x90] sm:$0xf]
    %v3502 = vld [vmem:[%s3464 + $0x94] sm:$0xf]
    %v3503 = vld [vmem:[%s3464 + $0x98] sm:$0xf]
    %v3504 = vld [vmem:[%s3464 + $0x9c] sm:$0xf]
    %v3505 = vld [vmem:[%s3464 + $0xa0] sm:$0xf]
    %v3506 = vld [vmem:[%s3464 + $0xa4] sm:$0xf]
    %v3507 = vld [vmem:[%s3464 + $0xa8] sm:$0xf]
    %v3508 = vld [vmem:[%s3464 + $0xac] sm:$0xf]
    %v3509 = vld [vmem:[%s3464 + $0xb0] sm:$0xf]
    %v3510 = vld [vmem:[%s3464 + $0xb4] sm:$0xf]
    %v3511 = vld [vmem:[%s3464 + $0xb8] sm:$0xf]
    %v3512 = vld [vmem:[%s3464 + $0xbc] sm:$0xf]
    %v3513 = vld [vmem:[%s3464 + $0xc0] sm:$0xf]
    %v3514 = vld [vmem:[%s3464 + $0xc4] sm:$0xf]
    %v3515 = vld [vmem:[%s3464 + $0xc8] sm:$0xf]
    %v3516 = vld [vmem:[%s3464 + $0xcc] sm:$0xf]
    %v3517 = vld [vmem:[%s3464 + $0xd0] sm:$0xf]
    %v3518 = vld [vmem:[%s3464 + $0xd4] sm:$0xf]
    %v3519 = vld [vmem:[%s3464 + $0xd8] sm:$0xf]
    %v3520 = vld [vmem:[%s3464 + $0xdc] sm:$0xf]
    %v3521 = vld [vmem:[%s3464 + $0xe0] sm:$0xf]
    %v3522 = vld [vmem:[%s3464 + $0xe4] sm:$0xf]
    %v3523 = vld [vmem:[%s3464 + $0xe8] sm:$0xf]
    %v3524 = vld [vmem:[%s3464 + $0xec] sm:$0xf]
    %v3525 = vld [vmem:[%s3464 + $0xf0] sm:$0xf]
    %v3526 = vld [vmem:[%s3464 + $0xf4] sm:$0xf]
    %v3527 = vld [vmem:[%s3464 + $0xf8] sm:$0xf]
    %v3528 = vld [vmem:[%s3464 + $0xfc] sm:$0xf]
    %v3529 = vpack.c.bf16 %v3460, %v3456
    %v3530 = vpack.c.bf16 %v3461, %v3457
    %v3531 = vpack.c.bf16 %v3462, %v3458
    %v3532 = vpack.c.bf16 %v3463, %v3459
    %s3533 = scalar_lea.vmem %s12, 1
    %v3534 = vld [vmem:[%s3533] sm:$0x1]
    %v3536 = vlaneseq
    %v3537 = vshrl.u32 %v3536, 7
    %v3538 = vsub.s32 0, %v3537
    %v3539 = vrot.slane %v3534, %v3538
    %v3605 = vunpack.c.l.b16 %v3465
    %v3606 = vunpack.c.l.b16 %v3466
    %v3607 = vunpack.c.l.b16 %v3467
    %v3608 = vunpack.c.l.b16 %v3468
    %v3609 = vunpack.c.l.b16 %v3469
    %v3610 = vunpack.c.l.b16 %v3470
    %v3611 = vunpack.c.l.b16 %v3471
    %v3612 = vunpack.c.l.b16 %v3472
    %v3613 = vunpack.c.l.b16 %v3473
    %v3614 = vunpack.c.l.b16 %v3474
    %v3615 = vunpack.c.l.b16 %v3475
    %v3616 = vunpack.c.l.b16 %v3476
    %v3617 = vunpack.c.l.b16 %v3477
    %v3618 = vunpack.c.l.b16 %v3478
    %v3619 = vunpack.c.l.b16 %v3479
    %v3620 = vunpack.c.l.b16 %v3480
    %v3621 = vunpack.c.l.b16 %v3481
    %v3622 = vunpack.c.l.b16 %v3482
    %v3623 = vunpack.c.l.b16 %v3483
    %v3624 = vunpack.c.l.b16 %v3484
    %v3625 = vunpack.c.l.b16 %v3485
    %v3626 = vunpack.c.l.b16 %v3486
    %v3627 = vunpack.c.l.b16 %v3487
    %v3628 = vunpack.c.l.b16 %v3488
    %v3629 = vunpack.c.l.b16 %v3489
    %v3630 = vunpack.c.l.b16 %v3490
    %v3631 = vunpack.c.l.b16 %v3491
    %v3632 = vunpack.c.l.b16 %v3492
    %v3633 = vunpack.c.l.b16 %v3493
    %v3634 = vunpack.c.l.b16 %v3494
    %v3635 = vunpack.c.l.b16 %v3495
    %v3636 = vunpack.c.l.b16 %v3496
    %v3637 = vunpack.c.l.b16 %v3497
    %v3638 = vunpack.c.l.b16 %v3498
    %v3639 = vunpack.c.l.b16 %v3499
    %v3640 = vunpack.c.l.b16 %v3500
    %v3641 = vunpack.c.l.b16 %v3501
    %v3642 = vunpack.c.l.b16 %v3502
    %v3643 = vunpack.c.l.b16 %v3503
    %v3644 = vunpack.c.l.b16 %v3504
    %v3645 = vunpack.c.l.b16 %v3505
    %v3646 = vunpack.c.l.b16 %v3506
    %v3647 = vunpack.c.l.b16 %v3507
    %v3648 = vunpack.c.l.b16 %v3508
    %v3649 = vunpack.c.l.b16 %v3509
    %v3650 = vunpack.c.l.b16 %v3510
    %v3651 = vunpack.c.l.b16 %v3511
    %v3652 = vunpack.c.l.b16 %v3512
    %v3653 = vunpack.c.l.b16 %v3513
    %v3654 = vunpack.c.l.b16 %v3514
    %v3655 = vunpack.c.l.b16 %v3515
    %v3656 = vunpack.c.l.b16 %v3516
    %v3657 = vunpack.c.l.b16 %v3517
    %v3658 = vunpack.c.l.b16 %v3518
    %v3659 = vunpack.c.l.b16 %v3519
    %v3660 = vunpack.c.l.b16 %v3520
    %v3661 = vunpack.c.l.b16 %v3521
    %v3662 = vunpack.c.l.b16 %v3522
    %v3663 = vunpack.c.l.b16 %v3523
    %v3664 = vunpack.c.l.b16 %v3524
    %v3665 = vunpack.c.l.b16 %v3525
    %v3666 = vunpack.c.l.b16 %v3526
    %v3667 = vunpack.c.l.b16 %v3527
    %v3668 = vunpack.c.l.b16 %v3528
    %v3669 = vpack.c.b16 %v3606, %v3605
    %v3670 = vpack.c.b16 %v3608, %v3607
    %v3671 = vpack.c.b16 %v3610, %v3609
    %v3672 = vpack.c.b16 %v3612, %v3611
    %v3673 = vpack.c.b16 %v3614, %v3613
    %v3674 = vpack.c.b16 %v3616, %v3615
    %v3675 = vpack.c.b16 %v3618, %v3617
    %v3676 = vpack.c.b16 %v3620, %v3619
    %v3677 = vpack.c.b16 %v3622, %v3621
    %v3678 = vpack.c.b16 %v3624, %v3623
    %v3679 = vpack.c.b16 %v3626, %v3625
    %v3680 = vpack.c.b16 %v3628, %v3627
    %v3681 = vpack.c.b16 %v3630, %v3629
    %v3682 = vpack.c.b16 %v3632, %v3631
    %v3683 = vpack.c.b16 %v3634, %v3633
    %v3684 = vpack.c.b16 %v3636, %v3635
    %v3685 = vpack.c.b16 %v3638, %v3637
    %v3686 = vpack.c.b16 %v3640, %v3639
    %v3687 = vpack.c.b16 %v3642, %v3641
    %v3688 = vpack.c.b16 %v3644, %v3643
    %v3689 = vpack.c.b16 %v3646, %v3645
    %v3690 = vpack.c.b16 %v3648, %v3647
    %v3691 = vpack.c.b16 %v3650, %v3649
    %v3692 = vpack.c.b16 %v3652, %v3651
    %v3693 = vpack.c.b16 %v3654, %v3653
    %v3694 = vpack.c.b16 %v3656, %v3655
    %v3695 = vpack.c.b16 %v3658, %v3657
    %v3696 = vpack.c.b16 %v3660, %v3659
    %v3697 = vpack.c.b16 %v3662, %v3661
    %v3698 = vpack.c.b16 %v3664, %v3663
    %v3699 = vpack.c.b16 %v3666, %v3665
    %v3700 = vpack.c.b16 %v3668, %v3667
    %3733 = vmatprep.subr.bf16.mxu0 0
    %3734 = vmatpush1.bf16.msra.mxu0 %v3669
    %3735 = vmatprep.subr.bf16.mxu0 0
    %3736 = vmatpush1.bf16.msra.mxu0 %v3670
    %3737 = vmatprep.subr.bf16.mxu0 0
    %3738 = vmatpush1.bf16.msra.mxu0 %v3671
    %3739 = vmatprep.subr.bf16.mxu0 0
    %3740 = vmatpush1.bf16.msra.mxu0 %v3672
    %3741 = vmatprep.subr.bf16.mxu0 0
    %3742 = vmatpush1.bf16.msra.mxu0 %v3673
    %3743 = vmatprep.subr.bf16.mxu0 0
    %3744 = vmatpush1.bf16.msra.mxu0 %v3674
    %3745 = vmatprep.subr.bf16.mxu0 0
    %3746 = vmatpush1.bf16.msra.mxu0 %v3675
    %3747 = vmatprep.subr.bf16.mxu0 0
    %3748 = vmatpush1.bf16.msra.mxu0 %v3676
    %3749 = vmatprep.subr.bf16.mxu0 0
    %3750 = vmatpush1.bf16.msra.mxu0 %v3677
    %3751 = vmatprep.subr.bf16.mxu0 0
    %3752 = vmatpush1.bf16.msra.mxu0 %v3678
    %3753 = vmatprep.subr.bf16.mxu0 0
    %3754 = vmatpush1.bf16.msra.mxu0 %v3679
    %3755 = vmatprep.subr.bf16.mxu0 0
    %3756 = vmatpush1.bf16.msra.mxu0 %v3680
    %3757 = vmatprep.subr.bf16.mxu0 0
    %3758 = vmatpush1.bf16.msra.mxu0 %v3681
    %3759 = vmatprep.subr.bf16.mxu0 0
    %3760 = vmatpush1.bf16.msra.mxu0 %v3682
    %3761 = vmatprep.subr.bf16.mxu0 0
    %3762 = vmatpush1.bf16.msra.mxu0 %v3683
    %3763 = vmatprep.subr.bf16.mxu0 0
    %3764 = vmatpush1.bf16.msra.mxu0 %v3684
    %3765 = vmatprep.mubr.bf16.mxu0 %v3530
    %3766 = vmatmul.mubr.bf16.gmra.mrb[0].mxu0 %v3529
    %v3767 = vpop.f32.mrb[0].mxu0
    %v3768 = vadd.f32 %v3539, %v3767
    %v3769 = vpop.f32.mrb[0].mxu0
    %v3770 = vpop.f32.mrb[0].mxu0
    %v3771 = vadd.f32 %v3539, %v3770
    %v3772 = vpop.f32.mrb[0].mxu0
    %3773 = vdwg.mxu0
    %3774 = vmatprep.subr.bf16.mxu0 0
    %3775 = vmatpush1.bf16.msra.mxu0 %v3685
    %3776 = vmatprep.subr.bf16.mxu0 0
    %3777 = vmatpush1.bf16.msra.mxu0 %v3686
    %3778 = vmatprep.subr.bf16.mxu0 0
    %3779 = vmatpush1.bf16.msra.mxu0 %v3687
    %3780 = vmatprep.subr.bf16.mxu0 0
    %3781 = vmatpush1.bf16.msra.mxu0 %v3688
    %3782 = vmatprep.subr.bf16.mxu0 0
    %3783 = vmatpush1.bf16.msra.mxu0 %v3689
    %3784 = vmatprep.subr.bf16.mxu0 0
    %3785 = vmatpush1.bf16.msra.mxu0 %v3690
    %3786 = vmatprep.subr.bf16.mxu0 0
    %3787 = vmatpush1.bf16.msra.mxu0 %v3691
    %3788 = vmatprep.subr.bf16.mxu0 0
    %3789 = vmatpush1.bf16.msra.mxu0 %v3692
    %3790 = vmatprep.subr.bf16.mxu0 0
    %3791 = vmatpush1.bf16.msra.mxu0 %v3693
    %3792 = vmatprep.subr.bf16.mxu0 0
    %3793 = vmatpush1.bf16.msra.mxu0 %v3694
    %3794 = vmatprep.subr.bf16.mxu0 0
    %3795 = vmatpush1.bf16.msra.mxu0 %v3695
    %3796 = vmatprep.subr.bf16.mxu0 0
    %3797 = vmatpush1.bf16.msra.mxu0 %v3696
    %3798 = vmatprep.subr.bf16.mxu0 0
    %3799 = vmatpush1.bf16.msra.mxu0 %v3697
    %3800 = vmatprep.subr.bf16.mxu0 0
    %3801 = vmatpush1.bf16.msra.mxu0 %v3698
    %3802 = vmatprep.subr.bf16.mxu0 0
    %3803 = vmatpush1.bf16.msra.mxu0 %v3699
    %3804 = vmatprep.subr.bf16.mxu0 0
    %3805 = vmatpush1.bf16.msra.mxu0 %v3700
    %3806 = vmatprep.mubr.bf16.mxu0 %v3532
    %3807 = vmatmul.mubr.bf16.gmra.mrb[0].mxu0 %v3531
    %v3808 = vpop.f32.mrb[0].mxu0
    %v3809 = vadd.f32 %v3768, %v3808
    %v3810 = vpop.f32.mrb[0].mxu0
    %v3811 = vpop.f32.mrb[0].mxu0
    %v3812 = vadd.f32 %v3771, %v3811
    %v3813 = vpop.f32.mrb[0].mxu0
    %3814 = vdwg.mxu0
    %v3815 = vadd.f32 %v3809, %v3087
    %v3816 = vadd.f32 %v3812, %v3088
    %s3817 = scalar_lea.vmem %s13, 1
    %v3818 = vld [vmem:[%s3817] sm:$0x1]
    %s3819 = scalar_lea.vmem %s14, 1
    %v3820 = vld [vmem:[%s3819] sm:$0x1]
    %3821 = vadd.xlane.f32.xlu0 %v3815
    %v3822 = vpop.xlane.xlu0 %3821
    %3823 = vadd.xlane.f32.xlu0 %v3816
    %v3824 = vpop.xlane.xlu0 %3823
    %v3825 = vmul.f32 %v3822, %v126
    %v3826 = vmul.f32 %v3824, %v126
    %v3827 = vsub.f32 %v3815, %v3825
    %v3828 = vsub.f32 %v3816, %v3826
    %v3829 = vmul.f32 %v3827, %v3827
    %v3830 = vmul.f32 %v3828, %v3828
    %3831 = vadd.xlane.f32.xlu0 %v3829
    %v3832 = vpop.xlane.xlu0 %3831
    %3833 = vadd.xlane.f32.xlu0 %v3830
    %v3834 = vpop.xlane.xlu0 %3833
    %v3835 = vmul.f32 %v3832, %v126
    %v3836 = vmul.f32 %v3834, %v126
    %v3837 = vadd.f32 %v3835, 1e-12
    %v3838 = vadd.f32 %v3836, 1e-12
    %v3839 = vrsqrt.pop %v3837
    %v3840 = vrsqrt.pop %v3838
    %v3841 = vmul.f32 %v3827, %v3839
    %v3842 = vmul.f32 %v3828, %v3840
    %v3844 = vlaneseq
    %v3845 = vshrl.u32 %v3844, 7
    %v3846 = vsub.s32 0, %v3845
    %v3847 = vrot.slane %v3818, %v3846
    %v3849 = vmul.f32 %v3841, %v3847
    %v3850 = vmul.f32 %v3842, %v3847
    %v3852 = vlaneseq
    %v3853 = vshrl.u32 %v3852, 7
    %v3854 = vsub.s32 0, %v3853
    %v3855 = vrot.slane %v3820, %v3854
    %v3857 = vadd.f32 %v3849, %v3855
    %v3858 = vadd.f32 %v3850, %v3855
    %v3859 = vld [vmem:[%s15] sm:$0xf]
    %v3860 = vld [vmem:[%s15 + $0x4] sm:$0xf]
    %v3861 = vld [vmem:[%s15 + $0x8] sm:$0xf]
    %v3862 = vld [vmem:[%s15 + $0xc] sm:$0xf]
    %v3863 = vld [vmem:[%s15 + $0x10] sm:$0xf]
    %v3864 = vld [vmem:[%s15 + $0x14] sm:$0xf]
    %v3865 = vld [vmem:[%s15 + $0x18] sm:$0xf]
    %v3866 = vld [vmem:[%s15 + $0x1c] sm:$0xf]
    %v3867 = vld [vmem:[%s15 + $0x20] sm:$0xf]
    %v3868 = vld [vmem:[%s15 + $0x24] sm:$0xf]
    %v3869 = vld [vmem:[%s15 + $0x28] sm:$0xf]
    %v3870 = vld [vmem:[%s15 + $0x2c] sm:$0xf]
    %v3871 = vld [vmem:[%s15 + $0x30] sm:$0xf]
    %v3872 = vld [vmem:[%s15 + $0x34] sm:$0xf]
    %v3873 = vld [vmem:[%s15 + $0x38] sm:$0xf]
    %v3874 = vld [vmem:[%s15 + $0x3c] sm:$0xf]
    %v3875 = vpack.c.bf16 %v3858, %v3857
    %v3876 = vld [vmem:[%s16] sm:$0x1]
    %v3878 = vlaneseq
    %v3879 = vshrl.u32 %v3878, 7
    %v3880 = vsub.s32 0, %v3879
    %v3881 = vrot.slane %v3876, %v3880
    %v3899 = vunpack.c.l.b16 %v3859
    %v3900 = vunpack.c.l.b16 %v3860
    %v3901 = vunpack.c.l.b16 %v3861
    %v3902 = vunpack.c.l.b16 %v3862
    %v3903 = vunpack.c.l.b16 %v3863
    %v3904 = vunpack.c.l.b16 %v3864
    %v3905 = vunpack.c.l.b16 %v3865
    %v3906 = vunpack.c.l.b16 %v3866
    %v3907 = vunpack.c.l.b16 %v3867
    %v3908 = vunpack.c.l.b16 %v3868
    %v3909 = vunpack.c.l.b16 %v3869
    %v3910 = vunpack.c.l.b16 %v3870
    %v3911 = vunpack.c.l.b16 %v3871
    %v3912 = vunpack.c.l.b16 %v3872
    %v3913 = vunpack.c.l.b16 %v3873
    %v3914 = vunpack.c.l.b16 %v3874
    %v3915 = vpack.c.b16 %v3900, %v3899
    %v3916 = vpack.c.b16 %v3902, %v3901
    %v3917 = vpack.c.b16 %v3904, %v3903
    %v3918 = vpack.c.b16 %v3906, %v3905
    %v3919 = vpack.c.b16 %v3908, %v3907
    %v3920 = vpack.c.b16 %v3910, %v3909
    %v3921 = vpack.c.b16 %v3912, %v3911
    %v3922 = vpack.c.b16 %v3914, %v3913
    %3931 = vmatprep.subr.bf16.mxu0 0
    %3932 = vmatpush1.bf16.msra.mxu0 %v3915
    %3933 = vmatprep.subr.bf16.mxu0 0
    %3934 = vmatpush1.bf16.msra.mxu0 %v3916
    %3935 = vmatprep.subr.bf16.mxu0 0
    %3936 = vmatpush1.bf16.msra.mxu0 %v3917
    %3937 = vmatprep.subr.bf16.mxu0 0
    %3938 = vmatpush1.bf16.msra.mxu0 %v3918
    %3939 = vmatprep.subr.bf16.mxu0 0
    %3940 = vmatpush1.bf16.msra.mxu0 %v3919
    %3941 = vmatprep.subr.bf16.mxu0 0
    %3942 = vmatpush1.bf16.msra.mxu0 %v3920
    %3943 = vmatprep.subr.bf16.mxu0 0
    %3944 = vmatpush1.bf16.msra.mxu0 %v3921
    %3945 = vmatprep.subr.bf16.mxu0 0
    %3946 = vmatpush1.bf16.msra.mxu0 %v3922
    %3947 = vmatprep.subr.bf16.mxu0 0
    %3948 = vmatpush1.bf16.msra.mxu0 0
    %3949 = vmatprep.subr.bf16.mxu0 0
    %3950 = vmatpush1.bf16.msra.mxu0 0
    %3951 = vmatprep.subr.bf16.mxu0 0
    %3952 = vmatpush1.bf16.msra.mxu0 0
    %3953 = vmatprep.subr.bf16.mxu0 0
    %3954 = vmatpush1.bf16.msra.mxu0 0
    %3955 = vmatprep.subr.bf16.mxu0 0
    %3956 = vmatpush1.bf16.msra.mxu0 0
    %3957 = vmatprep.subr.bf16.mxu0 0
    %3958 = vmatpush1.bf16.msra.mxu0 0
    %3959 = vmatprep.subr.bf16.mxu0 0
    %3960 = vmatpush1.bf16.msra.mxu0 0
    %3961 = vmatprep.subr.bf16.mxu0 0
    %3962 = vmatpush1.bf16.msra.mxu0 0
    %3963 = vmatprep.mubr.bf16.mxu0 0
    %3964 = vmatmul.mubr.bf16.gmra.mrb[0].mxu0 %v3875
    %v3965 = vpop.f32.mrb[0].mxu0
    %v3966 = vadd.f32 %v3881, %v3965
    %v3967 = vpop.f32.mrb[0].mxu0
    %v3968 = vpop.f32.mrb[0].mxu0
    %v3969 = vadd.f32 %v3881, %v3968
    %v3970 = vpop.f32.mrb[0].mxu0
    %3971 = vdwg.mxu0
    %v3972 = vtanh.pop %v3966
    %v3973 = vtanh.pop %v3969
    %v3974 = vld [vmem:[%s17] sm:$0xf]
    %v3975 = vld [vmem:[%s17 + $0x4] sm:$0xf]
    %v3976 = vld [vmem:[%s17 + $0x8] sm:$0xf]
    %v3977 = vld [vmem:[%s17 + $0xc] sm:$0xf]
    %v3978 = vld [vmem:[%s17 + $0x10] sm:$0xf]
    %v3979 = vld [vmem:[%s17 + $0x14] sm:$0xf]
    %v3980 = vld [vmem:[%s17 + $0x18] sm:$0xf]
    %v3981 = vld [vmem:[%s17 + $0x1c] sm:$0xf]
    %v3982 = vld [vmem:[%s17 + $0x20] sm:$0xf]
    %v3983 = vld [vmem:[%s17 + $0x24] sm:$0xf]
    %v3984 = vld [vmem:[%s17 + $0x28] sm:$0xf]
    %v3985 = vld [vmem:[%s17 + $0x2c] sm:$0xf]
    %v3986 = vld [vmem:[%s17 + $0x30] sm:$0xf]
    %v3987 = vld [vmem:[%s17 + $0x34] sm:$0xf]
    %v3988 = vld [vmem:[%s17 + $0x38] sm:$0xf]
    %v3989 = vld [vmem:[%s17 + $0x3c] sm:$0xf]
    %v3990 = vpack.c.bf16 %v3973, %v3972
    %v3991 = vld [vmem:[%s18] sm:$0x1]
    %v3993 = vlaneseq
    %v3994 = vshrl.u32 %v3993, 7
    %v3995 = vsub.s32 0, %v3994
    %v3996 = vrot.slane %v3991, %v3995
    %v4014 = vunpack.c.l.b16 %v3974
    %v4015 = vunpack.c.l.b16 %v3975
    %v4016 = vunpack.c.l.b16 %v3976
    %v4017 = vunpack.c.l.b16 %v3977
    %v4018 = vunpack.c.l.b16 %v3978
    %v4019 = vunpack.c.l.b16 %v3979
    %v4020 = vunpack.c.l.b16 %v3980
    %v4021 = vunpack.c.l.b16 %v3981
    %v4022 = vunpack.c.l.b16 %v3982
    %v4023 = vunpack.c.l.b16 %v3983
    %v4024 = vunpack.c.l.b16 %v3984
    %v4025 = vunpack.c.l.b16 %v3985
    %v4026 = vunpack.c.l.b16 %v3986
    %v4027 = vunpack.c.l.b16 %v3987
    %v4028 = vunpack.c.l.b16 %v3988
    %v4029 = vunpack.c.l.b16 %v3989
    %v4030 = vpack.c.b16 %v4015, %v4014
    %v4031 = vpack.c.b16 %v4017, %v4016
    %v4032 = vpack.c.b16 %v4019, %v4018
    %v4033 = vpack.c.b16 %v4021, %v4020
    %v4034 = vpack.c.b16 %v4023, %v4022
    %v4035 = vpack.c.b16 %v4025, %v4024
    %v4036 = vpack.c.b16 %v4027, %v4026
    %v4037 = vpack.c.b16 %v4029, %v4028
    %4046 = vmatprep.subr.bf16.mxu0 0
    %4047 = vmatpush1.bf16.msra.mxu0 %v4030
    %4048 = vmatprep.subr.bf16.mxu0 0
    %4049 = vmatpush1.bf16.msra.mxu0 %v4031
    %4050 = vmatprep.subr.bf16.mxu0 0
    %4051 = vmatpush1.bf16.msra.mxu0 %v4032
    %4052 = vmatprep.subr.bf16.mxu0 0
    %4053 = vmatpush1.bf16.msra.mxu0 %v4033
    %4054 = vmatprep.subr.bf16.mxu0 0
    %4055 = vmatpush1.bf16.msra.mxu0 %v4034
    %4056 = vmatprep.subr.bf16.mxu0 0
    %4057 = vmatpush1.bf16.msra.mxu0 %v4035
    %4058 = vmatprep.subr.bf16.mxu0 0
    %4059 = vmatpush1.bf16.msra.mxu0 %v4036
    %4060 = vmatprep.subr.bf16.mxu0 0
    %4061 = vmatpush1.bf16.msra.mxu0 %v4037
    %4062 = vmatprep.subr.bf16.mxu0 0
    %4063 = vmatpush1.bf16.msra.mxu0 0
    %4064 = vmatprep.subr.bf16.mxu0 0
    %4065 = vmatpush1.bf16.msra.mxu0 0
    %4066 = vmatprep.subr.bf16.mxu0 0
    %4067 = vmatpush1.bf16.msra.mxu0 0
    %4068 = vmatprep.subr.bf16.mxu0 0
    %4069 = vmatpush1.bf16.msra.mxu0 0
    %4070 = vmatprep.subr.bf16.mxu0 0
    %4071 = vmatpush1.bf16.msra.mxu0 0
    %4072 = vmatprep.subr.bf16.mxu0 0
    %4073 = vmatpush1.bf16.msra.mxu0 0
    %4074 = vmatprep.subr.bf16.mxu0 0
    %4075 = vmatpush1.bf16.msra.mxu0 0
    %4076 = vmatprep.subr.bf16.mxu0 0
    %4077 = vmatpush1.bf16.msra.mxu0 0
    %4078 = vmatprep.mubr.bf16.mxu0 0
    %4079 = vmatmul.mubr.bf16.gmra.mrb[0].mxu0 %v3990
    %v4080 = vpop.f32.mrb[0].mxu0
    %v4081 = vadd.f32 %v3996, %v4080
    %v4082 = vpop.f32.mrb[0].mxu0
    %v4083 = vpop.f32.mrb[0].mxu0
    %v4084 = vadd.f32 %v3996, %v4083
    %v4085 = vpop.f32.mrb[0].mxu0
    %4086 = vdwg.mxu0
    %4087 = vst [vmem:[%s19] sm:$0xff] %v4081
    %4088 = vst [vmem:[%s19 + $0x8] sm:$0xff] %v4084
    // Predicated region
    $region94: #{nntest_forward.1} parent=1 // pred_check
      _
    $region95: #{nntest_forward.1} parent=1 // pred_check_branch
      %4090 = sbr.rel (0) target = $region97
    $region96: #{nntest_forward.1} parent=1 // pred_region
      _
    $region97: #{nntest_forward.1} parent=1 // pred_fallthru
      _
    // Predicated region
    $region98: #{nntest_forward.1} parent=1 // pred_check
      _
    $region99: #{nntest_forward.1} parent=1 // pred_check_branch
      %4092 = sbr.rel (0) target = $region101
    $region100: #{nntest_forward.1} parent=1 // pred_region
      _
    $region101: #{nntest_forward.1} parent=1 // pred_fallthru
      _
    %4093 = vsyncpa [#allocation3], 1
    %4094 = vsyncpa [#allocation5], 1
    %4095 = vsyncpa [#allocation8], 1

</llo_original>
